<compile_context>
chip_gen: v5e
topology: v5e:2x2
jax: 0.10.0
libtpu: 0.0.40
codegen_flags: <defaults>
</compile_context>

<pallas_src>
import jax
import jax.numpy as jnp
from jax.experimental import pallas as pl
from jax.experimental.pallas import tpu as pltpu

# ----- module hyper-parameters (consistent with the PyTorch module) -----
DIM = 32          # dim
HEADS = 4         # heads
DIM_HEAD = 8      # dim_head
MLP_DIM = 64      # mlp_dim
INNER = HEADS * DIM_HEAD          # 32
SCALE = DIM_HEAD ** -0.5
EPS = 1e-5                         # torch.nn.LayerNorm default eps

# ----- packed-weight slab layout (rows) -----
_R_WIN = 0        # rows [  0, 32): (32,256) [wqkv*scaleQ | wq*scale | wkv | wff1]
_R_WOUT = 32      # rows [ 32, 64): (32, 64) [wo1 | wo2]
_R_WFF2 = 64      # rows [ 64,128): (64, 32) wff2
_R_VEC = 128      # rows [128,144): 10 used rows of LN weights / biases
_SLAB_ROWS = 144
_SLAB_COLS = 256


# ----------------------------- in-kernel math helpers -----------------------------
def _erf(x):
    # Abramowitz & Stegun 7.1.26 (max abs err ~1.5e-7) — exp/arith only; matches
    # torch.nn.GELU (exact erf) to float32 accuracy.
    p = 0.3275911
    a1, a2, a3, a4, a5 = 0.254829592, -0.284496736, 1.421413741, -1.453152027, 1.061405429
    s = jnp.where(x >= 0.0, 1.0, -1.0)
    ax = jnp.abs(x)
    t = 1.0 / (1.0 + p * ax)
    poly = ((((a5 * t + a4) * t + a3) * t + a2) * t + a1) * t
    return s * (1.0 - poly * jnp.exp(-ax * ax))


def _gelu(x):
    return 0.5 * x * (1.0 + _erf(x * 0.7071067811865476))


def _layernorm(v, w, b):
    mu = jnp.mean(v, axis=-1, keepdims=True)
    var = jnp.mean((v - mu) ** 2, axis=-1, keepdims=True)
    return (v - mu) * jax.lax.rsqrt(var + EPS) * w + b


def _mha_proj(q, k, v, wo, tb, nq, nk):
    # q: (tb*nq, INNER), k/v: (tb*nk, INNER), wo: (INNER, DIM).
    # Attention scale is already folded into the Q projection weights.
    # The head concat is folded into the output projection: accumulate
    # o_h @ wo[h*DH:(h+1)*DH, :] in f32 (no 8-lane concatenation / relayout).
    q3 = q.reshape(tb, nq, INNER)
    k3 = k.reshape(tb, nk, INNER)
    v3 = v.reshape(tb, nk, INNER)
    acc = jnp.zeros((tb * nq, DIM), jnp.float32)
    for h in range(HEADS):
        sl = slice(h * DIM_HEAD, (h + 1) * DIM_HEAD)
        s = jnp.einsum("bqd,bkd->bqk", q3[:, :, sl], k3[:, :, sl],
                       preferred_element_type=jnp.float32)
        s = s - jnp.max(s, axis=-1, keepdims=True)
        e = jnp.exp(s)
        p = e / jnp.sum(e, axis=-1, keepdims=True)
        o = jnp.einsum("bqk,bkd->bqd", p, v3[:, :, sl],
                       preferred_element_type=jnp.float32)
        acc = acc + jnp.dot(o.reshape(tb * nq, DIM_HEAD), wo[sl, :],
                            preferred_element_type=jnp.float32)
    return acc


# ----------------------------------- kernel -----------------------------------
def _make_kernel(TB, N, M):
    T, TY = TB * N, TB * M
    # Fused cross-attention Q/KV projection requires 8-sublane-aligned row slabs.
    fuse_cross = (T % 8 == 0) and (TY % 8 == 0)

    def kernel(x_ref, y_ref, w_ref, o_ref):
        x = x_ref[...].astype(jnp.float32)        # (T, DIM)
        yv = y_ref[...].astype(jnp.float32)       # (TY, DIM)

        # Static slices of the single packed constant slab.
        WIN = w_ref[_R_WIN:_R_WIN + DIM, :]       # (32, 256) input-side projections
        WOUT = w_ref[_R_WOUT:_R_WOUT + INNER, :]  # (32, 256) [wo1 | wo2 | pad]
        WFF2 = w_ref[_R_WFF2:_R_WFF2 + MLP_DIM, :]  # (64, 256) wff2 | pad
        V = w_ref[_R_VEC:_R_VEC + 16, :]          # (16, 256) LN / bias rows | pad

        ln1w, ln1b = V[0:1, :DIM], V[1:2, :DIM]
        ln2w, ln2b = V[2:3, :DIM], V[3:4, :DIM]
        ln3w, ln3b = V[4:5, :DIM], V[5:6, :DIM]
        bo1, bo2 = V[6:7, :DIM], V[7:8, :DIM]
        bff2 = V[8:9, :DIM]
        bff1 = V[9:10, :MLP_DIM]

        # --- PreNorm(Attention)(x) + x ---
        xn = _layernorm(x, ln1w, ln1b)
        qkv = jnp.dot(xn, WIN[:, 0:3 * INNER],
                      preferred_element_type=jnp.float32)             # (T, 96)
        a = _mha_proj(qkv[:, 0:INNER], qkv[:, INNER:2 * INNER],
                      qkv[:, 2 * INNER:3 * INNER],
                      WOUT[:, 0:DIM], TB, N, N)
        x = a + bo1 + x

        # --- PreNorm(CAttention)(x, y) + x  (norm applies to x only; y used raw) ---
        xn = _layernorm(x, ln2w, ln2b)
        if fuse_cross:
            stacked = jnp.concatenate([xn, yv], axis=0)               # (T+TY, DIM)
            proj = jnp.dot(stacked, WIN[:, 3 * INNER:6 * INNER],
                           preferred_element_type=jnp.float32)        # (T+TY, 96)
            q = proj[0:T, 0:INNER]
            kq = proj[T:T + TY, INNER:2 * INNER]
            vq = proj[T:T + TY, 2 * INNER:3 * INNER]
        else:
            q = jnp.dot(xn, WIN[:, 3 * INNER:4 * INNER],
                        preferred_element_type=jnp.float32)           # (T, 32)
            kvp = jnp.dot(yv, WIN[:, 4 * INNER:6 * INNER],
                          preferred_element_type=jnp.float32)         # (TY, 64)
            kq, vq = kvp[:, 0:INNER], kvp[:, INNER:2 * INNER]
        a = _mha_proj(q, kq, vq, WOUT[:, DIM:2 * DIM], TB, N, M)
        x = a + bo2 + x

        # --- PreNorm(FeedForward)(x) + x ---
        xn = _layernorm(x, ln3w, ln3b)
        h = _gelu(jnp.dot(xn, WIN[:, 6 * INNER:6 * INNER + MLP_DIM],
                          preferred_element_type=jnp.float32) + bff1)
        x = jnp.dot(h, WFF2[:, 0:DIM],
                    preferred_element_type=jnp.float32) + bff2 + x

        o_ref[...] = x.astype(o_ref.dtype)

    return kernel


# ------------------------------ parameter packing ------------------------------
def _pack_params(params):
    # Fold attention scale into the Q projections (free: done once, host-side).
    wqkv = params["wqkv"]
    wqkv_s = jnp.concatenate([wqkv[:, :INNER] * SCALE, wqkv[:, INNER:]], axis=1)
    w_in = jnp.concatenate(
        [wqkv_s, params["wq"] * SCALE, params["wkv"], params["wff1"]], axis=1)  # (32,256)
    w_out = jnp.concatenate([params["wo1"], params["wo2"]], axis=1)             # (32,64)
    w_ff2 = params["wff2"]                                                      # (64,32)

    def row(v, width=MLP_DIM):
        v = jnp.asarray(v, jnp.float32).reshape(1, -1)
        return jnp.pad(v, ((0, 0), (0, width - v.shape[1])))

    vecs = jnp.concatenate([
        row(params["ln1w"]), row(params["ln1b"]),
        row(params["ln2w"]), row(params["ln2b"]),
        row(params["ln3w"]), row(params["ln3b"]),
        row(params["bo1"]), row(params["bo2"]),
        row(params["bff2"]), row(params["bff1"]),
    ], axis=0)                                                                  # (10,64)

    def block(a, rows):
        a = jnp.asarray(a, jnp.float32)
        r, c = a.shape
        return jnp.pad(a, ((0, rows - r), (0, _SLAB_COLS - c)))

    slab = jnp.concatenate([
        block(w_in, 32), block(w_out, 32), block(w_ff2, 64), block(vecs, 16),
    ], axis=0)                                                                  # (144,256)
    assert slab.shape == (_SLAB_ROWS, _SLAB_COLS)
    return slab


# ----------------------------------- wrapper -----------------------------------
def _num_steps(total_rows_x):
    # Generation-aware grid split: only v7x has 2 TensorCores per chip, and only
    # split when each core gets enough rows (>=256) to amortize the per-step cost.
    try:
        kind = jax.devices()[0].device_kind.lower()
    except Exception:
        kind = ""
    if "v7" not in kind:
        return 1
    if total_rows_x < 512:
        return 1
    return 2


def transformer_cross(x, y, params):
    B, N, D = x.shape
    _, M, _ = y.shape
    assert D == DIM

    steps = _num_steps(B * N)
    if steps > 1 and (B % steps != 0
                      or ((B // steps) * N) % 8 != 0
                      or ((B // steps) * M) % 8 != 0):
        steps = 1                    # block first dim must be full or 8-divisible
    TB = B // steps

    slab = _pack_params(params)

    x2 = x.reshape(B * N, D)         # contiguous token slabs; leading-dim blocks only
    y2 = y.reshape(B * M, D)

    # VMEM budget: double-buffered x / y / out blocks + constant slab, 4x headroom,
    # floored at 16 MiB (v5e scoped default) and capped at 64 MiB (v7x per-TC VMEM).
    blk_bytes = 4 * (2 * (TB * N * D + TB * M * D + TB * N * D) + 2 * slab.size)
    vmem_limit = int(min(max(4 * blk_bytes, 16 << 20), 64 << 20))

    out2 = pl.pallas_call(
        _make_kernel(TB, N, M),
        out_shape=jax.ShapeDtypeStruct((B * N, D), x.dtype),
        grid=(steps,),
        in_specs=[
            pl.BlockSpec((TB * N, D), lambda g: (g, 0)),   # x token slab
            pl.BlockSpec((TB * M, D), lambda g: (g, 0)),   # y token slab
            pl.BlockSpec(slab.shape, lambda g: (0, 0)),    # packed constant slab
        ],
        out_specs=pl.BlockSpec((TB * N, D), lambda g: (g, 0)),
        compiler_params=pltpu.CompilerParams(
            dimension_semantics=("parallel",),
            vmem_limit_bytes=vmem_limit),
    )(x2, y2, slab)

    return out2.reshape(B, N, D)


# ---------------------------- deterministic parameters ----------------------------
def init_params(key):
    ks = jax.random.split(key, 7)

    def lin(k, fi, fo, bias=True):
        # torch.nn.Linear default init U(-1/sqrt(fan_in), 1/sqrt(fan_in));
        # weights stored as (in, out) so the kernel computes x @ W (== x @ W_torch.T).
        kw, kb = jax.random.split(k)
        bound = 1.0 / (fi ** 0.5)
        w = jax.random.uniform(kw, (fi, fo), jnp.float32, -bound, bound)
        b = jax.random.uniform(kb, (1, fo), jnp.float32, -bound, bound) if bias else None
        return w, b

    p = {}
    p["ln1w"] = jnp.ones((1, DIM), jnp.float32)
    p["ln1b"] = jnp.zeros((1, DIM), jnp.float32)
    p["wqkv"], _ = lin(ks[0], DIM, 3 * INNER, bias=False)
    p["wo1"], p["bo1"] = lin(ks[1], INNER, DIM)
    p["ln2w"] = jnp.ones((1, DIM), jnp.float32)
    p["ln2b"] = jnp.zeros((1, DIM), jnp.float32)
    p["wq"], _ = lin(ks[2], DIM, INNER, bias=False)
    p["wkv"], _ = lin(ks[3], DIM, 2 * INNER, bias=False)
    p["wo2"], p["bo2"] = lin(ks[4], INNER, DIM)
    p["ln3w"] = jnp.ones((1, DIM), jnp.float32)
    p["ln3b"] = jnp.zeros((1, DIM), jnp.float32)
    p["wff1"], p["bff1"] = lin(ks[5], DIM, MLP_DIM)
    p["wff2"], p["bff2"] = lin(ks[6], MLP_DIM, DIM)
    return p


# ------------------------------- pure-JAX reference -------------------------------
def reference(x, y, p):
    def ln(v, w, b):
        mu = v.mean(-1, keepdims=True)
        var = ((v - mu) ** 2).mean(-1, keepdims=True)
        return (v - mu) / jnp.sqrt(var + EPS) * w + b

    def split_heads(t):  # (B, n, INNER) -> (B, H, n, DH)
        B, n, _ = t.shape
        return t.reshape(B, n, HEADS, DIM_HEAD).transpose(0, 2, 1, 3)

    def mha(q, k, v):
        dots = jnp.einsum("bhnd,bhmd->bhnm", q, k) * SCALE
        attn = jax.nn.softmax(dots, axis=-1)
        o = jnp.einsum("bhnm,bhmd->bhnd", attn, v)
        B, H, n, dh = o.shape
        return o.transpose(0, 2, 1, 3).reshape(B, n, H * dh)

    xn = ln(x, p["ln1w"], p["ln1b"])
    qkv = xn @ p["wqkv"]
    q, k, v = jnp.split(qkv, 3, axis=-1)
    x = mha(split_heads(q), split_heads(k), split_heads(v)) @ p["wo1"] + p["bo1"] + x

    xn = ln(x, p["ln2w"], p["ln2b"])
    q = xn @ p["wq"]
    kv = y @ p["wkv"]
    k, v = jnp.split(kv, 2, axis=-1)
    x = mha(split_heads(q), split_heads(k), split_heads(v)) @ p["wo2"] + p["bo2"] + x

    xn = ln(x, p["ln3w"], p["ln3b"])
    h = jax.nn.gelu(xn @ p["wff1"] + p["bff1"], approximate=False)
    x = h @ p["wff2"] + p["bff2"] + x
    return x


# ------------------------------------- main -------------------------------------
if __name__ == "__main__":
    key = jax.random.PRNGKey(0)
    kx, ky, kp = jax.random.split(key, 3)

    B, N, M = 4, 16, 8   # batch, x-sequence length, y-sequence length
    x = jax.random.normal(kx, (B, N, DIM), jnp.float32)
    y = jax.random.normal(ky, (B, M, DIM), jnp.float32)
    params = init_params(kp)

    out = transformer_cross(x, y, params)
    jax.block_until_ready(out)

    ref = reference(x, y, params)
    assert out.shape == (B, N, DIM)
    assert jnp.allclose(out, ref, atol=1e-4, rtol=1e-4), float(jnp.max(jnp.abs(out - ref)))

    print("KERNEL_OK")
</pallas_src>

<mosaic_0001>
module attributes {stable_mosaic.version = 11 : i64} {
  func.func @kernel(%arg0: i32, %arg1: memref<64x32xf32, #tpu.memory_space<vmem>>, %arg2: memref<32x32xf32, #tpu.memory_space<vmem>>, %arg3: memref<144x256xf32, #tpu.memory_space<vmem>>, %arg4: memref<64x32xf32, #tpu.memory_space<vmem>>) attributes {dimension_semantics = [#tpu.dimension_semantics<parallel>], iteration_bounds = array<i64: 1>, scalar_prefetch = 0 : i64, scratch_operands = 0 : i64, tpu.core_type = #tpu.core_type<tc>, window_params = [{transform_indices = @transform_0, window_bounds = array<i64: 64, 32>}, {transform_indices = @transform_1, window_bounds = array<i64: 32, 32>}, {pipeline_mode = #tpu.pipeline_mode<synchronous>, transform_indices = @transform_2, window_bounds = array<i64: 144, 256>}, {transform_indices = @transform_3, window_bounds = array<i64: 64, 32>}]} {
    %c0 = arith.constant 0 : index
    %c0_0 = arith.constant 0 : index
    %0 = vector.load %arg1[%c0, %c0_0] : memref<64x32xf32, #tpu.memory_space<vmem>>, vector<64x32xf32>
    %c0_1 = arith.constant 0 : index
    %c0_2 = arith.constant 0 : index
    %1 = vector.load %arg2[%c0_1, %c0_2] : memref<32x32xf32, #tpu.memory_space<vmem>>, vector<32x32xf32>
    %c0_3 = arith.constant 0 : index
    %c0_4 = arith.constant 0 : index
    %2 = vector.load %arg3[%c0_3, %c0_4] : memref<144x256xf32, #tpu.memory_space<vmem>>, vector<32x256xf32>
    %c32 = arith.constant 32 : index
    %c0_5 = arith.constant 0 : index
    %3 = vector.load %arg3[%c32, %c0_5] : memref<144x256xf32, #tpu.memory_space<vmem>>, vector<32x256xf32>
    %c64 = arith.constant 64 : index
    %c0_6 = arith.constant 0 : index
    %4 = vector.load %arg3[%c64, %c0_6] : memref<144x256xf32, #tpu.memory_space<vmem>>, vector<64x256xf32>
    %c128 = arith.constant 128 : index
    %c0_7 = arith.constant 0 : index
    %5 = vector.load %arg3[%c128, %c0_7] : memref<144x256xf32, #tpu.memory_space<vmem>>, vector<16x256xf32>
    %6 = vector.extract_strided_slice %5 {offsets = [0, 0], sizes = [1, 32], strides = [1, 1]} : vector<16x256xf32> to vector<1x32xf32>
    %7 = vector.extract_strided_slice %5 {offsets = [1, 0], sizes = [1, 32], strides = [1, 1]} : vector<16x256xf32> to vector<1x32xf32>
    %8 = vector.extract_strided_slice %5 {offsets = [2, 0], sizes = [1, 32], strides = [1, 1]} : vector<16x256xf32> to vector<1x32xf32>
    %9 = vector.extract_strided_slice %5 {offsets = [3, 0], sizes = [1, 32], strides = [1, 1]} : vector<16x256xf32> to vector<1x32xf32>
    %10 = vector.extract_strided_slice %5 {offsets = [4, 0], sizes = [1, 32], strides = [1, 1]} : vector<16x256xf32> to vector<1x32xf32>
    %11 = vector.extract_strided_slice %5 {offsets = [5, 0], sizes = [1, 32], strides = [1, 1]} : vector<16x256xf32> to vector<1x32xf32>
    %12 = vector.extract_strided_slice %5 {offsets = [6, 0], sizes = [1, 32], strides = [1, 1]} : vector<16x256xf32> to vector<1x32xf32>
    %13 = vector.extract_strided_slice %5 {offsets = [7, 0], sizes = [1, 32], strides = [1, 1]} : vector<16x256xf32> to vector<1x32xf32>
    %14 = vector.extract_strided_slice %5 {offsets = [8, 0], sizes = [1, 32], strides = [1, 1]} : vector<16x256xf32> to vector<1x32xf32>
    %15 = vector.extract_strided_slice %5 {offsets = [9, 0], sizes = [1, 64], strides = [1, 1]} : vector<16x256xf32> to vector<1x64xf32>
    %cst = arith.constant dense<0.000000e+00> : vector<64xf32>
    %16 = vector.multi_reduction <add>, %0, %cst [1] : vector<64x32xf32> to vector<64xf32>
    %17 = vector.shape_cast %16 : vector<64xf32> to vector<64x1xf32>
    %cst_8 = arith.constant 3.200000e+01 : f32
    %18 = vector.broadcast %cst_8 : f32 to vector<64x1xf32>
    %19 = arith.divf %17, %18 : vector<64x1xf32>
    %20 = vector.broadcast %19 : vector<64x1xf32> to vector<64x32xf32>
    %21 = arith.subf %0, %20 : vector<64x32xf32>
    %22 = arith.mulf %21, %21 : vector<64x32xf32>
    %cst_9 = arith.constant dense<0.000000e+00> : vector<64xf32>
    %23 = vector.multi_reduction <add>, %22, %cst_9 [1] : vector<64x32xf32> to vector<64xf32>
    %24 = vector.shape_cast %23 : vector<64xf32> to vector<64x1xf32>
    %cst_10 = arith.constant 3.200000e+01 : f32
    %25 = vector.broadcast %cst_10 : f32 to vector<64x1xf32>
    %26 = arith.divf %24, %25 : vector<64x1xf32>
    %27 = vector.broadcast %19 : vector<64x1xf32> to vector<64x32xf32>
    %28 = arith.subf %0, %27 : vector<64x32xf32>
    %cst_11 = arith.constant 9.99999974E-6 : f32
    %29 = vector.broadcast %cst_11 : f32 to vector<64x1xf32>
    %30 = arith.addf %26, %29 : vector<64x1xf32>
    %31 = math.rsqrt %30 : vector<64x1xf32>
    %32 = vector.broadcast %31 : vector<64x1xf32> to vector<64x32xf32>
    %33 = arith.mulf %28, %32 : vector<64x32xf32>
    %34 = vector.broadcast %6 : vector<1x32xf32> to vector<64x32xf32>
    %35 = arith.mulf %33, %34 : vector<64x32xf32>
    %36 = vector.broadcast %7 : vector<1x32xf32> to vector<64x32xf32>
    %37 = arith.addf %35, %36 : vector<64x32xf32>
    %38 = vector.extract_strided_slice %2 {offsets = [0, 0], sizes = [32, 96], strides = [1, 1]} : vector<32x256xf32> to vector<32x96xf32>
    %cst_12 = arith.constant dense<0.000000e+00> : vector<64x96xf32>
    %39 = tpu.matmul %37, %38, %cst_12 {dimension_numbers = #tpu.dot_dimension_numbers<[1], [0], [0], [1], [0, 0, 1, 1], [], []>} : vector<64x32xf32>, vector<32x96xf32>, vector<64x96xf32> -> vector<64x96xf32>
    %40 = vector.extract_strided_slice %39 {offsets = [0, 0], sizes = [64, 32], strides = [1, 1]} : vector<64x96xf32> to vector<64x32xf32>
    %41 = vector.extract_strided_slice %39 {offsets = [0, 32], sizes = [64, 32], strides = [1, 1]} : vector<64x96xf32> to vector<64x32xf32>
    %42 = vector.extract_strided_slice %39 {offsets = [0, 64], sizes = [64, 32], strides = [1, 1]} : vector<64x96xf32> to vector<64x32xf32>
    %43 = vector.extract_strided_slice %3 {offsets = [0, 0], sizes = [32, 32], strides = [1, 1]} : vector<32x256xf32> to vector<32x32xf32>
    %44 = vector.shape_cast %40 : vector<64x32xf32> to vector<4x16x32xf32>
    %45 = vector.shape_cast %41 : vector<64x32xf32> to vector<4x16x32xf32>
    %46 = vector.shape_cast %42 : vector<64x32xf32> to vector<4x16x32xf32>
    %cst_13 = arith.constant 0.000000e+00 : f32
    %47 = vector.broadcast %cst_13 : f32 to vector<64x32xf32>
    %48 = vector.extract_strided_slice %44 {offsets = [0, 0, 0], sizes = [4, 16, 8], strides = [1, 1, 1]} : vector<4x16x32xf32> to vector<4x16x8xf32>
    %49 = vector.extract_strided_slice %45 {offsets = [0, 0, 0], sizes = [4, 16, 8], strides = [1, 1, 1]} : vector<4x16x32xf32> to vector<4x16x8xf32>
    "tpu.trace_start"() <{level = 10 : i32, message = "bqd,bkd->bqk"}> : () -> ()
    %cst_14 = arith.constant dense<0.000000e+00> : vector<4x16x16xf32>
    %50 = tpu.matmul %48, %49, %cst_14 {dimension_numbers = #tpu.dot_dimension_numbers<[2], [2], [1], [1], [0, 0, 0, 1, 1, 1], [0], [0]>} : vector<4x16x8xf32>, vector<4x16x8xf32>, vector<4x16x16xf32> -> vector<4x16x16xf32>
    "tpu.trace_stop"() : () -> ()
    %cst_15 = arith.constant dense<0xFF800000> : vector<4x16xf32>
    %51 = vector.multi_reduction <maximumf>, %50, %cst_15 [2] : vector<4x16x16xf32> to vector<4x16xf32>
    %52 = vector.shape_cast %51 : vector<4x16xf32> to vector<4x16x1xf32>
    %53 = vector.broadcast %52 : vector<4x16x1xf32> to vector<4x16x16xf32>
    %54 = arith.subf %50, %53 : vector<4x16x16xf32>
    %55 = math.exp %54 : vector<4x16x16xf32>
    %cst_16 = arith.constant dense<0.000000e+00> : vector<4x16xf32>
    %56 = vector.multi_reduction <add>, %55, %cst_16 [2] : vector<4x16x16xf32> to vector<4x16xf32>
    %57 = vector.shape_cast %56 : vector<4x16xf32> to vector<4x16x1xf32>
    %58 = vector.broadcast %57 : vector<4x16x1xf32> to vector<4x16x16xf32>
    %59 = arith.divf %55, %58 : vector<4x16x16xf32>
    %60 = vector.extract_strided_slice %46 {offsets = [0, 0, 0], sizes = [4, 16, 8], strides = [1, 1, 1]} : vector<4x16x32xf32> to vector<4x16x8xf32>
    "tpu.trace_start"() <{level = 10 : i32, message = "bqk,bkd->bqd"}> : () -> ()
    %cst_17 = arith.constant dense<0.000000e+00> : vector<4x16x8xf32>
    %61 = tpu.matmul %59, %60, %cst_17 {dimension_numbers = #tpu.dot_dimension_numbers<[2], [1], [1], [2], [0, 0, 0, 1, 1, 2], [0], [0]>} : vector<4x16x16xf32>, vector<4x16x8xf32>, vector<4x16x8xf32> -> vector<4x16x8xf32>
    "tpu.trace_stop"() : () -> ()
    %62 = vector.shape_cast %61 : vector<4x16x8xf32> to vector<64x8xf32>
    %63 = vector.extract_strided_slice %43 {offsets = [0, 0], sizes = [8, 32], strides = [1, 1]} : vector<32x32xf32> to vector<8x32xf32>
    %cst_18 = arith.constant dense<0.000000e+00> : vector<64x32xf32>
    %64 = tpu.matmul %62, %63, %cst_18 {dimension_numbers = #tpu.dot_dimension_numbers<[1], [0], [0], [1], [0, 0, 1, 1], [], []>} : vector<64x8xf32>, vector<8x32xf32>, vector<64x32xf32> -> vector<64x32xf32>
    %65 = arith.addf %47, %64 : vector<64x32xf32>
    %66 = vector.extract_strided_slice %44 {offsets = [0, 0, 8], sizes = [4, 16, 8], strides = [1, 1, 1]} : vector<4x16x32xf32> to vector<4x16x8xf32>
    %67 = vector.extract_strided_slice %45 {offsets = [0, 0, 8], sizes = [4, 16, 8], strides = [1, 1, 1]} : vector<4x16x32xf32> to vector<4x16x8xf32>
    "tpu.trace_start"() <{level = 10 : i32, message = "bqd,bkd->bqk"}> : () -> ()
    %cst_19 = arith.constant dense<0.000000e+00> : vector<4x16x16xf32>
    %68 = tpu.matmul %66, %67, %cst_19 {dimension_numbers = #tpu.dot_dimension_numbers<[2], [2], [1], [1], [0, 0, 0, 1, 1, 1], [0], [0]>} : vector<4x16x8xf32>, vector<4x16x8xf32>, vector<4x16x16xf32> -> vector<4x16x16xf32>
    "tpu.trace_stop"() : () -> ()
    %cst_20 = arith.constant dense<0xFF800000> : vector<4x16xf32>
    %69 = vector.multi_reduction <maximumf>, %68, %cst_20 [2] : vector<4x16x16xf32> to vector<4x16xf32>
    %70 = vector.shape_cast %69 : vector<4x16xf32> to vector<4x16x1xf32>
    %71 = vector.broadcast %70 : vector<4x16x1xf32> to vector<4x16x16xf32>
    %72 = arith.subf %68, %71 : vector<4x16x16xf32>
    %73 = math.exp %72 : vector<4x16x16xf32>
    %cst_21 = arith.constant dense<0.000000e+00> : vector<4x16xf32>
    %74 = vector.multi_reduction <add>, %73, %cst_21 [2] : vector<4x16x16xf32> to vector<4x16xf32>
    %75 = vector.shape_cast %74 : vector<4x16xf32> to vector<4x16x1xf32>
    %76 = vector.broadcast %75 : vector<4x16x1xf32> to vector<4x16x16xf32>
    %77 = arith.divf %73, %76 : vector<4x16x16xf32>
    %78 = vector.extract_strided_slice %46 {offsets = [0, 0, 8], sizes = [4, 16, 8], strides = [1, 1, 1]} : vector<4x16x32xf32> to vector<4x16x8xf32>
    "tpu.trace_start"() <{level = 10 : i32, message = "bqk,bkd->bqd"}> : () -> ()
    %cst_22 = arith.constant dense<0.000000e+00> : vector<4x16x8xf32>
    %79 = tpu.matmul %77, %78, %cst_22 {dimension_numbers = #tpu.dot_dimension_numbers<[2], [1], [1], [2], [0, 0, 0, 1, 1, 2], [0], [0]>} : vector<4x16x16xf32>, vector<4x16x8xf32>, vector<4x16x8xf32> -> vector<4x16x8xf32>
    "tpu.trace_stop"() : () -> ()
    %80 = vector.shape_cast %79 : vector<4x16x8xf32> to vector<64x8xf32>
    %81 = vector.extract_strided_slice %43 {offsets = [8, 0], sizes = [8, 32], strides = [1, 1]} : vector<32x32xf32> to vector<8x32xf32>
    %cst_23 = arith.constant dense<0.000000e+00> : vector<64x32xf32>
    %82 = tpu.matmul %80, %81, %cst_23 {dimension_numbers = #tpu.dot_dimension_numbers<[1], [0], [0], [1], [0, 0, 1, 1], [], []>} : vector<64x8xf32>, vector<8x32xf32>, vector<64x32xf32> -> vector<64x32xf32>
    %83 = arith.addf %65, %82 : vector<64x32xf32>
    %84 = vector.extract_strided_slice %44 {offsets = [0, 0, 16], sizes = [4, 16, 8], strides = [1, 1, 1]} : vector<4x16x32xf32> to vector<4x16x8xf32>
    %85 = vector.extract_strided_slice %45 {offsets = [0, 0, 16], sizes = [4, 16, 8], strides = [1, 1, 1]} : vector<4x16x32xf32> to vector<4x16x8xf32>
    "tpu.trace_start"() <{level = 10 : i32, message = "bqd,bkd->bqk"}> : () -> ()
    %cst_24 = arith.constant dense<0.000000e+00> : vector<4x16x16xf32>
    %86 = tpu.matmul %84, %85, %cst_24 {dimension_numbers = #tpu.dot_dimension_numbers<[2], [2], [1], [1], [0, 0, 0, 1, 1, 1], [0], [0]>} : vector<4x16x8xf32>, vector<4x16x8xf32>, vector<4x16x16xf32> -> vector<4x16x16xf32>
    "tpu.trace_stop"() : () -> ()
    %cst_25 = arith.constant dense<0xFF800000> : vector<4x16xf32>
    %87 = vector.multi_reduction <maximumf>, %86, %cst_25 [2] : vector<4x16x16xf32> to vector<4x16xf32>
    %88 = vector.shape_cast %87 : vector<4x16xf32> to vector<4x16x1xf32>
    %89 = vector.broadcast %88 : vector<4x16x1xf32> to vector<4x16x16xf32>
    %90 = arith.subf %86, %89 : vector<4x16x16xf32>
    %91 = math.exp %90 : vector<4x16x16xf32>
    %cst_26 = arith.constant dense<0.000000e+00> : vector<4x16xf32>
    %92 = vector.multi_reduction <add>, %91, %cst_26 [2] : vector<4x16x16xf32> to vector<4x16xf32>
    %93 = vector.shape_cast %92 : vector<4x16xf32> to vector<4x16x1xf32>
    %94 = vector.broadcast %93 : vector<4x16x1xf32> to vector<4x16x16xf32>
    %95 = arith.divf %91, %94 : vector<4x16x16xf32>
    %96 = vector.extract_strided_slice %46 {offsets = [0, 0, 16], sizes = [4, 16, 8], strides = [1, 1, 1]} : vector<4x16x32xf32> to vector<4x16x8xf32>
    "tpu.trace_start"() <{level = 10 : i32, message = "bqk,bkd->bqd"}> : () -> ()
    %cst_27 = arith.constant dense<0.000000e+00> : vector<4x16x8xf32>
    %97 = tpu.matmul %95, %96, %cst_27 {dimension_numbers = #tpu.dot_dimension_numbers<[2], [1], [1], [2], [0, 0, 0, 1, 1, 2], [0], [0]>} : vector<4x16x16xf32>, vector<4x16x8xf32>, vector<4x16x8xf32> -> vector<4x16x8xf32>
    "tpu.trace_stop"() : () -> ()
    %98 = vector.shape_cast %97 : vector<4x16x8xf32> to vector<64x8xf32>
    %99 = vector.extract_strided_slice %43 {offsets = [16, 0], sizes = [8, 32], strides = [1, 1]} : vector<32x32xf32> to vector<8x32xf32>
    %cst_28 = arith.constant dense<0.000000e+00> : vector<64x32xf32>
    %100 = tpu.matmul %98, %99, %cst_28 {dimension_numbers = #tpu.dot_dimension_numbers<[1], [0], [0], [1], [0, 0, 1, 1], [], []>} : vector<64x8xf32>, vector<8x32xf32>, vector<64x32xf32> -> vector<64x32xf32>
    %101 = arith.addf %83, %100 : vector<64x32xf32>
    %102 = vector.extract_strided_slice %44 {offsets = [0, 0, 24], sizes = [4, 16, 8], strides = [1, 1, 1]} : vector<4x16x32xf32> to vector<4x16x8xf32>
    %103 = vector.extract_strided_slice %45 {offsets = [0, 0, 24], sizes = [4, 16, 8], strides = [1, 1, 1]} : vector<4x16x32xf32> to vector<4x16x8xf32>
    "tpu.trace_start"() <{level = 10 : i32, message = "bqd,bkd->bqk"}> : () -> ()
    %cst_29 = arith.constant dense<0.000000e+00> : vector<4x16x16xf32>
    %104 = tpu.matmul %102, %103, %cst_29 {dimension_numbers = #tpu.dot_dimension_numbers<[2], [2], [1], [1], [0, 0, 0, 1, 1, 1], [0], [0]>} : vector<4x16x8xf32>, vector<4x16x8xf32>, vector<4x16x16xf32> -> vector<4x16x16xf32>
    "tpu.trace_stop"() : () -> ()
    %cst_30 = arith.constant dense<0xFF800000> : vector<4x16xf32>
    %105 = vector.multi_reduction <maximumf>, %104, %cst_30 [2] : vector<4x16x16xf32> to vector<4x16xf32>
    %106 = vector.shape_cast %105 : vector<4x16xf32> to vector<4x16x1xf32>
    %107 = vector.broadcast %106 : vector<4x16x1xf32> to vector<4x16x16xf32>
    %108 = arith.subf %104, %107 : vector<4x16x16xf32>
    %109 = math.exp %108 : vector<4x16x16xf32>
    %cst_31 = arith.constant dense<0.000000e+00> : vector<4x16xf32>
    %110 = vector.multi_reduction <add>, %109, %cst_31 [2] : vector<4x16x16xf32> to vector<4x16xf32>
    %111 = vector.shape_cast %110 : vector<4x16xf32> to vector<4x16x1xf32>
    %112 = vector.broadcast %111 : vector<4x16x1xf32> to vector<4x16x16xf32>
    %113 = arith.divf %109, %112 : vector<4x16x16xf32>
    %114 = vector.extract_strided_slice %46 {offsets = [0, 0, 24], sizes = [4, 16, 8], strides = [1, 1, 1]} : vector<4x16x32xf32> to vector<4x16x8xf32>
    "tpu.trace_start"() <{level = 10 : i32, message = "bqk,bkd->bqd"}> : () -> ()
    %cst_32 = arith.constant dense<0.000000e+00> : vector<4x16x8xf32>
    %115 = tpu.matmul %113, %114, %cst_32 {dimension_numbers = #tpu.dot_dimension_numbers<[2], [1], [1], [2], [0, 0, 0, 1, 1, 2], [0], [0]>} : vector<4x16x16xf32>, vector<4x16x8xf32>, vector<4x16x8xf32> -> vector<4x16x8xf32>
    "tpu.trace_stop"() : () -> ()
    %116 = vector.shape_cast %115 : vector<4x16x8xf32> to vector<64x8xf32>
    %117 = vector.extract_strided_slice %43 {offsets = [24, 0], sizes = [8, 32], strides = [1, 1]} : vector<32x32xf32> to vector<8x32xf32>
    %cst_33 = arith.constant dense<0.000000e+00> : vector<64x32xf32>
    %118 = tpu.matmul %116, %117, %cst_33 {dimension_numbers = #tpu.dot_dimension_numbers<[1], [0], [0], [1], [0, 0, 1, 1], [], []>} : vector<64x8xf32>, vector<8x32xf32>, vector<64x32xf32> -> vector<64x32xf32>
    %119 = arith.addf %101, %118 : vector<64x32xf32>
    %120 = vector.broadcast %12 : vector<1x32xf32> to vector<64x32xf32>
    %121 = arith.addf %119, %120 : vector<64x32xf32>
    %122 = arith.addf %121, %0 : vector<64x32xf32>
    %cst_34 = arith.constant dense<0.000000e+00> : vector<64xf32>
    %123 = vector.multi_reduction <add>, %122, %cst_34 [1] : vector<64x32xf32> to vector<64xf32>
    %124 = vector.shape_cast %123 : vector<64xf32> to vector<64x1xf32>
    %cst_35 = arith.constant 3.200000e+01 : f32
    %125 = vector.broadcast %cst_35 : f32 to vector<64x1xf32>
    %126 = arith.divf %124, %125 : vector<64x1xf32>
    %127 = vector.broadcast %126 : vector<64x1xf32> to vector<64x32xf32>
    %128 = arith.subf %122, %127 : vector<64x32xf32>
    %129 = arith.mulf %128, %128 : vector<64x32xf32>
    %cst_36 = arith.constant dense<0.000000e+00> : vector<64xf32>
    %130 = vector.multi_reduction <add>, %129, %cst_36 [1] : vector<64x32xf32> to vector<64xf32>
    %131 = vector.shape_cast %130 : vector<64xf32> to vector<64x1xf32>
    %cst_37 = arith.constant 3.200000e+01 : f32
    %132 = vector.broadcast %cst_37 : f32 to vector<64x1xf32>
    %133 = arith.divf %131, %132 : vector<64x1xf32>
    %134 = vector.broadcast %126 : vector<64x1xf32> to vector<64x32xf32>
    %135 = arith.subf %122, %134 : vector<64x32xf32>
    %cst_38 = arith.constant 9.99999974E-6 : f32
    %136 = vector.broadcast %cst_38 : f32 to vector<64x1xf32>
    %137 = arith.addf %133, %136 : vector<64x1xf32>
    %138 = math.rsqrt %137 : vector<64x1xf32>
    %139 = vector.broadcast %138 : vector<64x1xf32> to vector<64x32xf32>
    %140 = arith.mulf %135, %139 : vector<64x32xf32>
    %141 = vector.broadcast %8 : vector<1x32xf32> to vector<64x32xf32>
    %142 = arith.mulf %140, %141 : vector<64x32xf32>
    %143 = vector.broadcast %9 : vector<1x32xf32> to vector<64x32xf32>
    %144 = arith.addf %142, %143 : vector<64x32xf32>
    %145 = tpu.concatenate %144, %1 in 0 : vector<64x32xf32>, vector<32x32xf32> -> vector<96x32xf32>
    %146 = vector.extract_strided_slice %2 {offsets = [0, 96], sizes = [32, 96], strides = [1, 1]} : vector<32x256xf32> to vector<32x96xf32>
    %cst_39 = arith.constant dense<0.000000e+00> : vector<96x96xf32>
    %147 = tpu.matmul %145, %146, %cst_39 {dimension_numbers = #tpu.dot_dimension_numbers<[1], [0], [0], [1], [0, 0, 1, 1], [], []>} : vector<96x32xf32>, vector<32x96xf32>, vector<96x96xf32> -> vector<96x96xf32>
    %148 = vector.extract_strided_slice %147 {offsets = [0, 0], sizes = [64, 32], strides = [1, 1]} : vector<96x96xf32> to vector<64x32xf32>
    %149 = vector.extract_strided_slice %147 {offsets = [64, 32], sizes = [32, 32], strides = [1, 1]} : vector<96x96xf32> to vector<32x32xf32>
    %150 = vector.extract_strided_slice %147 {offsets = [64, 64], sizes = [32, 32], strides = [1, 1]} : vector<96x96xf32> to vector<32x32xf32>
    %151 = vector.extract_strided_slice %3 {offsets = [0, 32], sizes = [32, 32], strides = [1, 1]} : vector<32x256xf32> to vector<32x32xf32>
    %152 = vector.shape_cast %148 : vector<64x32xf32> to vector<4x16x32xf32>
    %153 = vector.shape_cast %149 : vector<32x32xf32> to vector<4x8x32xf32>
    %154 = vector.shape_cast %150 : vector<32x32xf32> to vector<4x8x32xf32>
    %cst_40 = arith.constant 0.000000e+00 : f32
    %155 = vector.broadcast %cst_40 : f32 to vector<64x32xf32>
    %156 = vector.extract_strided_slice %152 {offsets = [0, 0, 0], sizes = [4, 16, 8], strides = [1, 1, 1]} : vector<4x16x32xf32> to vector<4x16x8xf32>
    %157 = vector.extract_strided_slice %153 {offsets = [0, 0, 0], sizes = [4, 8, 8], strides = [1, 1, 1]} : vector<4x8x32xf32> to vector<4x8x8xf32>
    "tpu.trace_start"() <{level = 10 : i32, message = "bqd,bkd->bqk"}> : () -> ()
    %cst_41 = arith.constant dense<0.000000e+00> : vector<4x16x8xf32>
    %158 = tpu.matmul %156, %157, %cst_41 {dimension_numbers = #tpu.dot_dimension_numbers<[2], [2], [1], [1], [0, 0, 0, 1, 1, 1], [0], [0]>} : vector<4x16x8xf32>, vector<4x8x8xf32>, vector<4x16x8xf32> -> vector<4x16x8xf32>
    "tpu.trace_stop"() : () -> ()
    %cst_42 = arith.constant dense<0xFF800000> : vector<4x16xf32>
    %159 = vector.multi_reduction <maximumf>, %158, %cst_42 [2] : vector<4x16x8xf32> to vector<4x16xf32>
    %160 = vector.shape_cast %159 : vector<4x16xf32> to vector<4x16x1xf32>
    %161 = vector.broadcast %160 : vector<4x16x1xf32> to vector<4x16x8xf32>
    %162 = arith.subf %158, %161 : vector<4x16x8xf32>
    %163 = math.exp %162 : vector<4x16x8xf32>
    %cst_43 = arith.constant dense<0.000000e+00> : vector<4x16xf32>
    %164 = vector.multi_reduction <add>, %163, %cst_43 [2] : vector<4x16x8xf32> to vector<4x16xf32>
    %165 = vector.shape_cast %164 : vector<4x16xf32> to vector<4x16x1xf32>
    %166 = vector.broadcast %165 : vector<4x16x1xf32> to vector<4x16x8xf32>
    %167 = arith.divf %163, %166 : vector<4x16x8xf32>
    %168 = vector.extract_strided_slice %154 {offsets = [0, 0, 0], sizes = [4, 8, 8], strides = [1, 1, 1]} : vector<4x8x32xf32> to vector<4x8x8xf32>
    "tpu.trace_start"() <{level = 10 : i32, message = "bqk,bkd->bqd"}> : () -> ()
    %cst_44 = arith.constant dense<0.000000e+00> : vector<4x16x8xf32>
    %169 = tpu.matmul %167, %168, %cst_44 {dimension_numbers = #tpu.dot_dimension_numbers<[2], [1], [1], [2], [0, 0, 0, 1, 1, 2], [0], [0]>} : vector<4x16x8xf32>, vector<4x8x8xf32>, vector<4x16x8xf32> -> vector<4x16x8xf32>
    "tpu.trace_stop"() : () -> ()
    %170 = vector.shape_cast %169 : vector<4x16x8xf32> to vector<64x8xf32>
    %171 = vector.extract_strided_slice %151 {offsets = [0, 0], sizes = [8, 32], strides = [1, 1]} : vector<32x32xf32> to vector<8x32xf32>
    %cst_45 = arith.constant dense<0.000000e+00> : vector<64x32xf32>
    %172 = tpu.matmul %170, %171, %cst_45 {dimension_numbers = #tpu.dot_dimension_numbers<[1], [0], [0], [1], [0, 0, 1, 1], [], []>} : vector<64x8xf32>, vector<8x32xf32>, vector<64x32xf32> -> vector<64x32xf32>
    %173 = arith.addf %155, %172 : vector<64x32xf32>
    %174 = vector.extract_strided_slice %152 {offsets = [0, 0, 8], sizes = [4, 16, 8], strides = [1, 1, 1]} : vector<4x16x32xf32> to vector<4x16x8xf32>
    %175 = vector.extract_strided_slice %153 {offsets = [0, 0, 8], sizes = [4, 8, 8], strides = [1, 1, 1]} : vector<4x8x32xf32> to vector<4x8x8xf32>
    "tpu.trace_start"() <{level = 10 : i32, message = "bqd,bkd->bqk"}> : () -> ()
    %cst_46 = arith.constant dense<0.000000e+00> : vector<4x16x8xf32>
    %176 = tpu.matmul %174, %175, %cst_46 {dimension_numbers = #tpu.dot_dimension_numbers<[2], [2], [1], [1], [0, 0, 0, 1, 1, 1], [0], [0]>} : vector<4x16x8xf32>, vector<4x8x8xf32>, vector<4x16x8xf32> -> vector<4x16x8xf32>
    "tpu.trace_stop"() : () -> ()
    %cst_47 = arith.constant dense<0xFF800000> : vector<4x16xf32>
    %177 = vector.multi_reduction <maximumf>, %176, %cst_47 [2] : vector<4x16x8xf32> to vector<4x16xf32>
    %178 = vector.shape_cast %177 : vector<4x16xf32> to vector<4x16x1xf32>
    %179 = vector.broadcast %178 : vector<4x16x1xf32> to vector<4x16x8xf32>
    %180 = arith.subf %176, %179 : vector<4x16x8xf32>
    %181 = math.exp %180 : vector<4x16x8xf32>
    %cst_48 = arith.constant dense<0.000000e+00> : vector<4x16xf32>
    %182 = vector.multi_reduction <add>, %181, %cst_48 [2] : vector<4x16x8xf32> to vector<4x16xf32>
    %183 = vector.shape_cast %182 : vector<4x16xf32> to vector<4x16x1xf32>
    %184 = vector.broadcast %183 : vector<4x16x1xf32> to vector<4x16x8xf32>
    %185 = arith.divf %181, %184 : vector<4x16x8xf32>
    %186 = vector.extract_strided_slice %154 {offsets = [0, 0, 8], sizes = [4, 8, 8], strides = [1, 1, 1]} : vector<4x8x32xf32> to vector<4x8x8xf32>
    "tpu.trace_start"() <{level = 10 : i32, message = "bqk,bkd->bqd"}> : () -> ()
    %cst_49 = arith.constant dense<0.000000e+00> : vector<4x16x8xf32>
    %187 = tpu.matmul %185, %186, %cst_49 {dimension_numbers = #tpu.dot_dimension_numbers<[2], [1], [1], [2], [0, 0, 0, 1, 1, 2], [0], [0]>} : vector<4x16x8xf32>, vector<4x8x8xf32>, vector<4x16x8xf32> -> vector<4x16x8xf32>
    "tpu.trace_stop"() : () -> ()
    %188 = vector.shape_cast %187 : vector<4x16x8xf32> to vector<64x8xf32>
    %189 = vector.extract_strided_slice %151 {offsets = [8, 0], sizes = [8, 32], strides = [1, 1]} : vector<32x32xf32> to vector<8x32xf32>
    %cst_50 = arith.constant dense<0.000000e+00> : vector<64x32xf32>
    %190 = tpu.matmul %188, %189, %cst_50 {dimension_numbers = #tpu.dot_dimension_numbers<[1], [0], [0], [1], [0, 0, 1, 1], [], []>} : vector<64x8xf32>, vector<8x32xf32>, vector<64x32xf32> -> vector<64x32xf32>
    %191 = arith.addf %173, %190 : vector<64x32xf32>
    %192 = vector.extract_strided_slice %152 {offsets = [0, 0, 16], sizes = [4, 16, 8], strides = [1, 1, 1]} : vector<4x16x32xf32> to vector<4x16x8xf32>
    %193 = vector.extract_strided_slice %153 {offsets = [0, 0, 16], sizes = [4, 8, 8], strides = [1, 1, 1]} : vector<4x8x32xf32> to vector<4x8x8xf32>
    "tpu.trace_start"() <{level = 10 : i32, message = "bqd,bkd->bqk"}> : () -> ()
    %cst_51 = arith.constant dense<0.000000e+00> : vector<4x16x8xf32>
    %194 = tpu.matmul %192, %193, %cst_51 {dimension_numbers = #tpu.dot_dimension_numbers<[2], [2], [1], [1], [0, 0, 0, 1, 1, 1], [0], [0]>} : vector<4x16x8xf32>, vector<4x8x8xf32>, vector<4x16x8xf32> -> vector<4x16x8xf32>
    "tpu.trace_stop"() : () -> ()
    %cst_52 = arith.constant dense<0xFF800000> : vector<4x16xf32>
    %195 = vector.multi_reduction <maximumf>, %194, %cst_52 [2] : vector<4x16x8xf32> to vector<4x16xf32>
    %196 = vector.shape_cast %195 : vector<4x16xf32> to vector<4x16x1xf32>
    %197 = vector.broadcast %196 : vector<4x16x1xf32> to vector<4x16x8xf32>
    %198 = arith.subf %194, %197 : vector<4x16x8xf32>
    %199 = math.exp %198 : vector<4x16x8xf32>
    %cst_53 = arith.constant dense<0.000000e+00> : vector<4x16xf32>
    %200 = vector.multi_reduction <add>, %199, %cst_53 [2] : vector<4x16x8xf32> to vector<4x16xf32>
    %201 = vector.shape_cast %200 : vector<4x16xf32> to vector<4x16x1xf32>
    %202 = vector.broadcast %201 : vector<4x16x1xf32> to vector<4x16x8xf32>
    %203 = arith.divf %199, %202 : vector<4x16x8xf32>
    %204 = vector.extract_strided_slice %154 {offsets = [0, 0, 16], sizes = [4, 8, 8], strides = [1, 1, 1]} : vector<4x8x32xf32> to vector<4x8x8xf32>
    "tpu.trace_start"() <{level = 10 : i32, message = "bqk,bkd->bqd"}> : () -> ()
    %cst_54 = arith.constant dense<0.000000e+00> : vector<4x16x8xf32>
    %205 = tpu.matmul %203, %204, %cst_54 {dimension_numbers = #tpu.dot_dimension_numbers<[2], [1], [1], [2], [0, 0, 0, 1, 1, 2], [0], [0]>} : vector<4x16x8xf32>, vector<4x8x8xf32>, vector<4x16x8xf32> -> vector<4x16x8xf32>
    "tpu.trace_stop"() : () -> ()
    %206 = vector.shape_cast %205 : vector<4x16x8xf32> to vector<64x8xf32>
    %207 = vector.extract_strided_slice %151 {offsets = [16, 0], sizes = [8, 32], strides = [1, 1]} : vector<32x32xf32> to vector<8x32xf32>
    %cst_55 = arith.constant dense<0.000000e+00> : vector<64x32xf32>
    %208 = tpu.matmul %206, %207, %cst_55 {dimension_numbers = #tpu.dot_dimension_numbers<[1], [0], [0], [1], [0, 0, 1, 1], [], []>} : vector<64x8xf32>, vector<8x32xf32>, vector<64x32xf32> -> vector<64x32xf32>
    %209 = arith.addf %191, %208 : vector<64x32xf32>
    %210 = vector.extract_strided_slice %152 {offsets = [0, 0, 24], sizes = [4, 16, 8], strides = [1, 1, 1]} : vector<4x16x32xf32> to vector<4x16x8xf32>
    %211 = vector.extract_strided_slice %153 {offsets = [0, 0, 24], sizes = [4, 8, 8], strides = [1, 1, 1]} : vector<4x8x32xf32> to vector<4x8x8xf32>
    "tpu.trace_start"() <{level = 10 : i32, message = "bqd,bkd->bqk"}> : () -> ()
    %cst_56 = arith.constant dense<0.000000e+00> : vector<4x16x8xf32>
    %212 = tpu.matmul %210, %211, %cst_56 {dimension_numbers = #tpu.dot_dimension_numbers<[2], [2], [1], [1], [0, 0, 0, 1, 1, 1], [0], [0]>} : vector<4x16x8xf32>, vector<4x8x8xf32>, vector<4x16x8xf32> -> vector<4x16x8xf32>
    "tpu.trace_stop"() : () -> ()
    %cst_57 = arith.constant dense<0xFF800000> : vector<4x16xf32>
    %213 = vector.multi_reduction <maximumf>, %212, %cst_57 [2] : vector<4x16x8xf32> to vector<4x16xf32>
    %214 = vector.shape_cast %213 : vector<4x16xf32> to vector<4x16x1xf32>
    %215 = vector.broadcast %214 : vector<4x16x1xf32> to vector<4x16x8xf32>
    %216 = arith.subf %212, %215 : vector<4x16x8xf32>
    %217 = math.exp %216 : vector<4x16x8xf32>
    %cst_58 = arith.constant dense<0.000000e+00> : vector<4x16xf32>
    %218 = vector.multi_reduction <add>, %217, %cst_58 [2] : vector<4x16x8xf32> to vector<4x16xf32>
    %219 = vector.shape_cast %218 : vector<4x16xf32> to vector<4x16x1xf32>
    %220 = vector.broadcast %219 : vector<4x16x1xf32> to vector<4x16x8xf32>
    %221 = arith.divf %217, %220 : vector<4x16x8xf32>
    %222 = vector.extract_strided_slice %154 {offsets = [0, 0, 24], sizes = [4, 8, 8], strides = [1, 1, 1]} : vector<4x8x32xf32> to vector<4x8x8xf32>
    "tpu.trace_start"() <{level = 10 : i32, message = "bqk,bkd->bqd"}> : () -> ()
    %cst_59 = arith.constant dense<0.000000e+00> : vector<4x16x8xf32>
    %223 = tpu.matmul %221, %222, %cst_59 {dimension_numbers = #tpu.dot_dimension_numbers<[2], [1], [1], [2], [0, 0, 0, 1, 1, 2], [0], [0]>} : vector<4x16x8xf32>, vector<4x8x8xf32>, vector<4x16x8xf32> -> vector<4x16x8xf32>
    "tpu.trace_stop"() : () -> ()
    %224 = vector.shape_cast %223 : vector<4x16x8xf32> to vector<64x8xf32>
    %225 = vector.extract_strided_slice %151 {offsets = [24, 0], sizes = [8, 32], strides = [1, 1]} : vector<32x32xf32> to vector<8x32xf32>
    %cst_60 = arith.constant dense<0.000000e+00> : vector<64x32xf32>
    %226 = tpu.matmul %224, %225, %cst_60 {dimension_numbers = #tpu.dot_dimension_numbers<[1], [0], [0], [1], [0, 0, 1, 1], [], []>} : vector<64x8xf32>, vector<8x32xf32>, vector<64x32xf32> -> vector<64x32xf32>
    %227 = arith.addf %209, %226 : vector<64x32xf32>
    %228 = vector.broadcast %13 : vector<1x32xf32> to vector<64x32xf32>
    %229 = arith.addf %227, %228 : vector<64x32xf32>
    %230 = arith.addf %229, %122 : vector<64x32xf32>
    %cst_61 = arith.constant dense<0.000000e+00> : vector<64xf32>
    %231 = vector.multi_reduction <add>, %230, %cst_61 [1] : vector<64x32xf32> to vector<64xf32>
    %232 = vector.shape_cast %231 : vector<64xf32> to vector<64x1xf32>
    %cst_62 = arith.constant 3.200000e+01 : f32
    %233 = vector.broadcast %cst_62 : f32 to vector<64x1xf32>
    %234 = arith.divf %232, %233 : vector<64x1xf32>
    %235 = vector.broadcast %234 : vector<64x1xf32> to vector<64x32xf32>
    %236 = arith.subf %230, %235 : vector<64x32xf32>
    %237 = arith.mulf %236, %236 : vector<64x32xf32>
    %cst_63 = arith.constant dense<0.000000e+00> : vector<64xf32>
    %238 = vector.multi_reduction <add>, %237, %cst_63 [1] : vector<64x32xf32> to vector<64xf32>
    %239 = vector.shape_cast %238 : vector<64xf32> to vector<64x1xf32>
    %cst_64 = arith.constant 3.200000e+01 : f32
    %240 = vector.broadcast %cst_64 : f32 to vector<64x1xf32>
    %241 = arith.divf %239, %240 : vector<64x1xf32>
    %242 = vector.broadcast %234 : vector<64x1xf32> to vector<64x32xf32>
    %243 = arith.subf %230, %242 : vector<64x32xf32>
    %cst_65 = arith.constant 9.99999974E-6 : f32
    %244 = vector.broadcast %cst_65 : f32 to vector<64x1xf32>
    %245 = arith.addf %241, %244 : vector<64x1xf32>
    %246 = math.rsqrt %245 : vector<64x1xf32>
    %247 = vector.broadcast %246 : vector<64x1xf32> to vector<64x32xf32>
    %248 = arith.mulf %243, %247 : vector<64x32xf32>
    %249 = vector.broadcast %10 : vector<1x32xf32> to vector<64x32xf32>
    %250 = arith.mulf %248, %249 : vector<64x32xf32>
    %251 = vector.broadcast %11 : vector<1x32xf32> to vector<64x32xf32>
    %252 = arith.addf %250, %251 : vector<64x32xf32>
    %253 = vector.extract_strided_slice %2 {offsets = [0, 192], sizes = [32, 64], strides = [1, 1]} : vector<32x256xf32> to vector<32x64xf32>
    %cst_66 = arith.constant dense<0.000000e+00> : vector<64x64xf32>
    %254 = tpu.matmul %252, %253, %cst_66 {dimension_numbers = #tpu.dot_dimension_numbers<[1], [0], [0], [1], [0, 0, 1, 1], [], []>} : vector<64x32xf32>, vector<32x64xf32>, vector<64x64xf32> -> vector<64x64xf32>
    %255 = vector.broadcast %15 : vector<1x64xf32> to vector<64x64xf32>
    %256 = arith.addf %254, %255 : vector<64x64xf32>
    %cst_67 = arith.constant 5.000000e-01 : f32
    %257 = vector.broadcast %cst_67 : f32 to vector<64x64xf32>
    %258 = arith.mulf %257, %256 : vector<64x64xf32>
    %cst_68 = arith.constant 0.707106769 : f32
    %259 = vector.broadcast %cst_68 : f32 to vector<64x64xf32>
    %260 = arith.mulf %256, %259 : vector<64x64xf32>
    %cst_69 = arith.constant 0.000000e+00 : f32
    %261 = vector.broadcast %cst_69 : f32 to vector<64x64xf32>
    %262 = arith.cmpf oge, %260, %261 : vector<64x64xf32>
    %cst_70 = arith.constant 1.000000e+00 : f32
    %cst_71 = arith.constant -1.000000e+00 : f32
    %263 = vector.broadcast %cst_70 : f32 to vector<64x64xf32>
    %264 = vector.broadcast %cst_71 : f32 to vector<64x64xf32>
    %265 = arith.select %262, %263, %264 : vector<64x64xi1>, vector<64x64xf32>
    %266 = math.absf %260 : vector<64x64xf32>
    %cst_72 = arith.constant 0.327591091 : f32
    %267 = vector.broadcast %cst_72 : f32 to vector<64x64xf32>
    %268 = arith.mulf %267, %266 : vector<64x64xf32>
    %cst_73 = arith.constant 1.000000e+00 : f32
    %269 = vector.broadcast %cst_73 : f32 to vector<64x64xf32>
    %270 = arith.addf %269, %268 : vector<64x64xf32>
    %cst_74 = arith.constant 1.000000e+00 : f32
    %271 = vector.broadcast %cst_74 : f32 to vector<64x64xf32>
    %272 = arith.divf %271, %270 : vector<64x64xf32>
    %cst_75 = arith.constant 1.06140542 : f32
    %273 = vector.broadcast %cst_75 : f32 to vector<64x64xf32>
    %274 = arith.mulf %273, %272 : vector<64x64xf32>
    %cst_76 = arith.constant -1.45315206 : f32
    %275 = vector.broadcast %cst_76 : f32 to vector<64x64xf32>
    %276 = arith.addf %274, %275 : vector<64x64xf32>
    %277 = arith.mulf %276, %272 : vector<64x64xf32>
    %cst_77 = arith.constant 1.42141378 : f32
    %278 = vector.broadcast %cst_77 : f32 to vector<64x64xf32>
    %279 = arith.addf %277, %278 : vector<64x64xf32>
    %280 = arith.mulf %279, %272 : vector<64x64xf32>
    %cst_78 = arith.constant -0.284496725 : f32
    %281 = vector.broadcast %cst_78 : f32 to vector<64x64xf32>
    %282 = arith.addf %280, %281 : vector<64x64xf32>
    %283 = arith.mulf %282, %272 : vector<64x64xf32>
    %cst_79 = arith.constant 0.254829586 : f32
    %284 = vector.broadcast %cst_79 : f32 to vector<64x64xf32>
    %285 = arith.addf %283, %284 : vector<64x64xf32>
    %286 = arith.mulf %285, %272 : vector<64x64xf32>
    %cst_80 = arith.constant 0.000000e+00 : f32
    %287 = vector.broadcast %cst_80 : f32 to vector<64x64xf32>
    %288 = arith.subf %287, %266 : vector<64x64xf32>
    %289 = arith.mulf %288, %266 : vector<64x64xf32>
    %290 = math.exp %289 : vector<64x64xf32>
    %291 = arith.mulf %286, %290 : vector<64x64xf32>
    %cst_81 = arith.constant 1.000000e+00 : f32
    %292 = vector.broadcast %cst_81 : f32 to vector<64x64xf32>
    %293 = arith.subf %292, %291 : vector<64x64xf32>
    %294 = arith.mulf %265, %293 : vector<64x64xf32>
    %cst_82 = arith.constant 1.000000e+00 : f32
    %295 = vector.broadcast %cst_82 : f32 to vector<64x64xf32>
    %296 = arith.addf %295, %294 : vector<64x64xf32>
    %297 = arith.mulf %258, %296 : vector<64x64xf32>
    %298 = vector.extract_strided_slice %4 {offsets = [0, 0], sizes = [64, 32], strides = [1, 1]} : vector<64x256xf32> to vector<64x32xf32>
    %cst_83 = arith.constant dense<0.000000e+00> : vector<64x32xf32>
    %299 = tpu.matmul %297, %298, %cst_83 {dimension_numbers = #tpu.dot_dimension_numbers<[1], [0], [0], [1], [0, 0, 1, 1], [], []>} : vector<64x64xf32>, vector<64x32xf32>, vector<64x32xf32> -> vector<64x32xf32>
    %300 = vector.broadcast %14 : vector<1x32xf32> to vector<64x32xf32>
    %301 = arith.addf %299, %300 : vector<64x32xf32>
    %302 = arith.addf %301, %230 : vector<64x32xf32>
    %c0_84 = arith.constant 0 : index
    %c0_85 = arith.constant 0 : index
    %303 = vector.load %arg4[%c0_84, %c0_85] : memref<64x32xf32, #tpu.memory_space<vmem>>, vector<64x32xf32>
    tpu.vector_store %arg4[%c0_84, %c0_85], %302 {strides = array<i32>} : memref<64x32xf32, #tpu.memory_space<vmem>>, vector<64x32xf32>,
    return
  }
  func.func @transform_0(%arg0: i32) -> (i32, i32) {
    %c0_i32 = arith.constant 0 : i32
    %c0_i32_0 = arith.constant 0 : i32
    return %arg0, %c0_i32 : i32, i32
  }
  func.func @transform_1(%arg0: i32) -> (i32, i32) {
    %c0_i32 = arith.constant 0 : i32
    %c0_i32_0 = arith.constant 0 : i32
    return %arg0, %c0_i32 : i32, i32
  }
  func.func @transform_2(%arg0: i32) -> (i32, i32) {
    %c0_i32 = arith.constant 0 : i32
    %c0_i32_0 = arith.constant 0 : i32
    %c0_i32_1 = arith.constant 0 : i32
    return %c0_i32, %c0_i32_0 : i32, i32
  }
  func.func @transform_3(%arg0: i32) -> (i32, i32) {
    %c0_i32 = arith.constant 0 : i32
    %c0_i32_0 = arith.constant 0 : i32
    return %arg0, %c0_i32 : i32, i32
  }
}

</mosaic_0001>

<llo_original>
// kernel: tpu_custom_call.1
$region0: #{tpu_custom_call.1}
  #allocation0 [shape = 'u32[]', space=smem, size = 0x4, offset = 0x4, fixed_abs, tag = 'smem constant byte address 0x4 - core index']
  #allocation1 [shape = 'u32[72,128]{1,0:T(1,128)}', space=vmem, size = 0x9000, scoped, tag = 'internal scratch']
  %s0 = inlined_call_operand.vmem [shape: f32[64,32], index: 0, kind: input, shape index: {}]
  %s1 = inlined_call_operand.vmem [shape: f32[32,32], index: 1, kind: input, shape index: {}]
  %s2 = inlined_call_operand.hbm [shape: f32[144,256], index: 2, kind: input, shape index: {}]
  %s3 = inlined_call_operand.vmem [shape: f32[64,32], index: 3, kind: output, shape index: {}]
  %s4 = sld [smem:[#allocation0]]
  $region26: #{tpu_custom_call.1} parent=0
    _
  %s6 = ssub.s32 1, %s4
  %s7 = scalar_select 0, %s6, %s4
  $region1: #{tpu_custom_call.1} parent=0
    #allocation2 [shape = 'u8[147456]{0}', space=vmem, size = 0x24000, scoped, tag = 'input window, operand 2, single buffered']
    #allocation3 [shape = 's32[1]{0}', space=sflag, size = 0x4, scoped, tag = 'scoped memory for tpu_custom_call.1']
    %8 = vsyncpa [#allocation3], 0
    // Predicated region
    $region2: #{tpu_custom_call.1} parent=1 // pred_check
      _
    $region3: #{tpu_custom_call.1} parent=1 // pred_check_branch
      %10 = sbr.rel (0) target = $region5
    $region4: #{tpu_custom_call.1} parent=1 // pred_region
      _
    $region5: #{tpu_custom_call.1} parent=1 // pred_fallthru
      _
    // Predicated region
    $region6: #{tpu_custom_call.1} parent=1 // pred_check
      _
    $region7: #{tpu_custom_call.1} parent=1 // pred_check_branch
      %12 = sbr.rel (0) target = $region9
    $region8: #{tpu_custom_call.1} parent=1 // pred_region
      _
    $region9: #{tpu_custom_call.1} parent=1 // pred_fallthru
      _
    // Predicated region
    $region10: #{tpu_custom_call.1} parent=1 // pred_check
      _
    $region11: #{tpu_custom_call.1} parent=1 // pred_check_branch
      %14 = sbr.rel (0) target = $region13
    $region12: #{tpu_custom_call.1} parent=1 // pred_region
      %16 = vsyncadd [#allocation3], 0
      %s17 = sshll.u32 %s2, 4
      %s18 = int_to_ptr.hbm [resolvable:$true] %s17
      %s19 = sshll.u32 [#allocation2], 4
      %s20 = int_to_ptr.vmem [resolvable:$true] %s19
      %25 = dma.hbm_to_vmem [thread:$0]  %s18, 4608, %s20, [#allocation3], 256, 256, 16
    $region13: #{tpu_custom_call.1} parent=1 // pred_fallthru
      _
    // Predicated region
    $region14: #{tpu_custom_call.1} parent=1 // pred_check
      _
    $region15: #{tpu_custom_call.1} parent=1 // pred_check_branch
      %27 = sbr.rel (0) target = $region17
    $region16: #{tpu_custom_call.1} parent=1 // pred_region
      %29 = dma.done [#allocation3], 4608
    $region17: #{tpu_custom_call.1} parent=1 // pred_fallthru
      _
    %v30 = vld [vmem:[%s0] sm:$0xff]
    %v31 = vld [vmem:[%s0 + $0x8] sm:$0xff]
    %v32 = vld [vmem:[%s0 + $0x10] sm:$0xff]
    %v33 = vld [vmem:[%s0 + $0x18] sm:$0xff]
    %v34 = vld [vmem:[%s0 + $0x20] sm:$0xff]
    %v35 = vld [vmem:[%s0 + $0x28] sm:$0xff]
    %v36 = vld [vmem:[%s0 + $0x30] sm:$0xff]
    %v37 = vld [vmem:[%s0 + $0x38] sm:$0xff]
    %v38 = vld [vmem:[%s1] sm:$0xff]
    %v39 = vld [vmem:[%s1 + $0x8] sm:$0xff]
    %v40 = vld [vmem:[%s1 + $0x10] sm:$0xff]
    %v41 = vld [vmem:[%s1 + $0x18] sm:$0xff]
    %v42 = vld [vmem:[#allocation2] sm:$0xff]
    %v43 = vld [vmem:[#allocation2 + $0x8] sm:$0xff]
    %v44 = vld [vmem:[#allocation2 + $0x10] sm:$0xff]
    %v45 = vld [vmem:[#allocation2 + $0x18] sm:$0xff]
    %v46 = vld [vmem:[#allocation2 + $0x20] sm:$0xff]
    %v47 = vld [vmem:[#allocation2 + $0x28] sm:$0xff]
    %v48 = vld [vmem:[#allocation2 + $0x30] sm:$0xff]
    %v49 = vld [vmem:[#allocation2 + $0x38] sm:$0xff]
    %v50 = vld [vmem:[#allocation2 + $0x40] sm:$0xff]
    %v51 = vld [vmem:[#allocation2 + $0x50] sm:$0xff]
    %v52 = vld [vmem:[#allocation2 + $0x60] sm:$0xff]
    %v53 = vld [vmem:[#allocation2 + $0x70] sm:$0xff]
    %v54 = vld [vmem:[#allocation2 + $0x80] sm:$0xff]
    %v55 = vld [vmem:[#allocation2 + $0x90] sm:$0xff]
    %v56 = vld [vmem:[#allocation2 + $0xa0] sm:$0xff]
    %v57 = vld [vmem:[#allocation2 + $0xb0] sm:$0xff]
    %v58 = vld [vmem:[#allocation2 + $0xc0] sm:$0xff]
    %v59 = vld [vmem:[#allocation2 + $0xd0] sm:$0xff]
    %v60 = vld [vmem:[#allocation2 + $0xe0] sm:$0xff]
    %v61 = vld [vmem:[#allocation2 + $0xf0] sm:$0xff]
    %v62 = vld [vmem:[#allocation2 + $0x100] sm:$0xff]
    %v63 = vld [vmem:[#allocation2 + $0x110] sm:$0xff]
    %vm64 = vcmask 261120
    %v65 = vsel %vm64, %v30, 0.0
    %66 = vadd.xlane.f32.xlu0 %v65
    %v67 = vpop.xlane.xlu0 %66
    %v68 = vsel %vm64, %v31, 0.0
    %69 = vadd.xlane.f32.xlu0 %v68
    %v70 = vpop.xlane.xlu0 %69
    %v71 = vsel %vm64, %v32, 0.0
    %72 = vadd.xlane.f32.xlu0 %v71
    %v73 = vpop.xlane.xlu0 %72
    %v74 = vsel %vm64, %v33, 0.0
    %75 = vadd.xlane.f32.xlu0 %v74
    %v76 = vpop.xlane.xlu0 %75
    %v77 = vsel %vm64, %v34, 0.0
    %78 = vadd.xlane.f32.xlu0 %v77
    %v79 = vpop.xlane.xlu0 %78
    %v80 = vsel %vm64, %v35, 0.0
    %81 = vadd.xlane.f32.xlu0 %v80
    %v82 = vpop.xlane.xlu0 %81
    %v83 = vsel %vm64, %v36, 0.0
    %84 = vadd.xlane.f32.xlu0 %v83
    %v85 = vpop.xlane.xlu0 %84
    %v86 = vsel %vm64, %v37, 0.0
    %87 = vadd.xlane.f32.xlu0 %v86
    %v88 = vpop.xlane.xlu0 %87
    %v89 = vrcp.pop 32.0
    %v90 = vmul.f32 32.0, %v89
    %v91 = vsub.f32 1.0, %v90
    %v92 = vmul.f32 %v89, %v91
    %v93 = vadd.f32 %v89, %v92
    %vm94 = vweird.f32 %v89
    %v95 = vsel %vm94, %v89, %v93
    %v96 = vmul.f32 %v67, %v95
    %v97 = vmul.f32 %v70, %v95
    %v98 = vmul.f32 %v73, %v95
    %v99 = vmul.f32 %v76, %v95
    %v100 = vmul.f32 %v79, %v95
    %v101 = vmul.f32 %v82, %v95
    %v102 = vmul.f32 %v85, %v95
    %v103 = vmul.f32 %v88, %v95
    %v104 = vsub.f32 %v30, %v96
    %v105 = vsub.f32 %v31, %v97
    %v106 = vsub.f32 %v32, %v98
    %v107 = vsub.f32 %v33, %v99
    %v108 = vsub.f32 %v34, %v100
    %v109 = vsub.f32 %v35, %v101
    %v110 = vsub.f32 %v36, %v102
    %v111 = vsub.f32 %v37, %v103
    %v112 = vmul.f32 %v104, %v104
    %v113 = vmul.f32 %v105, %v105
    %v114 = vmul.f32 %v106, %v106
    %v115 = vmul.f32 %v107, %v107
    %v116 = vmul.f32 %v108, %v108
    %v117 = vmul.f32 %v109, %v109
    %v118 = vmul.f32 %v110, %v110
    %v119 = vmul.f32 %v111, %v111
    %v120 = vsel %vm64, %v112, 0.0
    %121 = vadd.xlane.f32.xlu0 %v120
    %v122 = vpop.xlane.xlu0 %121
    %v123 = vsel %vm64, %v113, 0.0
    %124 = vadd.xlane.f32.xlu0 %v123
    %v125 = vpop.xlane.xlu0 %124
    %v126 = vsel %vm64, %v114, 0.0
    %127 = vadd.xlane.f32.xlu0 %v126
    %v128 = vpop.xlane.xlu0 %127
    %v129 = vsel %vm64, %v115, 0.0
    %130 = vadd.xlane.f32.xlu0 %v129
    %v131 = vpop.xlane.xlu0 %130
    %v132 = vsel %vm64, %v116, 0.0
    %133 = vadd.xlane.f32.xlu0 %v132
    %v134 = vpop.xlane.xlu0 %133
    %v135 = vsel %vm64, %v117, 0.0
    %136 = vadd.xlane.f32.xlu0 %v135
    %v137 = vpop.xlane.xlu0 %136
    %v138 = vsel %vm64, %v118, 0.0
    %139 = vadd.xlane.f32.xlu0 %v138
    %v140 = vpop.xlane.xlu0 %139
    %v141 = vsel %vm64, %v119, 0.0
    %142 = vadd.xlane.f32.xlu0 %v141
    %v143 = vpop.xlane.xlu0 %142
    %v144 = vmul.f32 %v122, %v95
    %v145 = vmul.f32 %v125, %v95
    %v146 = vmul.f32 %v128, %v95
    %v147 = vmul.f32 %v131, %v95
    %v148 = vmul.f32 %v134, %v95
    %v149 = vmul.f32 %v137, %v95
    %v150 = vmul.f32 %v140, %v95
    %v151 = vmul.f32 %v143, %v95
    %v152 = vadd.f32 %v144, 1e-05
    %v153 = vadd.f32 %v145, 1e-05
    %v154 = vadd.f32 %v146, 1e-05
    %v155 = vadd.f32 %v147, 1e-05
    %v156 = vadd.f32 %v148, 1e-05
    %v157 = vadd.f32 %v149, 1e-05
    %v158 = vadd.f32 %v150, 1e-05
    %v159 = vadd.f32 %v151, 1e-05
    %v160 = vrsqrt.pop %v152
    %v161 = vmul.f32 %v160, %v152
    %v162 = vmul.f32 %v161, %v160
    %v163 = vmul.f32 0.5, %v162
    %v164 = vsub.f32 1.5, %v163
    %v165 = vmul.f32 %v160, %v164
    %vm166 = vweird.f32 %v152
    %vm167 = vweird.f32 %v160
    %vm168 = vmor %vm166, %vm167
    %v169 = vsel %vm168, %v160, %v165
    %v170 = vrsqrt.pop %v153
    %v171 = vmul.f32 %v170, %v153
    %v172 = vmul.f32 %v171, %v170
    %v173 = vmul.f32 0.5, %v172
    %v174 = vsub.f32 1.5, %v173
    %v175 = vmul.f32 %v170, %v174
    %vm176 = vweird.f32 %v153
    %vm177 = vweird.f32 %v170
    %vm178 = vmor %vm176, %vm177
    %v179 = vsel %vm178, %v170, %v175
    %v180 = vrsqrt.pop %v154
    %v181 = vmul.f32 %v180, %v154
    %v182 = vmul.f32 %v181, %v180
    %v183 = vmul.f32 0.5, %v182
    %v184 = vsub.f32 1.5, %v183
    %v185 = vmul.f32 %v180, %v184
    %vm186 = vweird.f32 %v154
    %vm187 = vweird.f32 %v180
    %vm188 = vmor %vm186, %vm187
    %v189 = vsel %vm188, %v180, %v185
    %v190 = vrsqrt.pop %v155
    %v191 = vmul.f32 %v190, %v155
    %v192 = vmul.f32 %v191, %v190
    %v193 = vmul.f32 0.5, %v192
    %v194 = vsub.f32 1.5, %v193
    %v195 = vmul.f32 %v190, %v194
    %vm196 = vweird.f32 %v155
    %vm197 = vweird.f32 %v190
    %vm198 = vmor %vm196, %vm197
    %v199 = vsel %vm198, %v190, %v195
    %v200 = vrsqrt.pop %v156
    %v201 = vmul.f32 %v200, %v156
    %v202 = vmul.f32 %v201, %v200
    %v203 = vmul.f32 0.5, %v202
    %v204 = vsub.f32 1.5, %v203
    %v205 = vmul.f32 %v200, %v204
    %vm206 = vweird.f32 %v156
    %vm207 = vweird.f32 %v200
    %vm208 = vmor %vm206, %vm207
    %v209 = vsel %vm208, %v200, %v205
    %v210 = vrsqrt.pop %v157
    %v211 = vmul.f32 %v210, %v157
    %v212 = vmul.f32 %v211, %v210
    %v213 = vmul.f32 0.5, %v212
    %v214 = vsub.f32 1.5, %v213
    %v215 = vmul.f32 %v210, %v214
    %vm216 = vweird.f32 %v157
    %vm217 = vweird.f32 %v210
    %vm218 = vmor %vm216, %vm217
    %v219 = vsel %vm218, %v210, %v215
    %v220 = vrsqrt.pop %v158
    %v221 = vmul.f32 %v220, %v158
    %v222 = vmul.f32 %v221, %v220
    %v223 = vmul.f32 0.5, %v222
    %v224 = vsub.f32 1.5, %v223
    %v225 = vmul.f32 %v220, %v224
    %vm226 = vweird.f32 %v158
    %vm227 = vweird.f32 %v220
    %vm228 = vmor %vm226, %vm227
    %v229 = vsel %vm228, %v220, %v225
    %v230 = vrsqrt.pop %v159
    %v231 = vmul.f32 %v230, %v159
    %v232 = vmul.f32 %v231, %v230
    %v233 = vmul.f32 0.5, %v232
    %v234 = vsub.f32 1.5, %v233
    %v235 = vmul.f32 %v230, %v234
    %vm236 = vweird.f32 %v159
    %vm237 = vweird.f32 %v230
    %vm238 = vmor %vm236, %vm237
    %v239 = vsel %vm238, %v230, %v235
    %v240 = vmul.f32 %v104, %v169
    %v241 = vmul.f32 %v105, %v179
    %v242 = vmul.f32 %v106, %v189
    %v243 = vmul.f32 %v107, %v199
    %v244 = vmul.f32 %v108, %v209
    %v245 = vmul.f32 %v109, %v219
    %v246 = vmul.f32 %v110, %v229
    %v247 = vmul.f32 %v111, %v239
    %v248 = vperm.slane %v62, 0
    %v249 = vmul.f32 %v240, %v248
    %v250 = vmul.f32 %v241, %v248
    %v251 = vmul.f32 %v242, %v248
    %v252 = vmul.f32 %v243, %v248
    %v253 = vmul.f32 %v244, %v248
    %v254 = vmul.f32 %v245, %v248
    %v255 = vmul.f32 %v246, %v248
    %v256 = vmul.f32 %v247, %v248
    %v257 = vperm.slane %v62, 1
    %v258 = vadd.f32 %v249, %v257
    %v259 = vadd.f32 %v250, %v257
    %v260 = vadd.f32 %v251, %v257
    %v261 = vadd.f32 %v252, %v257
    %v262 = vadd.f32 %v253, %v257
    %v263 = vadd.f32 %v254, %v257
    %v264 = vadd.f32 %v255, %v257
    %v265 = vadd.f32 %v256, %v257
    %v267 = vsel %vm64, %v258, 0
    %v270 = vsel %vm64, %v259, 0
    %v273 = vsel %vm64, %v260, 0
    %v276 = vsel %vm64, %v261, 0
    %v279 = vsel %vm64, %v262, 0
    %v282 = vsel %vm64, %v263, 0
    %v285 = vsel %vm64, %v264, 0
    %v288 = vsel %vm64, %v265, 0
    %290 = vmatpush.msra.mxu0 0.0
    %291 = vmatpush.msra.mxu0 0.0
    %292 = vmatpush.msra.mxu0 0.0
    %293 = vmatpush.msra.mxu0 0.0
    %294 = vmatpush.msra.mxu0 0.0
    %295 = vmatpush.msra.mxu0 0.0
    %296 = vmatpush.msra.mxu0 0.0
    %297 = vmatpush.msra.mxu0 0.0
    %298 = vmatpush.msra.mxu0 0.0
    %299 = vmatpush.msra.mxu0 0.0
    %300 = vmatpush.msra.mxu0 0.0
    %301 = vmatpush.msra.mxu0 0.0
    %302 = vmatpush.msra.mxu0 %v48
    %303 = vmatpush.msra.mxu0 %v46
    %304 = vmatpush.msra.mxu0 %v44
    %305 = vmatpush.msra.mxu0 %v42
    %306 = vmatmul.f32.gmra.mxu0 %v267
    %v307 = vpop.f32.mrf.mxu0
    %v308 = vadd.f32 0.0, %v307
    %309 = vmatmul.f32.gmra.mxu0 %v270
    %v310 = vpop.f32.mrf.mxu0
    %v311 = vadd.f32 0.0, %v310
    %312 = vmatmul.f32.gmra.mxu0 %v273
    %v313 = vpop.f32.mrf.mxu0
    %v314 = vadd.f32 0.0, %v313
    %315 = vmatmul.f32.gmra.mxu0 %v276
    %v316 = vpop.f32.mrf.mxu0
    %v317 = vadd.f32 0.0, %v316
    %318 = vmatmul.f32.gmra.mxu0 %v279
    %v319 = vpop.f32.mrf.mxu0
    %v320 = vadd.f32 0.0, %v319
    %321 = vmatmul.f32.gmra.mxu0 %v282
    %v322 = vpop.f32.mrf.mxu0
    %v323 = vadd.f32 0.0, %v322
    %324 = vmatmul.f32.gmra.mxu0 %v285
    %v325 = vpop.f32.mrf.mxu0
    %v326 = vadd.f32 0.0, %v325
    %327 = vmatmul.f32.gmra.mxu0 %v288
    %v328 = vpop.f32.mrf.mxu0
    %v329 = vadd.f32 0.0, %v328
    %330 = vdwg.mxu0
    %333 = vrot.lane.b32.xlu0 %v308, 96
    %v334 = vpop.permute.xlu0 %333
    %335 = vrot.lane.b32.xlu0 %v311, 96
    %v336 = vpop.permute.xlu0 %335
    %vm337 = vcmask 64512
    %v338 = vsel %vm337, %v308, 0
    %v340 = vsel %vm337, %v311, 0
    %v342 = vsel %vm337, %v334, 0
    %v344 = vsel %vm337, %v336, 0
    %346 = vmatpush.xpose.msra.mxu0 0.0
    %347 = vmatpush.xpose.msra.mxu0 0.0
    %348 = vmatpush.xpose.msra.mxu0 0.0
    %349 = vmatpush.xpose.msra.mxu0 0.0
    %350 = vmatpush.xpose.msra.mxu0 0.0
    %351 = vmatpush.xpose.msra.mxu0 0.0
    %352 = vmatpush.xpose.msra.mxu0 0.0
    %353 = vmatpush.xpose.msra.mxu0 0.0
    %354 = vmatpush.xpose.msra.mxu0 0.0
    %355 = vmatpush.xpose.msra.mxu0 0.0
    %356 = vmatpush.xpose.msra.mxu0 0.0
    %357 = vmatpush.xpose.msra.mxu0 0.0
    %358 = vmatpush.xpose.msra.mxu0 0.0
    %359 = vmatpush.xpose.msra.mxu0 0.0
    %360 = vmatpush.xpose.msra.mxu0 %v344
    %361 = vmatpush.xpose.msra.mxu0 %v342
    %362 = vmatmul.f32.gmra.mxu0 %v338
    %v363 = vpop.f32.mrf.mxu0
    %v364 = vadd.f32 0.0, %v363
    %365 = vmatmul.f32.gmra.mxu0 %v340
    %v366 = vpop.f32.mrf.mxu0
    %v367 = vadd.f32 0.0, %v366
    %368 = vdwg.mxu0
    %371 = vrot.lane.b32.xlu0 %v314, 96
    %v372 = vpop.permute.xlu0 %371
    %373 = vrot.lane.b32.xlu0 %v317, 96
    %v374 = vpop.permute.xlu0 %373
    %v375 = vsel %vm337, %v314, 0
    %v377 = vsel %vm337, %v317, 0
    %v379 = vsel %vm337, %v372, 0
    %v381 = vsel %vm337, %v374, 0
    %383 = vmatpush.xpose.msra.mxu0 0.0
    %384 = vmatpush.xpose.msra.mxu0 0.0
    %385 = vmatpush.xpose.msra.mxu0 0.0
    %386 = vmatpush.xpose.msra.mxu0 0.0
    %387 = vmatpush.xpose.msra.mxu0 0.0
    %388 = vmatpush.xpose.msra.mxu0 0.0
    %389 = vmatpush.xpose.msra.mxu0 0.0
    %390 = vmatpush.xpose.msra.mxu0 0.0
    %391 = vmatpush.xpose.msra.mxu0 0.0
    %392 = vmatpush.xpose.msra.mxu0 0.0
    %393 = vmatpush.xpose.msra.mxu0 0.0
    %394 = vmatpush.xpose.msra.mxu0 0.0
    %395 = vmatpush.xpose.msra.mxu0 0.0
    %396 = vmatpush.xpose.msra.mxu0 0.0
    %397 = vmatpush.xpose.msra.mxu0 %v381
    %398 = vmatpush.xpose.msra.mxu0 %v379
    %399 = vmatmul.f32.gmra.mxu0 %v375
    %v400 = vpop.f32.mrf.mxu0
    %v401 = vadd.f32 0.0, %v400
    %402 = vmatmul.f32.gmra.mxu0 %v377
    %v403 = vpop.f32.mrf.mxu0
    %v404 = vadd.f32 0.0, %v403
    %405 = vdwg.mxu0
    %408 = vrot.lane.b32.xlu0 %v320, 96
    %v409 = vpop.permute.xlu0 %408
    %410 = vrot.lane.b32.xlu0 %v323, 96
    %v411 = vpop.permute.xlu0 %410
    %v412 = vsel %vm337, %v320, 0
    %v414 = vsel %vm337, %v323, 0
    %v416 = vsel %vm337, %v409, 0
    %v418 = vsel %vm337, %v411, 0
    %420 = vmatpush.xpose.msra.mxu0 0.0
    %421 = vmatpush.xpose.msra.mxu0 0.0
    %422 = vmatpush.xpose.msra.mxu0 0.0
    %423 = vmatpush.xpose.msra.mxu0 0.0
    %424 = vmatpush.xpose.msra.mxu0 0.0
    %425 = vmatpush.xpose.msra.mxu0 0.0
    %426 = vmatpush.xpose.msra.mxu0 0.0
    %427 = vmatpush.xpose.msra.mxu0 0.0
    %428 = vmatpush.xpose.msra.mxu0 0.0
    %429 = vmatpush.xpose.msra.mxu0 0.0
    %430 = vmatpush.xpose.msra.mxu0 0.0
    %431 = vmatpush.xpose.msra.mxu0 0.0
    %432 = vmatpush.xpose.msra.mxu0 0.0
    %433 = vmatpush.xpose.msra.mxu0 0.0
    %434 = vmatpush.xpose.msra.mxu0 %v418
    %435 = vmatpush.xpose.msra.mxu0 %v416
    %436 = vmatmul.f32.gmra.mxu0 %v412
    %v437 = vpop.f32.mrf.mxu0
    %v438 = vadd.f32 0.0, %v437
    %439 = vmatmul.f32.gmra.mxu0 %v414
    %v440 = vpop.f32.mrf.mxu0
    %v441 = vadd.f32 0.0, %v440
    %442 = vdwg.mxu0
    %445 = vrot.lane.b32.xlu0 %v326, 96
    %v446 = vpop.permute.xlu0 %445
    %447 = vrot.lane.b32.xlu0 %v329, 96
    %v448 = vpop.permute.xlu0 %447
    %v449 = vsel %vm337, %v326, 0
    %v451 = vsel %vm337, %v329, 0
    %v453 = vsel %vm337, %v446, 0
    %v455 = vsel %vm337, %v448, 0
    %457 = vmatpush.xpose.msra.mxu0 0.0
    %458 = vmatpush.xpose.msra.mxu0 0.0
    %459 = vmatpush.xpose.msra.mxu0 0.0
    %460 = vmatpush.xpose.msra.mxu0 0.0
    %461 = vmatpush.xpose.msra.mxu0 0.0
    %462 = vmatpush.xpose.msra.mxu0 0.0
    %463 = vmatpush.xpose.msra.mxu0 0.0
    %464 = vmatpush.xpose.msra.mxu0 0.0
    %465 = vmatpush.xpose.msra.mxu0 0.0
    %466 = vmatpush.xpose.msra.mxu0 0.0
    %467 = vmatpush.xpose.msra.mxu0 0.0
    %468 = vmatpush.xpose.msra.mxu0 0.0
    %469 = vmatpush.xpose.msra.mxu0 0.0
    %470 = vmatpush.xpose.msra.mxu0 0.0
    %471 = vmatpush.xpose.msra.mxu0 %v455
    %472 = vmatpush.xpose.msra.mxu0 %v453
    %473 = vmatmul.f32.gmra.mxu0 %v449
    %v474 = vpop.f32.mrf.mxu0
    %v475 = vadd.f32 0.0, %v474
    %476 = vmatmul.f32.gmra.mxu0 %v451
    %v477 = vpop.f32.mrf.mxu0
    %v478 = vadd.f32 0.0, %v477
    %479 = vdwg.mxu0
    %vm480 = vcmask 130048
    %v481 = vsel %vm480, %v364, -inf
    %482 = vmax.xlane.f32.xlu0 %v481
    %v483 = vpop.xlane.xlu0 %482
    %v484 = vsel %vm480, %v367, -inf
    %485 = vmax.xlane.f32.xlu0 %v484
    %v486 = vpop.xlane.xlu0 %485
    %v487 = vsel %vm480, %v401, -inf
    %488 = vmax.xlane.f32.xlu0 %v487
    %v489 = vpop.xlane.xlu0 %488
    %v490 = vsel %vm480, %v404, -inf
    %491 = vmax.xlane.f32.xlu0 %v490
    %v492 = vpop.xlane.xlu0 %491
    %v493 = vsel %vm480, %v438, -inf
    %494 = vmax.xlane.f32.xlu0 %v493
    %v495 = vpop.xlane.xlu0 %494
    %v496 = vsel %vm480, %v441, -inf
    %497 = vmax.xlane.f32.xlu0 %v496
    %v498 = vpop.xlane.xlu0 %497
    %v499 = vsel %vm480, %v475, -inf
    %500 = vmax.xlane.f32.xlu0 %v499
    %v501 = vpop.xlane.xlu0 %500
    %v502 = vsel %vm480, %v478, -inf
    %503 = vmax.xlane.f32.xlu0 %v502
    %v504 = vpop.xlane.xlu0 %503
    %v505 = vsub.f32 %v364, %v483
    %v506 = vsub.f32 %v367, %v486
    %v507 = vsub.f32 %v401, %v489
    %v508 = vsub.f32 %v404, %v492
    %v509 = vsub.f32 %v438, %v495
    %v510 = vsub.f32 %v441, %v498
    %v511 = vsub.f32 %v475, %v501
    %v512 = vsub.f32 %v478, %v504
    %v513 = vmul.f32 %v505, 1.442695
    %v514 = vpow.pop %v513
    %v515 = vmul.f32 %v506, 1.442695
    %v516 = vpow.pop %v515
    %v517 = vmul.f32 %v507, 1.442695
    %v518 = vpow.pop %v517
    %v519 = vmul.f32 %v508, 1.442695
    %v520 = vpow.pop %v519
    %v521 = vmul.f32 %v509, 1.442695
    %v522 = vpow.pop %v521
    %v523 = vmul.f32 %v510, 1.442695
    %v524 = vpow.pop %v523
    %v525 = vmul.f32 %v511, 1.442695
    %v526 = vpow.pop %v525
    %v527 = vmul.f32 %v512, 1.442695
    %v528 = vpow.pop %v527
    %v529 = vsel %vm480, %v514, 0.0
    %530 = vadd.xlane.f32.xlu0 %v529
    %v531 = vpop.xlane.xlu0 %530
    %v532 = vsel %vm480, %v516, 0.0
    %533 = vadd.xlane.f32.xlu0 %v532
    %v534 = vpop.xlane.xlu0 %533
    %v535 = vsel %vm480, %v518, 0.0
    %536 = vadd.xlane.f32.xlu0 %v535
    %v537 = vpop.xlane.xlu0 %536
    %v538 = vsel %vm480, %v520, 0.0
    %539 = vadd.xlane.f32.xlu0 %v538
    %v540 = vpop.xlane.xlu0 %539
    %v541 = vsel %vm480, %v522, 0.0
    %542 = vadd.xlane.f32.xlu0 %v541
    %v543 = vpop.xlane.xlu0 %542
    %v544 = vsel %vm480, %v524, 0.0
    %545 = vadd.xlane.f32.xlu0 %v544
    %v546 = vpop.xlane.xlu0 %545
    %v547 = vsel %vm480, %v526, 0.0
    %548 = vadd.xlane.f32.xlu0 %v547
    %v549 = vpop.xlane.xlu0 %548
    %v550 = vsel %vm480, %v528, 0.0
    %551 = vadd.xlane.f32.xlu0 %v550
    %v552 = vpop.xlane.xlu0 %551
    %v553 = vrcp.pop %v531
    %v554 = vmul.f32 %v531, %v553
    %v555 = vsub.f32 1.0, %v554
    %v556 = vmul.f32 %v553, %v555
    %v557 = vadd.f32 %v553, %v556
    %vm558 = vweird.f32 %v531
    %vm559 = vweird.f32 %v553
    %vm560 = vmor %vm558, %vm559
    %v561 = vsel %vm560, %v553, %v557
    %v562 = vand.u32 2147483647, %v531
    %vm563 = vcmp.eq.f32.partialorder %v562, 8.507059e+37
    %v564 = vand.u32 %v531, 2147483648
    %v565 = vor.u32 1.1754944e-38, %v564
    %v566 = vsel %vm563, %v565, %v561
    %v567 = vmul.f32 %v514, %v566
    %v568 = vrcp.pop %v534
    %v569 = vmul.f32 %v534, %v568
    %v570 = vsub.f32 1.0, %v569
    %v571 = vmul.f32 %v568, %v570
    %v572 = vadd.f32 %v568, %v571
    %vm573 = vweird.f32 %v534
    %vm574 = vweird.f32 %v568
    %vm575 = vmor %vm573, %vm574
    %v576 = vsel %vm575, %v568, %v572
    %v577 = vand.u32 2147483647, %v534
    %vm578 = vcmp.eq.f32.partialorder %v577, 8.507059e+37
    %v579 = vand.u32 %v534, 2147483648
    %v580 = vor.u32 1.1754944e-38, %v579
    %v581 = vsel %vm578, %v580, %v576
    %v582 = vmul.f32 %v516, %v581
    %v583 = vrcp.pop %v537
    %v584 = vmul.f32 %v537, %v583
    %v585 = vsub.f32 1.0, %v584
    %v586 = vmul.f32 %v583, %v585
    %v587 = vadd.f32 %v583, %v586
    %vm588 = vweird.f32 %v537
    %vm589 = vweird.f32 %v583
    %vm590 = vmor %vm588, %vm589
    %v591 = vsel %vm590, %v583, %v587
    %v592 = vand.u32 2147483647, %v537
    %vm593 = vcmp.eq.f32.partialorder %v592, 8.507059e+37
    %v594 = vand.u32 %v537, 2147483648
    %v595 = vor.u32 1.1754944e-38, %v594
    %v596 = vsel %vm593, %v595, %v591
    %v597 = vmul.f32 %v518, %v596
    %v598 = vrcp.pop %v540
    %v599 = vmul.f32 %v540, %v598
    %v600 = vsub.f32 1.0, %v599
    %v601 = vmul.f32 %v598, %v600
    %v602 = vadd.f32 %v598, %v601
    %vm603 = vweird.f32 %v540
    %vm604 = vweird.f32 %v598
    %vm605 = vmor %vm603, %vm604
    %v606 = vsel %vm605, %v598, %v602
    %v607 = vand.u32 2147483647, %v540
    %vm608 = vcmp.eq.f32.partialorder %v607, 8.507059e+37
    %v609 = vand.u32 %v540, 2147483648
    %v610 = vor.u32 1.1754944e-38, %v609
    %v611 = vsel %vm608, %v610, %v606
    %v612 = vmul.f32 %v520, %v611
    %v613 = vrcp.pop %v543
    %v614 = vmul.f32 %v543, %v613
    %v615 = vsub.f32 1.0, %v614
    %v616 = vmul.f32 %v613, %v615
    %v617 = vadd.f32 %v613, %v616
    %vm618 = vweird.f32 %v543
    %vm619 = vweird.f32 %v613
    %vm620 = vmor %vm618, %vm619
    %v621 = vsel %vm620, %v613, %v617
    %v622 = vand.u32 2147483647, %v543
    %vm623 = vcmp.eq.f32.partialorder %v622, 8.507059e+37
    %v624 = vand.u32 %v543, 2147483648
    %v625 = vor.u32 1.1754944e-38, %v624
    %v626 = vsel %vm623, %v625, %v621
    %v627 = vmul.f32 %v522, %v626
    %v628 = vrcp.pop %v546
    %v629 = vmul.f32 %v546, %v628
    %v630 = vsub.f32 1.0, %v629
    %v631 = vmul.f32 %v628, %v630
    %v632 = vadd.f32 %v628, %v631
    %vm633 = vweird.f32 %v546
    %vm634 = vweird.f32 %v628
    %vm635 = vmor %vm633, %vm634
    %v636 = vsel %vm635, %v628, %v632
    %v637 = vand.u32 2147483647, %v546
    %vm638 = vcmp.eq.f32.partialorder %v637, 8.507059e+37
    %v639 = vand.u32 %v546, 2147483648
    %v640 = vor.u32 1.1754944e-38, %v639
    %v641 = vsel %vm638, %v640, %v636
    %v642 = vmul.f32 %v524, %v641
    %v643 = vrcp.pop %v549
    %v644 = vmul.f32 %v549, %v643
    %v645 = vsub.f32 1.0, %v644
    %v646 = vmul.f32 %v643, %v645
    %v647 = vadd.f32 %v643, %v646
    %vm648 = vweird.f32 %v549
    %vm649 = vweird.f32 %v643
    %vm650 = vmor %vm648, %vm649
    %v651 = vsel %vm650, %v643, %v647
    %v652 = vand.u32 2147483647, %v549
    %vm653 = vcmp.eq.f32.partialorder %v652, 8.507059e+37
    %v654 = vand.u32 %v549, 2147483648
    %v655 = vor.u32 1.1754944e-38, %v654
    %v656 = vsel %vm653, %v655, %v651
    %v657 = vmul.f32 %v526, %v656
    %v658 = vrcp.pop %v552
    %v659 = vmul.f32 %v552, %v658
    %v660 = vsub.f32 1.0, %v659
    %v661 = vmul.f32 %v658, %v660
    %v662 = vadd.f32 %v658, %v661
    %vm663 = vweird.f32 %v552
    %vm664 = vweird.f32 %v658
    %vm665 = vmor %vm663, %vm664
    %v666 = vsel %vm665, %v658, %v662
    %v667 = vand.u32 2147483647, %v552
    %vm668 = vcmp.eq.f32.partialorder %v667, 8.507059e+37
    %v669 = vand.u32 %v552, 2147483648
    %v670 = vor.u32 1.1754944e-38, %v669
    %v671 = vsel %vm668, %v670, %v666
    %v672 = vmul.f32 %v528, %v671
    %673 = vrot.lane.b32.xlu0 %v308, 64
    %v674 = vpop.permute.xlu0 %673
    %675 = vrot.lane.b32.xlu0 %v311, 64
    %v676 = vpop.permute.xlu0 %675
    %v680 = vsel %vm480, %v567, 0
    %v683 = vsel %vm480, %v582, 0
    %685 = vmatpush.msra.mxu0 0.0
    %686 = vmatpush.msra.mxu0 0.0
    %687 = vmatpush.msra.mxu0 0.0
    %688 = vmatpush.msra.mxu0 0.0
    %689 = vmatpush.msra.mxu0 0.0
    %690 = vmatpush.msra.mxu0 0.0
    %691 = vmatpush.msra.mxu0 0.0
    %692 = vmatpush.msra.mxu0 0.0
    %693 = vmatpush.msra.mxu0 0.0
    %694 = vmatpush.msra.mxu0 0.0
    %695 = vmatpush.msra.mxu0 0.0
    %696 = vmatpush.msra.mxu0 0.0
    %697 = vmatpush.msra.mxu0 0.0
    %698 = vmatpush.msra.mxu0 0.0
    %699 = vmatpush.msra.mxu0 %v676
    %700 = vmatpush.msra.mxu0 %v674
    %701 = vmatmul.f32.gmra.mxu0 %v680
    %v702 = vpop.f32.mrf.mxu0
    %v703 = vadd.f32 0.0, %v702
    %704 = vmatmul.f32.gmra.mxu0 %v683
    %v705 = vpop.f32.mrf.mxu0
    %v706 = vadd.f32 0.0, %v705
    %707 = vdwg.mxu0
    %708 = vrot.lane.b32.xlu0 %v314, 64
    %v709 = vpop.permute.xlu0 %708
    %710 = vrot.lane.b32.xlu0 %v317, 64
    %v711 = vpop.permute.xlu0 %710
    %v715 = vsel %vm480, %v597, 0
    %v718 = vsel %vm480, %v612, 0
    %720 = vmatpush.msra.mxu0 0.0
    %721 = vmatpush.msra.mxu0 0.0
    %722 = vmatpush.msra.mxu0 0.0
    %723 = vmatpush.msra.mxu0 0.0
    %724 = vmatpush.msra.mxu0 0.0
    %725 = vmatpush.msra.mxu0 0.0
    %726 = vmatpush.msra.mxu0 0.0
    %727 = vmatpush.msra.mxu0 0.0
    %728 = vmatpush.msra.mxu0 0.0
    %729 = vmatpush.msra.mxu0 0.0
    %730 = vmatpush.msra.mxu0 0.0
    %731 = vmatpush.msra.mxu0 0.0
    %732 = vmatpush.msra.mxu0 0.0
    %733 = vmatpush.msra.mxu0 0.0
    %734 = vmatpush.msra.mxu0 %v711
    %735 = vmatpush.msra.mxu0 %v709
    %736 = vmatmul.f32.gmra.mxu0 %v715
    %v737 = vpop.f32.mrf.mxu0
    %v738 = vadd.f32 0.0, %v737
    %739 = vmatmul.f32.gmra.mxu0 %v718
    %v740 = vpop.f32.mrf.mxu0
    %v741 = vadd.f32 0.0, %v740
    %742 = vdwg.mxu0
    %743 = vrot.lane.b32.xlu0 %v320, 64
    %v744 = vpop.permute.xlu0 %743
    %745 = vrot.lane.b32.xlu0 %v323, 64
    %v746 = vpop.permute.xlu0 %745
    %v750 = vsel %vm480, %v627, 0
    %v753 = vsel %vm480, %v642, 0
    %755 = vmatpush.msra.mxu0 0.0
    %756 = vmatpush.msra.mxu0 0.0
    %757 = vmatpush.msra.mxu0 0.0
    %758 = vmatpush.msra.mxu0 0.0
    %759 = vmatpush.msra.mxu0 0.0
    %760 = vmatpush.msra.mxu0 0.0
    %761 = vmatpush.msra.mxu0 0.0
    %762 = vmatpush.msra.mxu0 0.0
    %763 = vmatpush.msra.mxu0 0.0
    %764 = vmatpush.msra.mxu0 0.0
    %765 = vmatpush.msra.mxu0 0.0
    %766 = vmatpush.msra.mxu0 0.0
    %767 = vmatpush.msra.mxu0 0.0
    %768 = vmatpush.msra.mxu0 0.0
    %769 = vmatpush.msra.mxu0 %v746
    %770 = vmatpush.msra.mxu0 %v744
    %771 = vmatmul.f32.gmra.mxu0 %v750
    %v772 = vpop.f32.mrf.mxu0
    %v773 = vadd.f32 0.0, %v772
    %774 = vmatmul.f32.gmra.mxu0 %v753
    %v775 = vpop.f32.mrf.mxu0
    %v776 = vadd.f32 0.0, %v775
    %777 = vdwg.mxu0
    %778 = vrot.lane.b32.xlu0 %v326, 64
    %v779 = vpop.permute.xlu0 %778
    %780 = vrot.lane.b32.xlu0 %v329, 64
    %v781 = vpop.permute.xlu0 %780
    %v785 = vsel %vm480, %v657, 0
    %v788 = vsel %vm480, %v672, 0
    %790 = vmatpush.msra.mxu0 0.0
    %791 = vmatpush.msra.mxu0 0.0
    %792 = vmatpush.msra.mxu0 0.0
    %793 = vmatpush.msra.mxu0 0.0
    %794 = vmatpush.msra.mxu0 0.0
    %795 = vmatpush.msra.mxu0 0.0
    %796 = vmatpush.msra.mxu0 0.0
    %797 = vmatpush.msra.mxu0 0.0
    %798 = vmatpush.msra.mxu0 0.0
    %799 = vmatpush.msra.mxu0 0.0
    %800 = vmatpush.msra.mxu0 0.0
    %801 = vmatpush.msra.mxu0 0.0
    %802 = vmatpush.msra.mxu0 0.0
    %803 = vmatpush.msra.mxu0 0.0
    %804 = vmatpush.msra.mxu0 %v781
    %805 = vmatpush.msra.mxu0 %v779
    %806 = vmatmul.f32.gmra.mxu0 %v785
    %v807 = vpop.f32.mrf.mxu0
    %v808 = vadd.f32 0.0, %v807
    %809 = vmatmul.f32.gmra.mxu0 %v788
    %v810 = vpop.f32.mrf.mxu0
    %v811 = vadd.f32 0.0, %v810
    %812 = vdwg.mxu0
    %813 = vrot.lane.b32.xlu0 %v308, 120
    %v814 = vpop.permute.xlu0 %813
    %815 = vrot.lane.b32.xlu0 %v311, 120
    %v816 = vpop.permute.xlu0 %815
    %817 = vrot.lane.b32.xlu0 %v308, 88
    %v818 = vpop.permute.xlu0 %817
    %819 = vrot.lane.b32.xlu0 %v311, 88
    %v820 = vpop.permute.xlu0 %819
    %v821 = vsel %vm337, %v814, 0
    %v823 = vsel %vm337, %v816, 0
    %v825 = vsel %vm337, %v818, 0
    %v827 = vsel %vm337, %v820, 0
    %829 = vmatpush.xpose.msra.mxu0 0.0
    %830 = vmatpush.xpose.msra.mxu0 0.0
    %831 = vmatpush.xpose.msra.mxu0 0.0
    %832 = vmatpush.xpose.msra.mxu0 0.0
    %833 = vmatpush.xpose.msra.mxu0 0.0
    %834 = vmatpush.xpose.msra.mxu0 0.0
    %835 = vmatpush.xpose.msra.mxu0 0.0
    %836 = vmatpush.xpose.msra.mxu0 0.0
    %837 = vmatpush.xpose.msra.mxu0 0.0
    %838 = vmatpush.xpose.msra.mxu0 0.0
    %839 = vmatpush.xpose.msra.mxu0 0.0
    %840 = vmatpush.xpose.msra.mxu0 0.0
    %841 = vmatpush.xpose.msra.mxu0 0.0
    %842 = vmatpush.xpose.msra.mxu0 0.0
    %843 = vmatpush.xpose.msra.mxu0 %v827
    %844 = vmatpush.xpose.msra.mxu0 %v825
    %845 = vmatmul.f32.gmra.mxu0 %v821
    %v846 = vpop.f32.mrf.mxu0
    %v847 = vadd.f32 0.0, %v846
    %848 = vmatmul.f32.gmra.mxu0 %v823
    %v849 = vpop.f32.mrf.mxu0
    %v850 = vadd.f32 0.0, %v849
    %851 = vdwg.mxu0
    %852 = vrot.lane.b32.xlu0 %v314, 120
    %v853 = vpop.permute.xlu0 %852
    %854 = vrot.lane.b32.xlu0 %v317, 120
    %v855 = vpop.permute.xlu0 %854
    %856 = vrot.lane.b32.xlu0 %v314, 88
    %v857 = vpop.permute.xlu0 %856
    %858 = vrot.lane.b32.xlu0 %v317, 88
    %v859 = vpop.permute.xlu0 %858
    %v860 = vsel %vm337, %v853, 0
    %v862 = vsel %vm337, %v855, 0
    %v864 = vsel %vm337, %v857, 0
    %v866 = vsel %vm337, %v859, 0
    %868 = vmatpush.xpose.msra.mxu0 0.0
    %869 = vmatpush.xpose.msra.mxu0 0.0
    %870 = vmatpush.xpose.msra.mxu0 0.0
    %871 = vmatpush.xpose.msra.mxu0 0.0
    %872 = vmatpush.xpose.msra.mxu0 0.0
    %873 = vmatpush.xpose.msra.mxu0 0.0
    %874 = vmatpush.xpose.msra.mxu0 0.0
    %875 = vmatpush.xpose.msra.mxu0 0.0
    %876 = vmatpush.xpose.msra.mxu0 0.0
    %877 = vmatpush.xpose.msra.mxu0 0.0
    %878 = vmatpush.xpose.msra.mxu0 0.0
    %879 = vmatpush.xpose.msra.mxu0 0.0
    %880 = vmatpush.xpose.msra.mxu0 0.0
    %881 = vmatpush.xpose.msra.mxu0 0.0
    %882 = vmatpush.xpose.msra.mxu0 %v866
    %883 = vmatpush.xpose.msra.mxu0 %v864
    %884 = vmatmul.f32.gmra.mxu0 %v860
    %v885 = vpop.f32.mrf.mxu0
    %v886 = vadd.f32 0.0, %v885
    %887 = vmatmul.f32.gmra.mxu0 %v862
    %v888 = vpop.f32.mrf.mxu0
    %v889 = vadd.f32 0.0, %v888
    %890 = vdwg.mxu0
    %891 = vrot.lane.b32.xlu0 %v320, 120
    %v892 = vpop.permute.xlu0 %891
    %893 = vrot.lane.b32.xlu0 %v323, 120
    %v894 = vpop.permute.xlu0 %893
    %895 = vrot.lane.b32.xlu0 %v320, 88
    %v896 = vpop.permute.xlu0 %895
    %897 = vrot.lane.b32.xlu0 %v323, 88
    %v898 = vpop.permute.xlu0 %897
    %v899 = vsel %vm337, %v892, 0
    %v901 = vsel %vm337, %v894, 0
    %v903 = vsel %vm337, %v896, 0
    %v905 = vsel %vm337, %v898, 0
    %907 = vmatpush.xpose.msra.mxu0 0.0
    %908 = vmatpush.xpose.msra.mxu0 0.0
    %909 = vmatpush.xpose.msra.mxu0 0.0
    %910 = vmatpush.xpose.msra.mxu0 0.0
    %911 = vmatpush.xpose.msra.mxu0 0.0
    %912 = vmatpush.xpose.msra.mxu0 0.0
    %913 = vmatpush.xpose.msra.mxu0 0.0
    %914 = vmatpush.xpose.msra.mxu0 0.0
    %915 = vmatpush.xpose.msra.mxu0 0.0
    %916 = vmatpush.xpose.msra.mxu0 0.0
    %917 = vmatpush.xpose.msra.mxu0 0.0
    %918 = vmatpush.xpose.msra.mxu0 0.0
    %919 = vmatpush.xpose.msra.mxu0 0.0
    %920 = vmatpush.xpose.msra.mxu0 0.0
    %921 = vmatpush.xpose.msra.mxu0 %v905
    %922 = vmatpush.xpose.msra.mxu0 %v903
    %923 = vmatmul.f32.gmra.mxu0 %v899
    %v924 = vpop.f32.mrf.mxu0
    %v925 = vadd.f32 0.0, %v924
    %926 = vmatmul.f32.gmra.mxu0 %v901
    %v927 = vpop.f32.mrf.mxu0
    %v928 = vadd.f32 0.0, %v927
    %929 = vdwg.mxu0
    %930 = vrot.lane.b32.xlu0 %v326, 120
    %v931 = vpop.permute.xlu0 %930
    %932 = vrot.lane.b32.xlu0 %v329, 120
    %v933 = vpop.permute.xlu0 %932
    %934 = vrot.lane.b32.xlu0 %v326, 88
    %v935 = vpop.permute.xlu0 %934
    %936 = vrot.lane.b32.xlu0 %v329, 88
    %v937 = vpop.permute.xlu0 %936
    %v938 = vsel %vm337, %v931, 0
    %v940 = vsel %vm337, %v933, 0
    %v942 = vsel %vm337, %v935, 0
    %v944 = vsel %vm337, %v937, 0
    %946 = vmatpush.xpose.msra.mxu0 0.0
    %947 = vmatpush.xpose.msra.mxu0 0.0
    %948 = vmatpush.xpose.msra.mxu0 0.0
    %949 = vmatpush.xpose.msra.mxu0 0.0
    %950 = vmatpush.xpose.msra.mxu0 0.0
    %951 = vmatpush.xpose.msra.mxu0 0.0
    %952 = vmatpush.xpose.msra.mxu0 0.0
    %953 = vmatpush.xpose.msra.mxu0 0.0
    %954 = vmatpush.xpose.msra.mxu0 0.0
    %955 = vmatpush.xpose.msra.mxu0 0.0
    %956 = vmatpush.xpose.msra.mxu0 0.0
    %957 = vmatpush.xpose.msra.mxu0 0.0
    %958 = vmatpush.xpose.msra.mxu0 0.0
    %959 = vmatpush.xpose.msra.mxu0 0.0
    %960 = vmatpush.xpose.msra.mxu0 %v944
    %961 = vmatpush.xpose.msra.mxu0 %v942
    %962 = vmatmul.f32.gmra.mxu0 %v938
    %v963 = vpop.f32.mrf.mxu0
    %v964 = vadd.f32 0.0, %v963
    %965 = vmatmul.f32.gmra.mxu0 %v940
    %v966 = vpop.f32.mrf.mxu0
    %v967 = vadd.f32 0.0, %v966
    %968 = vdwg.mxu0
    %v969 = vsel %vm480, %v847, -inf
    %970 = vmax.xlane.f32.xlu0 %v969
    %v971 = vpop.xlane.xlu0 %970
    %v972 = vsel %vm480, %v850, -inf
    %973 = vmax.xlane.f32.xlu0 %v972
    %v974 = vpop.xlane.xlu0 %973
    %v975 = vsel %vm480, %v886, -inf
    %976 = vmax.xlane.f32.xlu0 %v975
    %v977 = vpop.xlane.xlu0 %976
    %v978 = vsel %vm480, %v889, -inf
    %979 = vmax.xlane.f32.xlu0 %v978
    %v980 = vpop.xlane.xlu0 %979
    %v981 = vsel %vm480, %v925, -inf
    %982 = vmax.xlane.f32.xlu0 %v981
    %v983 = vpop.xlane.xlu0 %982
    %v984 = vsel %vm480, %v928, -inf
    %985 = vmax.xlane.f32.xlu0 %v984
    %v986 = vpop.xlane.xlu0 %985
    %v987 = vsel %vm480, %v964, -inf
    %988 = vmax.xlane.f32.xlu0 %v987
    %v989 = vpop.xlane.xlu0 %988
    %v990 = vsel %vm480, %v967, -inf
    %991 = vmax.xlane.f32.xlu0 %v990
    %v992 = vpop.xlane.xlu0 %991
    %v993 = vsub.f32 %v847, %v971
    %v994 = vsub.f32 %v850, %v974
    %v995 = vsub.f32 %v886, %v977
    %v996 = vsub.f32 %v889, %v980
    %v997 = vsub.f32 %v925, %v983
    %v998 = vsub.f32 %v928, %v986
    %v999 = vsub.f32 %v964, %v989
    %v1000 = vsub.f32 %v967, %v992
    %v1001 = vmul.f32 %v993, 1.442695
    %v1002 = vpow.pop %v1001
    %v1003 = vmul.f32 %v994, 1.442695
    %v1004 = vpow.pop %v1003
    %v1005 = vmul.f32 %v995, 1.442695
    %v1006 = vpow.pop %v1005
    %v1007 = vmul.f32 %v996, 1.442695
    %v1008 = vpow.pop %v1007
    %v1009 = vmul.f32 %v997, 1.442695
    %v1010 = vpow.pop %v1009
    %v1011 = vmul.f32 %v998, 1.442695
    %v1012 = vpow.pop %v1011
    %v1013 = vmul.f32 %v999, 1.442695
    %v1014 = vpow.pop %v1013
    %v1015 = vmul.f32 %v1000, 1.442695
    %v1016 = vpow.pop %v1015
    %v1017 = vsel %vm480, %v1002, 0.0
    %1018 = vadd.xlane.f32.xlu0 %v1017
    %v1019 = vpop.xlane.xlu0 %1018
    %v1020 = vsel %vm480, %v1004, 0.0
    %1021 = vadd.xlane.f32.xlu0 %v1020
    %v1022 = vpop.xlane.xlu0 %1021
    %v1023 = vsel %vm480, %v1006, 0.0
    %1024 = vadd.xlane.f32.xlu0 %v1023
    %v1025 = vpop.xlane.xlu0 %1024
    %v1026 = vsel %vm480, %v1008, 0.0
    %1027 = vadd.xlane.f32.xlu0 %v1026
    %v1028 = vpop.xlane.xlu0 %1027
    %v1029 = vsel %vm480, %v1010, 0.0
    %1030 = vadd.xlane.f32.xlu0 %v1029
    %v1031 = vpop.xlane.xlu0 %1030
    %v1032 = vsel %vm480, %v1012, 0.0
    %1033 = vadd.xlane.f32.xlu0 %v1032
    %v1034 = vpop.xlane.xlu0 %1033
    %v1035 = vsel %vm480, %v1014, 0.0
    %1036 = vadd.xlane.f32.xlu0 %v1035
    %v1037 = vpop.xlane.xlu0 %1036
    %v1038 = vsel %vm480, %v1016, 0.0
    %1039 = vadd.xlane.f32.xlu0 %v1038
    %v1040 = vpop.xlane.xlu0 %1039
    %v1041 = vrcp.pop %v1019
    %v1042 = vmul.f32 %v1019, %v1041
    %v1043 = vsub.f32 1.0, %v1042
    %v1044 = vmul.f32 %v1041, %v1043
    %v1045 = vadd.f32 %v1041, %v1044
    %vm1046 = vweird.f32 %v1019
    %vm1047 = vweird.f32 %v1041
    %vm1048 = vmor %vm1046, %vm1047
    %v1049 = vsel %vm1048, %v1041, %v1045
    %v1050 = vand.u32 2147483647, %v1019
    %vm1051 = vcmp.eq.f32.partialorder %v1050, 8.507059e+37
    %v1052 = vand.u32 %v1019, 2147483648
    %v1053 = vor.u32 1.1754944e-38, %v1052
    %v1054 = vsel %vm1051, %v1053, %v1049
    %v1055 = vmul.f32 %v1002, %v1054
    %v1056 = vrcp.pop %v1022
    %v1057 = vmul.f32 %v1022, %v1056
    %v1058 = vsub.f32 1.0, %v1057
    %v1059 = vmul.f32 %v1056, %v1058
    %v1060 = vadd.f32 %v1056, %v1059
    %vm1061 = vweird.f32 %v1022
    %vm1062 = vweird.f32 %v1056
    %vm1063 = vmor %vm1061, %vm1062
    %v1064 = vsel %vm1063, %v1056, %v1060
    %v1065 = vand.u32 2147483647, %v1022
    %vm1066 = vcmp.eq.f32.partialorder %v1065, 8.507059e+37
    %v1067 = vand.u32 %v1022, 2147483648
    %v1068 = vor.u32 1.1754944e-38, %v1067
    %v1069 = vsel %vm1066, %v1068, %v1064
    %v1070 = vmul.f32 %v1004, %v1069
    %v1071 = vrcp.pop %v1025
    %v1072 = vmul.f32 %v1025, %v1071
    %v1073 = vsub.f32 1.0, %v1072
    %v1074 = vmul.f32 %v1071, %v1073
    %v1075 = vadd.f32 %v1071, %v1074
    %vm1076 = vweird.f32 %v1025
    %vm1077 = vweird.f32 %v1071
    %vm1078 = vmor %vm1076, %vm1077
    %v1079 = vsel %vm1078, %v1071, %v1075
    %v1080 = vand.u32 2147483647, %v1025
    %vm1081 = vcmp.eq.f32.partialorder %v1080, 8.507059e+37
    %v1082 = vand.u32 %v1025, 2147483648
    %v1083 = vor.u32 1.1754944e-38, %v1082
    %v1084 = vsel %vm1081, %v1083, %v1079
    %v1085 = vmul.f32 %v1006, %v1084
    %v1086 = vrcp.pop %v1028
    %v1087 = vmul.f32 %v1028, %v1086
    %v1088 = vsub.f32 1.0, %v1087
    %v1089 = vmul.f32 %v1086, %v1088
    %v1090 = vadd.f32 %v1086, %v1089
    %vm1091 = vweird.f32 %v1028
    %vm1092 = vweird.f32 %v1086
    %vm1093 = vmor %vm1091, %vm1092
    %v1094 = vsel %vm1093, %v1086, %v1090
    %v1095 = vand.u32 2147483647, %v1028
    %vm1096 = vcmp.eq.f32.partialorder %v1095, 8.507059e+37
    %v1097 = vand.u32 %v1028, 2147483648
    %v1098 = vor.u32 1.1754944e-38, %v1097
    %v1099 = vsel %vm1096, %v1098, %v1094
    %v1100 = vmul.f32 %v1008, %v1099
    %v1101 = vrcp.pop %v1031
    %v1102 = vmul.f32 %v1031, %v1101
    %v1103 = vsub.f32 1.0, %v1102
    %v1104 = vmul.f32 %v1101, %v1103
    %v1105 = vadd.f32 %v1101, %v1104
    %vm1106 = vweird.f32 %v1031
    %vm1107 = vweird.f32 %v1101
    %vm1108 = vmor %vm1106, %vm1107
    %v1109 = vsel %vm1108, %v1101, %v1105
    %v1110 = vand.u32 2147483647, %v1031
    %vm1111 = vcmp.eq.f32.partialorder %v1110, 8.507059e+37
    %v1112 = vand.u32 %v1031, 2147483648
    %v1113 = vor.u32 1.1754944e-38, %v1112
    %v1114 = vsel %vm1111, %v1113, %v1109
    %v1115 = vmul.f32 %v1010, %v1114
    %v1116 = vrcp.pop %v1034
    %v1117 = vmul.f32 %v1034, %v1116
    %v1118 = vsub.f32 1.0, %v1117
    %v1119 = vmul.f32 %v1116, %v1118
    %v1120 = vadd.f32 %v1116, %v1119
    %vm1121 = vweird.f32 %v1034
    %vm1122 = vweird.f32 %v1116
    %vm1123 = vmor %vm1121, %vm1122
    %v1124 = vsel %vm1123, %v1116, %v1120
    %v1125 = vand.u32 2147483647, %v1034
    %vm1126 = vcmp.eq.f32.partialorder %v1125, 8.507059e+37
    %v1127 = vand.u32 %v1034, 2147483648
    %v1128 = vor.u32 1.1754944e-38, %v1127
    %v1129 = vsel %vm1126, %v1128, %v1124
    %v1130 = vmul.f32 %v1012, %v1129
    %v1131 = vrcp.pop %v1037
    %v1132 = vmul.f32 %v1037, %v1131
    %v1133 = vsub.f32 1.0, %v1132
    %v1134 = vmul.f32 %v1131, %v1133
    %v1135 = vadd.f32 %v1131, %v1134
    %vm1136 = vweird.f32 %v1037
    %vm1137 = vweird.f32 %v1131
    %vm1138 = vmor %vm1136, %vm1137
    %v1139 = vsel %vm1138, %v1131, %v1135
    %v1140 = vand.u32 2147483647, %v1037
    %vm1141 = vcmp.eq.f32.partialorder %v1140, 8.507059e+37
    %v1142 = vand.u32 %v1037, 2147483648
    %v1143 = vor.u32 1.1754944e-38, %v1142
    %v1144 = vsel %vm1141, %v1143, %v1139
    %v1145 = vmul.f32 %v1014, %v1144
    %v1146 = vrcp.pop %v1040
    %v1147 = vmul.f32 %v1040, %v1146
    %v1148 = vsub.f32 1.0, %v1147
    %v1149 = vmul.f32 %v1146, %v1148
    %v1150 = vadd.f32 %v1146, %v1149
    %vm1151 = vweird.f32 %v1040
    %vm1152 = vweird.f32 %v1146
    %vm1153 = vmor %vm1151, %vm1152
    %v1154 = vsel %vm1153, %v1146, %v1150
    %v1155 = vand.u32 2147483647, %v1040
    %vm1156 = vcmp.eq.f32.partialorder %v1155, 8.507059e+37
    %v1157 = vand.u32 %v1040, 2147483648
    %v1158 = vor.u32 1.1754944e-38, %v1157
    %v1159 = vsel %vm1156, %v1158, %v1154
    %v1160 = vmul.f32 %v1016, %v1159
    %1161 = vrot.lane.b32.xlu0 %v308, 56
    %v1162 = vpop.permute.xlu0 %1161
    %1163 = vrot.lane.b32.xlu0 %v311, 56
    %v1164 = vpop.permute.xlu0 %1163
    %v1168 = vsel %vm480, %v1055, 0
    %v1171 = vsel %vm480, %v1070, 0
    %1173 = vmatpush.msra.mxu0 0.0
    %1174 = vmatpush.msra.mxu0 0.0
    %1175 = vmatpush.msra.mxu0 0.0
    %1176 = vmatpush.msra.mxu0 0.0
    %1177 = vmatpush.msra.mxu0 0.0
    %1178 = vmatpush.msra.mxu0 0.0
    %1179 = vmatpush.msra.mxu0 0.0
    %1180 = vmatpush.msra.mxu0 0.0
    %1181 = vmatpush.msra.mxu0 0.0
    %1182 = vmatpush.msra.mxu0 0.0
    %1183 = vmatpush.msra.mxu0 0.0
    %1184 = vmatpush.msra.mxu0 0.0
    %1185 = vmatpush.msra.mxu0 0.0
    %1186 = vmatpush.msra.mxu0 0.0
    %1187 = vmatpush.msra.mxu0 %v1164
    %1188 = vmatpush.msra.mxu0 %v1162
    %1189 = vmatmul.f32.gmra.mxu0 %v1168
    %v1190 = vpop.f32.mrf.mxu0
    %v1191 = vadd.f32 0.0, %v1190
    %1192 = vmatmul.f32.gmra.mxu0 %v1171
    %v1193 = vpop.f32.mrf.mxu0
    %v1194 = vadd.f32 0.0, %v1193
    %1195 = vdwg.mxu0
    %1196 = vrot.lane.b32.xlu0 %v314, 56
    %v1197 = vpop.permute.xlu0 %1196
    %1198 = vrot.lane.b32.xlu0 %v317, 56
    %v1199 = vpop.permute.xlu0 %1198
    %v1203 = vsel %vm480, %v1085, 0
    %v1206 = vsel %vm480, %v1100, 0
    %1208 = vmatpush.msra.mxu0 0.0
    %1209 = vmatpush.msra.mxu0 0.0
    %1210 = vmatpush.msra.mxu0 0.0
    %1211 = vmatpush.msra.mxu0 0.0
    %1212 = vmatpush.msra.mxu0 0.0
    %1213 = vmatpush.msra.mxu0 0.0
    %1214 = vmatpush.msra.mxu0 0.0
    %1215 = vmatpush.msra.mxu0 0.0
    %1216 = vmatpush.msra.mxu0 0.0
    %1217 = vmatpush.msra.mxu0 0.0
    %1218 = vmatpush.msra.mxu0 0.0
    %1219 = vmatpush.msra.mxu0 0.0
    %1220 = vmatpush.msra.mxu0 0.0
    %1221 = vmatpush.msra.mxu0 0.0
    %1222 = vmatpush.msra.mxu0 %v1199
    %1223 = vmatpush.msra.mxu0 %v1197
    %1224 = vmatmul.f32.gmra.mxu0 %v1203
    %v1225 = vpop.f32.mrf.mxu0
    %v1226 = vadd.f32 0.0, %v1225
    %1227 = vmatmul.f32.gmra.mxu0 %v1206
    %v1228 = vpop.f32.mrf.mxu0
    %v1229 = vadd.f32 0.0, %v1228
    %1230 = vdwg.mxu0
    %1231 = vrot.lane.b32.xlu0 %v320, 56
    %v1232 = vpop.permute.xlu0 %1231
    %1233 = vrot.lane.b32.xlu0 %v323, 56
    %v1234 = vpop.permute.xlu0 %1233
    %v1238 = vsel %vm480, %v1115, 0
    %v1241 = vsel %vm480, %v1130, 0
    %1243 = vmatpush.msra.mxu0 0.0
    %1244 = vmatpush.msra.mxu0 0.0
    %1245 = vmatpush.msra.mxu0 0.0
    %1246 = vmatpush.msra.mxu0 0.0
    %1247 = vmatpush.msra.mxu0 0.0
    %1248 = vmatpush.msra.mxu0 0.0
    %1249 = vmatpush.msra.mxu0 0.0
    %1250 = vmatpush.msra.mxu0 0.0
    %1251 = vmatpush.msra.mxu0 0.0
    %1252 = vmatpush.msra.mxu0 0.0
    %1253 = vmatpush.msra.mxu0 0.0
    %1254 = vmatpush.msra.mxu0 0.0
    %1255 = vmatpush.msra.mxu0 0.0
    %1256 = vmatpush.msra.mxu0 0.0
    %1257 = vmatpush.msra.mxu0 %v1234
    %1258 = vmatpush.msra.mxu0 %v1232
    %1259 = vmatmul.f32.gmra.mxu0 %v1238
    %v1260 = vpop.f32.mrf.mxu0
    %v1261 = vadd.f32 0.0, %v1260
    %1262 = vmatmul.f32.gmra.mxu0 %v1241
    %v1263 = vpop.f32.mrf.mxu0
    %v1264 = vadd.f32 0.0, %v1263
    %1265 = vdwg.mxu0
    %1266 = vrot.lane.b32.xlu0 %v326, 56
    %v1267 = vpop.permute.xlu0 %1266
    %1268 = vrot.lane.b32.xlu0 %v329, 56
    %v1269 = vpop.permute.xlu0 %1268
    %v1273 = vsel %vm480, %v1145, 0
    %v1276 = vsel %vm480, %v1160, 0
    %1278 = vmatpush.msra.mxu0 0.0
    %1279 = vmatpush.msra.mxu0 0.0
    %1280 = vmatpush.msra.mxu0 0.0
    %1281 = vmatpush.msra.mxu0 0.0
    %1282 = vmatpush.msra.mxu0 0.0
    %1283 = vmatpush.msra.mxu0 0.0
    %1284 = vmatpush.msra.mxu0 0.0
    %1285 = vmatpush.msra.mxu0 0.0
    %1286 = vmatpush.msra.mxu0 0.0
    %1287 = vmatpush.msra.mxu0 0.0
    %1288 = vmatpush.msra.mxu0 0.0
    %1289 = vmatpush.msra.mxu0 0.0
    %1290 = vmatpush.msra.mxu0 0.0
    %1291 = vmatpush.msra.mxu0 0.0
    %1292 = vmatpush.msra.mxu0 %v1269
    %1293 = vmatpush.msra.mxu0 %v1267
    %1294 = vmatmul.f32.gmra.mxu0 %v1273
    %v1295 = vpop.f32.mrf.mxu0
    %v1296 = vadd.f32 0.0, %v1295
    %1297 = vmatmul.f32.gmra.mxu0 %v1276
    %v1298 = vpop.f32.mrf.mxu0
    %v1299 = vadd.f32 0.0, %v1298
    %1300 = vdwg.mxu0
    %v1302 = vsel %vm337, %v1191, 0
    %v1305 = vsel %vm337, %v1194, 0
    %v1308 = vsel %vm337, %v1226, 0
    %v1311 = vsel %vm337, %v1229, 0
    %v1314 = vsel %vm337, %v1261, 0
    %v1317 = vsel %vm337, %v1264, 0
    %v1320 = vsel %vm337, %v1296, 0
    %v1323 = vsel %vm337, %v1299, 0
    %1325 = vmatpush.msra.mxu0 0.0
    %1326 = vmatpush.msra.mxu0 0.0
    %1327 = vmatpush.msra.mxu0 0.0
    %1328 = vmatpush.msra.mxu0 0.0
    %1329 = vmatpush.msra.mxu0 0.0
    %1330 = vmatpush.msra.mxu0 0.0
    %1331 = vmatpush.msra.mxu0 0.0
    %1332 = vmatpush.msra.mxu0 0.0
    %1333 = vmatpush.msra.mxu0 0.0
    %1334 = vmatpush.msra.mxu0 0.0
    %1335 = vmatpush.msra.mxu0 0.0
    %1336 = vmatpush.msra.mxu0 0.0
    %1337 = vmatpush.msra.mxu0 0.0
    %1338 = vmatpush.msra.mxu0 0.0
    %1339 = vmatpush.msra.mxu0 0.0
    %1340 = vmatpush.msra.mxu0 %v51
    %1341 = vmatmul.f32.gmra.mxu0 %v1302
    %v1342 = vpop.f32.mrf.mxu0
    %v1343 = vadd.f32 0.0, %v1342
    %1344 = vmatmul.f32.gmra.mxu0 %v1305
    %v1345 = vpop.f32.mrf.mxu0
    %v1346 = vadd.f32 0.0, %v1345
    %1347 = vmatmul.f32.gmra.mxu0 %v1308
    %v1348 = vpop.f32.mrf.mxu0
    %v1349 = vadd.f32 0.0, %v1348
    %1350 = vmatmul.f32.gmra.mxu0 %v1311
    %v1351 = vpop.f32.mrf.mxu0
    %v1352 = vadd.f32 0.0, %v1351
    %1353 = vmatmul.f32.gmra.mxu0 %v1314
    %v1354 = vpop.f32.mrf.mxu0
    %v1355 = vadd.f32 0.0, %v1354
    %1356 = vmatmul.f32.gmra.mxu0 %v1317
    %v1357 = vpop.f32.mrf.mxu0
    %v1358 = vadd.f32 0.0, %v1357
    %1359 = vmatmul.f32.gmra.mxu0 %v1320
    %v1360 = vpop.f32.mrf.mxu0
    %v1361 = vadd.f32 0.0, %v1360
    %1362 = vmatmul.f32.gmra.mxu0 %v1323
    %v1363 = vpop.f32.mrf.mxu0
    %v1364 = vadd.f32 0.0, %v1363
    %1365 = vdwg.mxu0
    %v1367 = vsel %vm337, %v703, 0
    %v1370 = vsel %vm337, %v706, 0
    %v1373 = vsel %vm337, %v738, 0
    %v1376 = vsel %vm337, %v741, 0
    %v1379 = vsel %vm337, %v773, 0
    %v1382 = vsel %vm337, %v776, 0
    %v1385 = vsel %vm337, %v808, 0
    %v1388 = vsel %vm337, %v811, 0
    %1390 = vmatpush.msra.mxu0 0.0
    %1391 = vmatpush.msra.mxu0 0.0
    %1392 = vmatpush.msra.mxu0 0.0
    %1393 = vmatpush.msra.mxu0 0.0
    %1394 = vmatpush.msra.mxu0 0.0
    %1395 = vmatpush.msra.mxu0 0.0
    %1396 = vmatpush.msra.mxu0 0.0
    %1397 = vmatpush.msra.mxu0 0.0
    %1398 = vmatpush.msra.mxu0 0.0
    %1399 = vmatpush.msra.mxu0 0.0
    %1400 = vmatpush.msra.mxu0 0.0
    %1401 = vmatpush.msra.mxu0 0.0
    %1402 = vmatpush.msra.mxu0 0.0
    %1403 = vmatpush.msra.mxu0 0.0
    %1404 = vmatpush.msra.mxu0 0.0
    %1405 = vmatpush.msra.mxu0 %v50
    %1406 = vmatmul.f32.gmra.mxu0 %v1367
    %v1407 = vpop.f32.mrf.mxu0
    %v1408 = vadd.f32 %v1343, %v1407
    %1409 = vmatmul.f32.gmra.mxu0 %v1370
    %v1410 = vpop.f32.mrf.mxu0
    %v1411 = vadd.f32 %v1346, %v1410
    %1412 = vmatmul.f32.gmra.mxu0 %v1373
    %v1413 = vpop.f32.mrf.mxu0
    %v1414 = vadd.f32 %v1349, %v1413
    %1415 = vmatmul.f32.gmra.mxu0 %v1376
    %v1416 = vpop.f32.mrf.mxu0
    %v1417 = vadd.f32 %v1352, %v1416
    %1418 = vmatmul.f32.gmra.mxu0 %v1379
    %v1419 = vpop.f32.mrf.mxu0
    %v1420 = vadd.f32 %v1355, %v1419
    %1421 = vmatmul.f32.gmra.mxu0 %v1382
    %v1422 = vpop.f32.mrf.mxu0
    %v1423 = vadd.f32 %v1358, %v1422
    %1424 = vmatmul.f32.gmra.mxu0 %v1385
    %v1425 = vpop.f32.mrf.mxu0
    %v1426 = vadd.f32 %v1361, %v1425
    %1427 = vmatmul.f32.gmra.mxu0 %v1388
    %v1428 = vpop.f32.mrf.mxu0
    %v1429 = vadd.f32 %v1364, %v1428
    %1430 = vdwg.mxu0
    %1431 = vrot.lane.b32.xlu0 %v308, 112
    %v1432 = vpop.permute.xlu0 %1431
    %1433 = vrot.lane.b32.xlu0 %v311, 112
    %v1434 = vpop.permute.xlu0 %1433
    %1435 = vrot.lane.b32.xlu0 %v308, 80
    %v1436 = vpop.permute.xlu0 %1435
    %1437 = vrot.lane.b32.xlu0 %v311, 80
    %v1438 = vpop.permute.xlu0 %1437
    %v1439 = vsel %vm337, %v1432, 0
    %v1441 = vsel %vm337, %v1434, 0
    %v1443 = vsel %vm337, %v1436, 0
    %v1445 = vsel %vm337, %v1438, 0
    %1447 = vmatpush.xpose.msra.mxu0 0.0
    %1448 = vmatpush.xpose.msra.mxu0 0.0
    %1449 = vmatpush.xpose.msra.mxu0 0.0
    %1450 = vmatpush.xpose.msra.mxu0 0.0
    %1451 = vmatpush.xpose.msra.mxu0 0.0
    %1452 = vmatpush.xpose.msra.mxu0 0.0
    %1453 = vmatpush.xpose.msra.mxu0 0.0
    %1454 = vmatpush.xpose.msra.mxu0 0.0
    %1455 = vmatpush.xpose.msra.mxu0 0.0
    %1456 = vmatpush.xpose.msra.mxu0 0.0
    %1457 = vmatpush.xpose.msra.mxu0 0.0
    %1458 = vmatpush.xpose.msra.mxu0 0.0
    %1459 = vmatpush.xpose.msra.mxu0 0.0
    %1460 = vmatpush.xpose.msra.mxu0 0.0
    %1461 = vmatpush.xpose.msra.mxu0 %v1445
    %1462 = vmatpush.xpose.msra.mxu0 %v1443
    %1463 = vmatmul.f32.gmra.mxu0 %v1439
    %v1464 = vpop.f32.mrf.mxu0
    %v1465 = vadd.f32 0.0, %v1464
    %1466 = vmatmul.f32.gmra.mxu0 %v1441
    %v1467 = vpop.f32.mrf.mxu0
    %v1468 = vadd.f32 0.0, %v1467
    %1469 = vdwg.mxu0
    %1470 = vrot.lane.b32.xlu0 %v314, 112
    %v1471 = vpop.permute.xlu0 %1470
    %1472 = vrot.lane.b32.xlu0 %v317, 112
    %v1473 = vpop.permute.xlu0 %1472
    %1474 = vrot.lane.b32.xlu0 %v314, 80
    %v1475 = vpop.permute.xlu0 %1474
    %1476 = vrot.lane.b32.xlu0 %v317, 80
    %v1477 = vpop.permute.xlu0 %1476
    %v1478 = vsel %vm337, %v1471, 0
    %v1480 = vsel %vm337, %v1473, 0
    %v1482 = vsel %vm337, %v1475, 0
    %v1484 = vsel %vm337, %v1477, 0
    %1486 = vmatpush.xpose.msra.mxu0 0.0
    %1487 = vmatpush.xpose.msra.mxu0 0.0
    %1488 = vmatpush.xpose.msra.mxu0 0.0
    %1489 = vmatpush.xpose.msra.mxu0 0.0
    %1490 = vmatpush.xpose.msra.mxu0 0.0
    %1491 = vmatpush.xpose.msra.mxu0 0.0
    %1492 = vmatpush.xpose.msra.mxu0 0.0
    %1493 = vmatpush.xpose.msra.mxu0 0.0
    %1494 = vmatpush.xpose.msra.mxu0 0.0
    %1495 = vmatpush.xpose.msra.mxu0 0.0
    %1496 = vmatpush.xpose.msra.mxu0 0.0
    %1497 = vmatpush.xpose.msra.mxu0 0.0
    %1498 = vmatpush.xpose.msra.mxu0 0.0
    %1499 = vmatpush.xpose.msra.mxu0 0.0
    %1500 = vmatpush.xpose.msra.mxu0 %v1484
    %1501 = vmatpush.xpose.msra.mxu0 %v1482
    %1502 = vmatmul.f32.gmra.mxu0 %v1478
    %v1503 = vpop.f32.mrf.mxu0
    %v1504 = vadd.f32 0.0, %v1503
    %1505 = vmatmul.f32.gmra.mxu0 %v1480
    %v1506 = vpop.f32.mrf.mxu0
    %v1507 = vadd.f32 0.0, %v1506
    %1508 = vdwg.mxu0
    %1509 = vrot.lane.b32.xlu0 %v320, 112
    %v1510 = vpop.permute.xlu0 %1509
    %1511 = vrot.lane.b32.xlu0 %v323, 112
    %v1512 = vpop.permute.xlu0 %1511
    %1513 = vrot.lane.b32.xlu0 %v320, 80
    %v1514 = vpop.permute.xlu0 %1513
    %1515 = vrot.lane.b32.xlu0 %v323, 80
    %v1516 = vpop.permute.xlu0 %1515
    %v1517 = vsel %vm337, %v1510, 0
    %v1519 = vsel %vm337, %v1512, 0
    %v1521 = vsel %vm337, %v1514, 0
    %v1523 = vsel %vm337, %v1516, 0
    %1525 = vmatpush.xpose.msra.mxu0 0.0
    %1526 = vmatpush.xpose.msra.mxu0 0.0
    %1527 = vmatpush.xpose.msra.mxu0 0.0
    %1528 = vmatpush.xpose.msra.mxu0 0.0
    %1529 = vmatpush.xpose.msra.mxu0 0.0
    %1530 = vmatpush.xpose.msra.mxu0 0.0
    %1531 = vmatpush.xpose.msra.mxu0 0.0
    %1532 = vmatpush.xpose.msra.mxu0 0.0
    %1533 = vmatpush.xpose.msra.mxu0 0.0
    %1534 = vmatpush.xpose.msra.mxu0 0.0
    %1535 = vmatpush.xpose.msra.mxu0 0.0
    %1536 = vmatpush.xpose.msra.mxu0 0.0
    %1537 = vmatpush.xpose.msra.mxu0 0.0
    %1538 = vmatpush.xpose.msra.mxu0 0.0
    %1539 = vmatpush.xpose.msra.mxu0 %v1523
    %1540 = vmatpush.xpose.msra.mxu0 %v1521
    %1541 = vmatmul.f32.gmra.mxu0 %v1517
    %v1542 = vpop.f32.mrf.mxu0
    %v1543 = vadd.f32 0.0, %v1542
    %1544 = vmatmul.f32.gmra.mxu0 %v1519
    %v1545 = vpop.f32.mrf.mxu0
    %v1546 = vadd.f32 0.0, %v1545
    %1547 = vdwg.mxu0
    %1548 = vrot.lane.b32.xlu0 %v326, 112
    %v1549 = vpop.permute.xlu0 %1548
    %1550 = vrot.lane.b32.xlu0 %v329, 112
    %v1551 = vpop.permute.xlu0 %1550
    %1552 = vrot.lane.b32.xlu0 %v326, 80
    %v1553 = vpop.permute.xlu0 %1552
    %1554 = vrot.lane.b32.xlu0 %v329, 80
    %v1555 = vpop.permute.xlu0 %1554
    %v1556 = vsel %vm337, %v1549, 0
    %v1558 = vsel %vm337, %v1551, 0
    %v1560 = vsel %vm337, %v1553, 0
    %v1562 = vsel %vm337, %v1555, 0
    %1564 = vmatpush.xpose.msra.mxu0 0.0
    %1565 = vmatpush.xpose.msra.mxu0 0.0
    %1566 = vmatpush.xpose.msra.mxu0 0.0
    %1567 = vmatpush.xpose.msra.mxu0 0.0
    %1568 = vmatpush.xpose.msra.mxu0 0.0
    %1569 = vmatpush.xpose.msra.mxu0 0.0
    %1570 = vmatpush.xpose.msra.mxu0 0.0
    %1571 = vmatpush.xpose.msra.mxu0 0.0
    %1572 = vmatpush.xpose.msra.mxu0 0.0
    %1573 = vmatpush.xpose.msra.mxu0 0.0
    %1574 = vmatpush.xpose.msra.mxu0 0.0
    %1575 = vmatpush.xpose.msra.mxu0 0.0
    %1576 = vmatpush.xpose.msra.mxu0 0.0
    %1577 = vmatpush.xpose.msra.mxu0 0.0
    %1578 = vmatpush.xpose.msra.mxu0 %v1562
    %1579 = vmatpush.xpose.msra.mxu0 %v1560
    %1580 = vmatmul.f32.gmra.mxu0 %v1556
    %v1581 = vpop.f32.mrf.mxu0
    %v1582 = vadd.f32 0.0, %v1581
    %1583 = vmatmul.f32.gmra.mxu0 %v1558
    %v1584 = vpop.f32.mrf.mxu0
    %v1585 = vadd.f32 0.0, %v1584
    %1586 = vdwg.mxu0
    %v1587 = vsel %vm480, %v1465, -inf
    %1588 = vmax.xlane.f32.xlu0 %v1587
    %v1589 = vpop.xlane.xlu0 %1588
    %v1590 = vsel %vm480, %v1468, -inf
    %1591 = vmax.xlane.f32.xlu0 %v1590
    %v1592 = vpop.xlane.xlu0 %1591
    %v1593 = vsel %vm480, %v1504, -inf
    %1594 = vmax.xlane.f32.xlu0 %v1593
    %v1595 = vpop.xlane.xlu0 %1594
    %v1596 = vsel %vm480, %v1507, -inf
    %1597 = vmax.xlane.f32.xlu0 %v1596
    %v1598 = vpop.xlane.xlu0 %1597
    %v1599 = vsel %vm480, %v1543, -inf
    %1600 = vmax.xlane.f32.xlu0 %v1599
    %v1601 = vpop.xlane.xlu0 %1600
    %v1602 = vsel %vm480, %v1546, -inf
    %1603 = vmax.xlane.f32.xlu0 %v1602
    %v1604 = vpop.xlane.xlu0 %1603
    %v1605 = vsel %vm480, %v1582, -inf
    %1606 = vmax.xlane.f32.xlu0 %v1605
    %v1607 = vpop.xlane.xlu0 %1606
    %v1608 = vsel %vm480, %v1585, -inf
    %1609 = vmax.xlane.f32.xlu0 %v1608
    %v1610 = vpop.xlane.xlu0 %1609
    %v1611 = vsub.f32 %v1465, %v1589
    %v1612 = vsub.f32 %v1468, %v1592
    %v1613 = vsub.f32 %v1504, %v1595
    %v1614 = vsub.f32 %v1507, %v1598
    %v1615 = vsub.f32 %v1543, %v1601
    %v1616 = vsub.f32 %v1546, %v1604
    %v1617 = vsub.f32 %v1582, %v1607
    %v1618 = vsub.f32 %v1585, %v1610
    %v1619 = vmul.f32 %v1611, 1.442695
    %v1620 = vpow.pop %v1619
    %v1621 = vmul.f32 %v1612, 1.442695
    %v1622 = vpow.pop %v1621
    %v1623 = vmul.f32 %v1613, 1.442695
    %v1624 = vpow.pop %v1623
    %v1625 = vmul.f32 %v1614, 1.442695
    %v1626 = vpow.pop %v1625
    %v1627 = vmul.f32 %v1615, 1.442695
    %v1628 = vpow.pop %v1627
    %v1629 = vmul.f32 %v1616, 1.442695
    %v1630 = vpow.pop %v1629
    %v1631 = vmul.f32 %v1617, 1.442695
    %v1632 = vpow.pop %v1631
    %v1633 = vmul.f32 %v1618, 1.442695
    %v1634 = vpow.pop %v1633
    %v1635 = vsel %vm480, %v1620, 0.0
    %1636 = vadd.xlane.f32.xlu0 %v1635
    %v1637 = vpop.xlane.xlu0 %1636
    %v1638 = vsel %vm480, %v1622, 0.0
    %1639 = vadd.xlane.f32.xlu0 %v1638
    %v1640 = vpop.xlane.xlu0 %1639
    %v1641 = vsel %vm480, %v1624, 0.0
    %1642 = vadd.xlane.f32.xlu0 %v1641
    %v1643 = vpop.xlane.xlu0 %1642
    %v1644 = vsel %vm480, %v1626, 0.0
    %1645 = vadd.xlane.f32.xlu0 %v1644
    %v1646 = vpop.xlane.xlu0 %1645
    %v1647 = vsel %vm480, %v1628, 0.0
    %1648 = vadd.xlane.f32.xlu0 %v1647
    %v1649 = vpop.xlane.xlu0 %1648
    %v1650 = vsel %vm480, %v1630, 0.0
    %1651 = vadd.xlane.f32.xlu0 %v1650
    %v1652 = vpop.xlane.xlu0 %1651
    %v1653 = vsel %vm480, %v1632, 0.0
    %1654 = vadd.xlane.f32.xlu0 %v1653
    %v1655 = vpop.xlane.xlu0 %1654
    %v1656 = vsel %vm480, %v1634, 0.0
    %1657 = vadd.xlane.f32.xlu0 %v1656
    %v1658 = vpop.xlane.xlu0 %1657
    %v1659 = vrcp.pop %v1637
    %v1660 = vmul.f32 %v1637, %v1659
    %v1661 = vsub.f32 1.0, %v1660
    %v1662 = vmul.f32 %v1659, %v1661
    %v1663 = vadd.f32 %v1659, %v1662
    %vm1664 = vweird.f32 %v1637
    %vm1665 = vweird.f32 %v1659
    %vm1666 = vmor %vm1664, %vm1665
    %v1667 = vsel %vm1666, %v1659, %v1663
    %v1668 = vand.u32 2147483647, %v1637
    %vm1669 = vcmp.eq.f32.partialorder %v1668, 8.507059e+37
    %v1670 = vand.u32 %v1637, 2147483648
    %v1671 = vor.u32 1.1754944e-38, %v1670
    %v1672 = vsel %vm1669, %v1671, %v1667
    %v1673 = vmul.f32 %v1620, %v1672
    %v1674 = vrcp.pop %v1640
    %v1675 = vmul.f32 %v1640, %v1674
    %v1676 = vsub.f32 1.0, %v1675
    %v1677 = vmul.f32 %v1674, %v1676
    %v1678 = vadd.f32 %v1674, %v1677
    %vm1679 = vweird.f32 %v1640
    %vm1680 = vweird.f32 %v1674
    %vm1681 = vmor %vm1679, %vm1680
    %v1682 = vsel %vm1681, %v1674, %v1678
    %v1683 = vand.u32 2147483647, %v1640
    %vm1684 = vcmp.eq.f32.partialorder %v1683, 8.507059e+37
    %v1685 = vand.u32 %v1640, 2147483648
    %v1686 = vor.u32 1.1754944e-38, %v1685
    %v1687 = vsel %vm1684, %v1686, %v1682
    %v1688 = vmul.f32 %v1622, %v1687
    %v1689 = vrcp.pop %v1643
    %v1690 = vmul.f32 %v1643, %v1689
    %v1691 = vsub.f32 1.0, %v1690
    %v1692 = vmul.f32 %v1689, %v1691
    %v1693 = vadd.f32 %v1689, %v1692
    %vm1694 = vweird.f32 %v1643
    %vm1695 = vweird.f32 %v1689
    %vm1696 = vmor %vm1694, %vm1695
    %v1697 = vsel %vm1696, %v1689, %v1693
    %v1698 = vand.u32 2147483647, %v1643
    %vm1699 = vcmp.eq.f32.partialorder %v1698, 8.507059e+37
    %v1700 = vand.u32 %v1643, 2147483648
    %v1701 = vor.u32 1.1754944e-38, %v1700
    %v1702 = vsel %vm1699, %v1701, %v1697
    %v1703 = vmul.f32 %v1624, %v1702
    %v1704 = vrcp.pop %v1646
    %v1705 = vmul.f32 %v1646, %v1704
    %v1706 = vsub.f32 1.0, %v1705
    %v1707 = vmul.f32 %v1704, %v1706
    %v1708 = vadd.f32 %v1704, %v1707
    %vm1709 = vweird.f32 %v1646
    %vm1710 = vweird.f32 %v1704
    %vm1711 = vmor %vm1709, %vm1710
    %v1712 = vsel %vm1711, %v1704, %v1708
    %v1713 = vand.u32 2147483647, %v1646
    %vm1714 = vcmp.eq.f32.partialorder %v1713, 8.507059e+37
    %v1715 = vand.u32 %v1646, 2147483648
    %v1716 = vor.u32 1.1754944e-38, %v1715
    %v1717 = vsel %vm1714, %v1716, %v1712
    %v1718 = vmul.f32 %v1626, %v1717
    %v1719 = vrcp.pop %v1649
    %v1720 = vmul.f32 %v1649, %v1719
    %v1721 = vsub.f32 1.0, %v1720
    %v1722 = vmul.f32 %v1719, %v1721
    %v1723 = vadd.f32 %v1719, %v1722
    %vm1724 = vweird.f32 %v1649
    %vm1725 = vweird.f32 %v1719
    %vm1726 = vmor %vm1724, %vm1725
    %v1727 = vsel %vm1726, %v1719, %v1723
    %v1728 = vand.u32 2147483647, %v1649
    %vm1729 = vcmp.eq.f32.partialorder %v1728, 8.507059e+37
    %v1730 = vand.u32 %v1649, 2147483648
    %v1731 = vor.u32 1.1754944e-38, %v1730
    %v1732 = vsel %vm1729, %v1731, %v1727
    %v1733 = vmul.f32 %v1628, %v1732
    %v1734 = vrcp.pop %v1652
    %v1735 = vmul.f32 %v1652, %v1734
    %v1736 = vsub.f32 1.0, %v1735
    %v1737 = vmul.f32 %v1734, %v1736
    %v1738 = vadd.f32 %v1734, %v1737
    %vm1739 = vweird.f32 %v1652
    %vm1740 = vweird.f32 %v1734
    %vm1741 = vmor %vm1739, %vm1740
    %v1742 = vsel %vm1741, %v1734, %v1738
    %v1743 = vand.u32 2147483647, %v1652
    %vm1744 = vcmp.eq.f32.partialorder %v1743, 8.507059e+37
    %v1745 = vand.u32 %v1652, 2147483648
    %v1746 = vor.u32 1.1754944e-38, %v1745
    %v1747 = vsel %vm1744, %v1746, %v1742
    %v1748 = vmul.f32 %v1630, %v1747
    %v1749 = vrcp.pop %v1655
    %v1750 = vmul.f32 %v1655, %v1749
    %v1751 = vsub.f32 1.0, %v1750
    %v1752 = vmul.f32 %v1749, %v1751
    %v1753 = vadd.f32 %v1749, %v1752
    %vm1754 = vweird.f32 %v1655
    %vm1755 = vweird.f32 %v1749
    %vm1756 = vmor %vm1754, %vm1755
    %v1757 = vsel %vm1756, %v1749, %v1753
    %v1758 = vand.u32 2147483647, %v1655
    %vm1759 = vcmp.eq.f32.partialorder %v1758, 8.507059e+37
    %v1760 = vand.u32 %v1655, 2147483648
    %v1761 = vor.u32 1.1754944e-38, %v1760
    %v1762 = vsel %vm1759, %v1761, %v1757
    %v1763 = vmul.f32 %v1632, %v1762
    %v1764 = vrcp.pop %v1658
    %v1765 = vmul.f32 %v1658, %v1764
    %v1766 = vsub.f32 1.0, %v1765
    %v1767 = vmul.f32 %v1764, %v1766
    %v1768 = vadd.f32 %v1764, %v1767
    %vm1769 = vweird.f32 %v1658
    %vm1770 = vweird.f32 %v1764
    %vm1771 = vmor %vm1769, %vm1770
    %v1772 = vsel %vm1771, %v1764, %v1768
    %v1773 = vand.u32 2147483647, %v1658
    %vm1774 = vcmp.eq.f32.partialorder %v1773, 8.507059e+37
    %v1775 = vand.u32 %v1658, 2147483648
    %v1776 = vor.u32 1.1754944e-38, %v1775
    %v1777 = vsel %vm1774, %v1776, %v1772
    %v1778 = vmul.f32 %v1634, %v1777
    %1779 = vrot.lane.b32.xlu0 %v308, 48
    %v1780 = vpop.permute.xlu0 %1779
    %1781 = vrot.lane.b32.xlu0 %v311, 48
    %v1782 = vpop.permute.xlu0 %1781
    %v1786 = vsel %vm480, %v1673, 0
    %v1789 = vsel %vm480, %v1688, 0
    %1791 = vmatpush.msra.mxu0 0.0
    %1792 = vmatpush.msra.mxu0 0.0
    %1793 = vmatpush.msra.mxu0 0.0
    %1794 = vmatpush.msra.mxu0 0.0
    %1795 = vmatpush.msra.mxu0 0.0
    %1796 = vmatpush.msra.mxu0 0.0
    %1797 = vmatpush.msra.mxu0 0.0
    %1798 = vmatpush.msra.mxu0 0.0
    %1799 = vmatpush.msra.mxu0 0.0
    %1800 = vmatpush.msra.mxu0 0.0
    %1801 = vmatpush.msra.mxu0 0.0
    %1802 = vmatpush.msra.mxu0 0.0
    %1803 = vmatpush.msra.mxu0 0.0
    %1804 = vmatpush.msra.mxu0 0.0
    %1805 = vmatpush.msra.mxu0 %v1782
    %1806 = vmatpush.msra.mxu0 %v1780
    %1807 = vmatmul.f32.gmra.mxu0 %v1786
    %v1808 = vpop.f32.mrf.mxu0
    %v1809 = vadd.f32 0.0, %v1808
    %1810 = vmatmul.f32.gmra.mxu0 %v1789
    %v1811 = vpop.f32.mrf.mxu0
    %v1812 = vadd.f32 0.0, %v1811
    %1813 = vdwg.mxu0
    %1814 = vrot.lane.b32.xlu0 %v314, 48
    %v1815 = vpop.permute.xlu0 %1814
    %1816 = vrot.lane.b32.xlu0 %v317, 48
    %v1817 = vpop.permute.xlu0 %1816
    %v1821 = vsel %vm480, %v1703, 0
    %v1824 = vsel %vm480, %v1718, 0
    %1826 = vmatpush.msra.mxu0 0.0
    %1827 = vmatpush.msra.mxu0 0.0
    %1828 = vmatpush.msra.mxu0 0.0
    %1829 = vmatpush.msra.mxu0 0.0
    %1830 = vmatpush.msra.mxu0 0.0
    %1831 = vmatpush.msra.mxu0 0.0
    %1832 = vmatpush.msra.mxu0 0.0
    %1833 = vmatpush.msra.mxu0 0.0
    %1834 = vmatpush.msra.mxu0 0.0
    %1835 = vmatpush.msra.mxu0 0.0
    %1836 = vmatpush.msra.mxu0 0.0
    %1837 = vmatpush.msra.mxu0 0.0
    %1838 = vmatpush.msra.mxu0 0.0
    %1839 = vmatpush.msra.mxu0 0.0
    %1840 = vmatpush.msra.mxu0 %v1817
    %1841 = vmatpush.msra.mxu0 %v1815
    %1842 = vmatmul.f32.gmra.mxu0 %v1821
    %v1843 = vpop.f32.mrf.mxu0
    %v1844 = vadd.f32 0.0, %v1843
    %1845 = vmatmul.f32.gmra.mxu0 %v1824
    %v1846 = vpop.f32.mrf.mxu0
    %v1847 = vadd.f32 0.0, %v1846
    %1848 = vdwg.mxu0
    %1849 = vrot.lane.b32.xlu0 %v320, 48
    %v1850 = vpop.permute.xlu0 %1849
    %1851 = vrot.lane.b32.xlu0 %v323, 48
    %v1852 = vpop.permute.xlu0 %1851
    %v1856 = vsel %vm480, %v1733, 0
    %v1859 = vsel %vm480, %v1748, 0
    %1861 = vmatpush.msra.mxu0 0.0
    %1862 = vmatpush.msra.mxu0 0.0
    %1863 = vmatpush.msra.mxu0 0.0
    %1864 = vmatpush.msra.mxu0 0.0
    %1865 = vmatpush.msra.mxu0 0.0
    %1866 = vmatpush.msra.mxu0 0.0
    %1867 = vmatpush.msra.mxu0 0.0
    %1868 = vmatpush.msra.mxu0 0.0
    %1869 = vmatpush.msra.mxu0 0.0
    %1870 = vmatpush.msra.mxu0 0.0
    %1871 = vmatpush.msra.mxu0 0.0
    %1872 = vmatpush.msra.mxu0 0.0
    %1873 = vmatpush.msra.mxu0 0.0
    %1874 = vmatpush.msra.mxu0 0.0
    %1875 = vmatpush.msra.mxu0 %v1852
    %1876 = vmatpush.msra.mxu0 %v1850
    %1877 = vmatmul.f32.gmra.mxu0 %v1856
    %v1878 = vpop.f32.mrf.mxu0
    %v1879 = vadd.f32 0.0, %v1878
    %1880 = vmatmul.f32.gmra.mxu0 %v1859
    %v1881 = vpop.f32.mrf.mxu0
    %v1882 = vadd.f32 0.0, %v1881
    %1883 = vdwg.mxu0
    %1884 = vrot.lane.b32.xlu0 %v326, 48
    %v1885 = vpop.permute.xlu0 %1884
    %1886 = vrot.lane.b32.xlu0 %v329, 48
    %v1887 = vpop.permute.xlu0 %1886
    %v1891 = vsel %vm480, %v1763, 0
    %v1894 = vsel %vm480, %v1778, 0
    %1896 = vmatpush.msra.mxu0 0.0
    %1897 = vmatpush.msra.mxu0 0.0
    %1898 = vmatpush.msra.mxu0 0.0
    %1899 = vmatpush.msra.mxu0 0.0
    %1900 = vmatpush.msra.mxu0 0.0
    %1901 = vmatpush.msra.mxu0 0.0
    %1902 = vmatpush.msra.mxu0 0.0
    %1903 = vmatpush.msra.mxu0 0.0
    %1904 = vmatpush.msra.mxu0 0.0
    %1905 = vmatpush.msra.mxu0 0.0
    %1906 = vmatpush.msra.mxu0 0.0
    %1907 = vmatpush.msra.mxu0 0.0
    %1908 = vmatpush.msra.mxu0 0.0
    %1909 = vmatpush.msra.mxu0 0.0
    %1910 = vmatpush.msra.mxu0 %v1887
    %1911 = vmatpush.msra.mxu0 %v1885
    %1912 = vmatmul.f32.gmra.mxu0 %v1891
    %v1913 = vpop.f32.mrf.mxu0
    %v1914 = vadd.f32 0.0, %v1913
    %1915 = vmatmul.f32.gmra.mxu0 %v1894
    %v1916 = vpop.f32.mrf.mxu0
    %v1917 = vadd.f32 0.0, %v1916
    %1918 = vdwg.mxu0
    %v1920 = vsel %vm337, %v1809, 0
    %v1923 = vsel %vm337, %v1812, 0
    %v1926 = vsel %vm337, %v1844, 0
    %v1929 = vsel %vm337, %v1847, 0
    %v1932 = vsel %vm337, %v1879, 0
    %v1935 = vsel %vm337, %v1882, 0
    %v1938 = vsel %vm337, %v1914, 0
    %v1941 = vsel %vm337, %v1917, 0
    %1943 = vmatpush.msra.mxu0 0.0
    %1944 = vmatpush.msra.mxu0 0.0
    %1945 = vmatpush.msra.mxu0 0.0
    %1946 = vmatpush.msra.mxu0 0.0
    %1947 = vmatpush.msra.mxu0 0.0
    %1948 = vmatpush.msra.mxu0 0.0
    %1949 = vmatpush.msra.mxu0 0.0
    %1950 = vmatpush.msra.mxu0 0.0
    %1951 = vmatpush.msra.mxu0 0.0
    %1952 = vmatpush.msra.mxu0 0.0
    %1953 = vmatpush.msra.mxu0 0.0
    %1954 = vmatpush.msra.mxu0 0.0
    %1955 = vmatpush.msra.mxu0 0.0
    %1956 = vmatpush.msra.mxu0 0.0
    %1957 = vmatpush.msra.mxu0 0.0
    %1958 = vmatpush.msra.mxu0 %v52
    %1959 = vmatmul.f32.gmra.mxu0 %v1920
    %v1960 = vpop.f32.mrf.mxu0
    %v1961 = vadd.f32 0.0, %v1960
    %1962 = vmatmul.f32.gmra.mxu0 %v1923
    %v1963 = vpop.f32.mrf.mxu0
    %v1964 = vadd.f32 0.0, %v1963
    %1965 = vmatmul.f32.gmra.mxu0 %v1926
    %v1966 = vpop.f32.mrf.mxu0
    %v1967 = vadd.f32 0.0, %v1966
    %1968 = vmatmul.f32.gmra.mxu0 %v1929
    %v1969 = vpop.f32.mrf.mxu0
    %v1970 = vadd.f32 0.0, %v1969
    %1971 = vmatmul.f32.gmra.mxu0 %v1932
    %v1972 = vpop.f32.mrf.mxu0
    %v1973 = vadd.f32 0.0, %v1972
    %1974 = vmatmul.f32.gmra.mxu0 %v1935
    %v1975 = vpop.f32.mrf.mxu0
    %v1976 = vadd.f32 0.0, %v1975
    %1977 = vmatmul.f32.gmra.mxu0 %v1938
    %v1978 = vpop.f32.mrf.mxu0
    %v1979 = vadd.f32 0.0, %v1978
    %1980 = vmatmul.f32.gmra.mxu0 %v1941
    %v1981 = vpop.f32.mrf.mxu0
    %v1982 = vadd.f32 0.0, %v1981
    %1983 = vdwg.mxu0
    %v1984 = vadd.f32 %v1408, %v1961
    %v1985 = vadd.f32 %v1411, %v1964
    %v1986 = vadd.f32 %v1414, %v1967
    %v1987 = vadd.f32 %v1417, %v1970
    %v1988 = vadd.f32 %v1420, %v1973
    %v1989 = vadd.f32 %v1423, %v1976
    %v1990 = vadd.f32 %v1426, %v1979
    %v1991 = vadd.f32 %v1429, %v1982
    %1992 = vrot.lane.b32.xlu0 %v308, 104
    %v1993 = vpop.permute.xlu0 %1992
    %1994 = vrot.lane.b32.xlu0 %v311, 104
    %v1995 = vpop.permute.xlu0 %1994
    %1996 = vrot.lane.b32.xlu0 %v308, 72
    %v1997 = vpop.permute.xlu0 %1996
    %1998 = vrot.lane.b32.xlu0 %v311, 72
    %v1999 = vpop.permute.xlu0 %1998
    %v2000 = vsel %vm337, %v1993, 0
    %v2002 = vsel %vm337, %v1995, 0
    %v2004 = vsel %vm337, %v1997, 0
    %v2006 = vsel %vm337, %v1999, 0
    %2008 = vmatpush.xpose.msra.mxu0 0.0
    %2009 = vmatpush.xpose.msra.mxu0 0.0
    %2010 = vmatpush.xpose.msra.mxu0 0.0
    %2011 = vmatpush.xpose.msra.mxu0 0.0
    %2012 = vmatpush.xpose.msra.mxu0 0.0
    %2013 = vmatpush.xpose.msra.mxu0 0.0
    %2014 = vmatpush.xpose.msra.mxu0 0.0
    %2015 = vmatpush.xpose.msra.mxu0 0.0
    %2016 = vmatpush.xpose.msra.mxu0 0.0
    %2017 = vmatpush.xpose.msra.mxu0 0.0
    %2018 = vmatpush.xpose.msra.mxu0 0.0
    %2019 = vmatpush.xpose.msra.mxu0 0.0
    %2020 = vmatpush.xpose.msra.mxu0 0.0
    %2021 = vmatpush.xpose.msra.mxu0 0.0
    %2022 = vmatpush.xpose.msra.mxu0 %v2006
    %2023 = vmatpush.xpose.msra.mxu0 %v2004
    %2024 = vmatmul.f32.gmra.mxu0 %v2000
    %v2025 = vpop.f32.mrf.mxu0
    %v2026 = vadd.f32 0.0, %v2025
    %2027 = vmatmul.f32.gmra.mxu0 %v2002
    %v2028 = vpop.f32.mrf.mxu0
    %v2029 = vadd.f32 0.0, %v2028
    %2030 = vdwg.mxu0
    %2031 = vrot.lane.b32.xlu0 %v314, 104
    %v2032 = vpop.permute.xlu0 %2031
    %2033 = vrot.lane.b32.xlu0 %v317, 104
    %v2034 = vpop.permute.xlu0 %2033
    %2035 = vrot.lane.b32.xlu0 %v314, 72
    %v2036 = vpop.permute.xlu0 %2035
    %2037 = vrot.lane.b32.xlu0 %v317, 72
    %v2038 = vpop.permute.xlu0 %2037
    %v2039 = vsel %vm337, %v2032, 0
    %v2041 = vsel %vm337, %v2034, 0
    %v2043 = vsel %vm337, %v2036, 0
    %v2045 = vsel %vm337, %v2038, 0
    %2047 = vmatpush.xpose.msra.mxu0 0.0
    %2048 = vmatpush.xpose.msra.mxu0 0.0
    %2049 = vmatpush.xpose.msra.mxu0 0.0
    %2050 = vmatpush.xpose.msra.mxu0 0.0
    %2051 = vmatpush.xpose.msra.mxu0 0.0
    %2052 = vmatpush.xpose.msra.mxu0 0.0
    %2053 = vmatpush.xpose.msra.mxu0 0.0
    %2054 = vmatpush.xpose.msra.mxu0 0.0
    %2055 = vmatpush.xpose.msra.mxu0 0.0
    %2056 = vmatpush.xpose.msra.mxu0 0.0
    %2057 = vmatpush.xpose.msra.mxu0 0.0
    %2058 = vmatpush.xpose.msra.mxu0 0.0
    %2059 = vmatpush.xpose.msra.mxu0 0.0
    %2060 = vmatpush.xpose.msra.mxu0 0.0
    %2061 = vmatpush.xpose.msra.mxu0 %v2045
    %2062 = vmatpush.xpose.msra.mxu0 %v2043
    %2063 = vmatmul.f32.gmra.mxu0 %v2039
    %v2064 = vpop.f32.mrf.mxu0
    %v2065 = vadd.f32 0.0, %v2064
    %2066 = vmatmul.f32.gmra.mxu0 %v2041
    %v2067 = vpop.f32.mrf.mxu0
    %v2068 = vadd.f32 0.0, %v2067
    %2069 = vdwg.mxu0
    %2070 = vrot.lane.b32.xlu0 %v320, 104
    %v2071 = vpop.permute.xlu0 %2070
    %2072 = vrot.lane.b32.xlu0 %v323, 104
    %v2073 = vpop.permute.xlu0 %2072
    %2074 = vrot.lane.b32.xlu0 %v320, 72
    %v2075 = vpop.permute.xlu0 %2074
    %2076 = vrot.lane.b32.xlu0 %v323, 72
    %v2077 = vpop.permute.xlu0 %2076
    %v2078 = vsel %vm337, %v2071, 0
    %v2080 = vsel %vm337, %v2073, 0
    %v2082 = vsel %vm337, %v2075, 0
    %v2084 = vsel %vm337, %v2077, 0
    %2086 = vmatpush.xpose.msra.mxu0 0.0
    %2087 = vmatpush.xpose.msra.mxu0 0.0
    %2088 = vmatpush.xpose.msra.mxu0 0.0
    %2089 = vmatpush.xpose.msra.mxu0 0.0
    %2090 = vmatpush.xpose.msra.mxu0 0.0
    %2091 = vmatpush.xpose.msra.mxu0 0.0
    %2092 = vmatpush.xpose.msra.mxu0 0.0
    %2093 = vmatpush.xpose.msra.mxu0 0.0
    %2094 = vmatpush.xpose.msra.mxu0 0.0
    %2095 = vmatpush.xpose.msra.mxu0 0.0
    %2096 = vmatpush.xpose.msra.mxu0 0.0
    %2097 = vmatpush.xpose.msra.mxu0 0.0
    %2098 = vmatpush.xpose.msra.mxu0 0.0
    %2099 = vmatpush.xpose.msra.mxu0 0.0
    %2100 = vmatpush.xpose.msra.mxu0 %v2084
    %2101 = vmatpush.xpose.msra.mxu0 %v2082
    %2102 = vmatmul.f32.gmra.mxu0 %v2078
    %v2103 = vpop.f32.mrf.mxu0
    %v2104 = vadd.f32 0.0, %v2103
    %2105 = vmatmul.f32.gmra.mxu0 %v2080
    %v2106 = vpop.f32.mrf.mxu0
    %v2107 = vadd.f32 0.0, %v2106
    %2108 = vdwg.mxu0
    %2109 = vrot.lane.b32.xlu0 %v326, 104
    %v2110 = vpop.permute.xlu0 %2109
    %2111 = vrot.lane.b32.xlu0 %v329, 104
    %v2112 = vpop.permute.xlu0 %2111
    %2113 = vrot.lane.b32.xlu0 %v326, 72
    %v2114 = vpop.permute.xlu0 %2113
    %2115 = vrot.lane.b32.xlu0 %v329, 72
    %v2116 = vpop.permute.xlu0 %2115
    %v2117 = vsel %vm337, %v2110, 0
    %v2119 = vsel %vm337, %v2112, 0
    %v2121 = vsel %vm337, %v2114, 0
    %v2123 = vsel %vm337, %v2116, 0
    %2125 = vmatpush.xpose.msra.mxu0 0.0
    %2126 = vmatpush.xpose.msra.mxu0 0.0
    %2127 = vmatpush.xpose.msra.mxu0 0.0
    %2128 = vmatpush.xpose.msra.mxu0 0.0
    %2129 = vmatpush.xpose.msra.mxu0 0.0
    %2130 = vmatpush.xpose.msra.mxu0 0.0
    %2131 = vmatpush.xpose.msra.mxu0 0.0
    %2132 = vmatpush.xpose.msra.mxu0 0.0
    %2133 = vmatpush.xpose.msra.mxu0 0.0
    %2134 = vmatpush.xpose.msra.mxu0 0.0
    %2135 = vmatpush.xpose.msra.mxu0 0.0
    %2136 = vmatpush.xpose.msra.mxu0 0.0
    %2137 = vmatpush.xpose.msra.mxu0 0.0
    %2138 = vmatpush.xpose.msra.mxu0 0.0
    %2139 = vmatpush.xpose.msra.mxu0 %v2123
    %2140 = vmatpush.xpose.msra.mxu0 %v2121
    %2141 = vmatmul.f32.gmra.mxu0 %v2117
    %v2142 = vpop.f32.mrf.mxu0
    %v2143 = vadd.f32 0.0, %v2142
    %2144 = vmatmul.f32.gmra.mxu0 %v2119
    %v2145 = vpop.f32.mrf.mxu0
    %v2146 = vadd.f32 0.0, %v2145
    %2147 = vdwg.mxu0
    %v2148 = vsel %vm480, %v2026, -inf
    %2149 = vmax.xlane.f32.xlu0 %v2148
    %v2150 = vpop.xlane.xlu0 %2149
    %v2151 = vsel %vm480, %v2029, -inf
    %2152 = vmax.xlane.f32.xlu0 %v2151
    %v2153 = vpop.xlane.xlu0 %2152
    %v2154 = vsel %vm480, %v2065, -inf
    %2155 = vmax.xlane.f32.xlu0 %v2154
    %v2156 = vpop.xlane.xlu0 %2155
    %v2157 = vsel %vm480, %v2068, -inf
    %2158 = vmax.xlane.f32.xlu0 %v2157
    %v2159 = vpop.xlane.xlu0 %2158
    %v2160 = vsel %vm480, %v2104, -inf
    %2161 = vmax.xlane.f32.xlu0 %v2160
    %v2162 = vpop.xlane.xlu0 %2161
    %v2163 = vsel %vm480, %v2107, -inf
    %2164 = vmax.xlane.f32.xlu0 %v2163
    %v2165 = vpop.xlane.xlu0 %2164
    %v2166 = vsel %vm480, %v2143, -inf
    %2167 = vmax.xlane.f32.xlu0 %v2166
    %v2168 = vpop.xlane.xlu0 %2167
    %v2169 = vsel %vm480, %v2146, -inf
    %2170 = vmax.xlane.f32.xlu0 %v2169
    %v2171 = vpop.xlane.xlu0 %2170
    %v2172 = vsub.f32 %v2026, %v2150
    %v2173 = vsub.f32 %v2029, %v2153
    %v2174 = vsub.f32 %v2065, %v2156
    %v2175 = vsub.f32 %v2068, %v2159
    %v2176 = vsub.f32 %v2104, %v2162
    %v2177 = vsub.f32 %v2107, %v2165
    %v2178 = vsub.f32 %v2143, %v2168
    %v2179 = vsub.f32 %v2146, %v2171
    %v2180 = vmul.f32 %v2172, 1.442695
    %v2181 = vpow.pop %v2180
    %v2182 = vmul.f32 %v2173, 1.442695
    %v2183 = vpow.pop %v2182
    %v2184 = vmul.f32 %v2174, 1.442695
    %v2185 = vpow.pop %v2184
    %v2186 = vmul.f32 %v2175, 1.442695
    %v2187 = vpow.pop %v2186
    %v2188 = vmul.f32 %v2176, 1.442695
    %v2189 = vpow.pop %v2188
    %v2190 = vmul.f32 %v2177, 1.442695
    %v2191 = vpow.pop %v2190
    %v2192 = vmul.f32 %v2178, 1.442695
    %v2193 = vpow.pop %v2192
    %v2194 = vmul.f32 %v2179, 1.442695
    %v2195 = vpow.pop %v2194
    %v2196 = vsel %vm480, %v2181, 0.0
    %2197 = vadd.xlane.f32.xlu0 %v2196
    %v2198 = vpop.xlane.xlu0 %2197
    %v2199 = vsel %vm480, %v2183, 0.0
    %2200 = vadd.xlane.f32.xlu0 %v2199
    %v2201 = vpop.xlane.xlu0 %2200
    %v2202 = vsel %vm480, %v2185, 0.0
    %2203 = vadd.xlane.f32.xlu0 %v2202
    %v2204 = vpop.xlane.xlu0 %2203
    %v2205 = vsel %vm480, %v2187, 0.0
    %2206 = vadd.xlane.f32.xlu0 %v2205
    %v2207 = vpop.xlane.xlu0 %2206
    %v2208 = vsel %vm480, %v2189, 0.0
    %2209 = vadd.xlane.f32.xlu0 %v2208
    %v2210 = vpop.xlane.xlu0 %2209
    %v2211 = vsel %vm480, %v2191, 0.0
    %2212 = vadd.xlane.f32.xlu0 %v2211
    %v2213 = vpop.xlane.xlu0 %2212
    %v2214 = vsel %vm480, %v2193, 0.0
    %2215 = vadd.xlane.f32.xlu0 %v2214
    %v2216 = vpop.xlane.xlu0 %2215
    %v2217 = vsel %vm480, %v2195, 0.0
    %2218 = vadd.xlane.f32.xlu0 %v2217
    %v2219 = vpop.xlane.xlu0 %2218
    %v2220 = vrcp.pop %v2198
    %v2221 = vmul.f32 %v2198, %v2220
    %v2222 = vsub.f32 1.0, %v2221
    %v2223 = vmul.f32 %v2220, %v2222
    %v2224 = vadd.f32 %v2220, %v2223
    %vm2225 = vweird.f32 %v2198
    %vm2226 = vweird.f32 %v2220
    %vm2227 = vmor %vm2225, %vm2226
    %v2228 = vsel %vm2227, %v2220, %v2224
    %v2229 = vand.u32 2147483647, %v2198
    %vm2230 = vcmp.eq.f32.partialorder %v2229, 8.507059e+37
    %v2231 = vand.u32 %v2198, 2147483648
    %v2232 = vor.u32 1.1754944e-38, %v2231
    %v2233 = vsel %vm2230, %v2232, %v2228
    %v2234 = vmul.f32 %v2181, %v2233
    %v2235 = vrcp.pop %v2201
    %v2236 = vmul.f32 %v2201, %v2235
    %v2237 = vsub.f32 1.0, %v2236
    %v2238 = vmul.f32 %v2235, %v2237
    %v2239 = vadd.f32 %v2235, %v2238
    %vm2240 = vweird.f32 %v2201
    %vm2241 = vweird.f32 %v2235
    %vm2242 = vmor %vm2240, %vm2241
    %v2243 = vsel %vm2242, %v2235, %v2239
    %v2244 = vand.u32 2147483647, %v2201
    %vm2245 = vcmp.eq.f32.partialorder %v2244, 8.507059e+37
    %v2246 = vand.u32 %v2201, 2147483648
    %v2247 = vor.u32 1.1754944e-38, %v2246
    %v2248 = vsel %vm2245, %v2247, %v2243
    %v2249 = vmul.f32 %v2183, %v2248
    %v2250 = vrcp.pop %v2204
    %v2251 = vmul.f32 %v2204, %v2250
    %v2252 = vsub.f32 1.0, %v2251
    %v2253 = vmul.f32 %v2250, %v2252
    %v2254 = vadd.f32 %v2250, %v2253
    %vm2255 = vweird.f32 %v2204
    %vm2256 = vweird.f32 %v2250
    %vm2257 = vmor %vm2255, %vm2256
    %v2258 = vsel %vm2257, %v2250, %v2254
    %v2259 = vand.u32 2147483647, %v2204
    %vm2260 = vcmp.eq.f32.partialorder %v2259, 8.507059e+37
    %v2261 = vand.u32 %v2204, 2147483648
    %v2262 = vor.u32 1.1754944e-38, %v2261
    %v2263 = vsel %vm2260, %v2262, %v2258
    %v2264 = vmul.f32 %v2185, %v2263
    %v2265 = vrcp.pop %v2207
    %v2266 = vmul.f32 %v2207, %v2265
    %v2267 = vsub.f32 1.0, %v2266
    %v2268 = vmul.f32 %v2265, %v2267
    %v2269 = vadd.f32 %v2265, %v2268
    %vm2270 = vweird.f32 %v2207
    %vm2271 = vweird.f32 %v2265
    %vm2272 = vmor %vm2270, %vm2271
    %v2273 = vsel %vm2272, %v2265, %v2269
    %v2274 = vand.u32 2147483647, %v2207
    %vm2275 = vcmp.eq.f32.partialorder %v2274, 8.507059e+37
    %v2276 = vand.u32 %v2207, 2147483648
    %v2277 = vor.u32 1.1754944e-38, %v2276
    %v2278 = vsel %vm2275, %v2277, %v2273
    %v2279 = vmul.f32 %v2187, %v2278
    %v2280 = vrcp.pop %v2210
    %v2281 = vmul.f32 %v2210, %v2280
    %v2282 = vsub.f32 1.0, %v2281
    %v2283 = vmul.f32 %v2280, %v2282
    %v2284 = vadd.f32 %v2280, %v2283
    %vm2285 = vweird.f32 %v2210
    %vm2286 = vweird.f32 %v2280
    %vm2287 = vmor %vm2285, %vm2286
    %v2288 = vsel %vm2287, %v2280, %v2284
    %v2289 = vand.u32 2147483647, %v2210
    %vm2290 = vcmp.eq.f32.partialorder %v2289, 8.507059e+37
    %v2291 = vand.u32 %v2210, 2147483648
    %v2292 = vor.u32 1.1754944e-38, %v2291
    %v2293 = vsel %vm2290, %v2292, %v2288
    %v2294 = vmul.f32 %v2189, %v2293
    %v2295 = vrcp.pop %v2213
    %v2296 = vmul.f32 %v2213, %v2295
    %v2297 = vsub.f32 1.0, %v2296
    %v2298 = vmul.f32 %v2295, %v2297
    %v2299 = vadd.f32 %v2295, %v2298
    %vm2300 = vweird.f32 %v2213
    %vm2301 = vweird.f32 %v2295
    %vm2302 = vmor %vm2300, %vm2301
    %v2303 = vsel %vm2302, %v2295, %v2299
    %v2304 = vand.u32 2147483647, %v2213
    %vm2305 = vcmp.eq.f32.partialorder %v2304, 8.507059e+37
    %v2306 = vand.u32 %v2213, 2147483648
    %v2307 = vor.u32 1.1754944e-38, %v2306
    %v2308 = vsel %vm2305, %v2307, %v2303
    %v2309 = vmul.f32 %v2191, %v2308
    %v2310 = vrcp.pop %v2216
    %v2311 = vmul.f32 %v2216, %v2310
    %v2312 = vsub.f32 1.0, %v2311
    %v2313 = vmul.f32 %v2310, %v2312
    %v2314 = vadd.f32 %v2310, %v2313
    %vm2315 = vweird.f32 %v2216
    %vm2316 = vweird.f32 %v2310
    %vm2317 = vmor %vm2315, %vm2316
    %v2318 = vsel %vm2317, %v2310, %v2314
    %v2319 = vand.u32 2147483647, %v2216
    %vm2320 = vcmp.eq.f32.partialorder %v2319, 8.507059e+37
    %v2321 = vand.u32 %v2216, 2147483648
    %v2322 = vor.u32 1.1754944e-38, %v2321
    %v2323 = vsel %vm2320, %v2322, %v2318
    %v2324 = vmul.f32 %v2193, %v2323
    %v2325 = vrcp.pop %v2219
    %v2326 = vmul.f32 %v2219, %v2325
    %v2327 = vsub.f32 1.0, %v2326
    %v2328 = vmul.f32 %v2325, %v2327
    %v2329 = vadd.f32 %v2325, %v2328
    %vm2330 = vweird.f32 %v2219
    %vm2331 = vweird.f32 %v2325
    %vm2332 = vmor %vm2330, %vm2331
    %v2333 = vsel %vm2332, %v2325, %v2329
    %v2334 = vand.u32 2147483647, %v2219
    %vm2335 = vcmp.eq.f32.partialorder %v2334, 8.507059e+37
    %v2336 = vand.u32 %v2219, 2147483648
    %v2337 = vor.u32 1.1754944e-38, %v2336
    %v2338 = vsel %vm2335, %v2337, %v2333
    %v2339 = vmul.f32 %v2195, %v2338
    %2340 = vrot.lane.b32.xlu0 %v308, 40
    %v2341 = vpop.permute.xlu0 %2340
    %2342 = vrot.lane.b32.xlu0 %v311, 40
    %v2343 = vpop.permute.xlu0 %2342
    %v2347 = vsel %vm480, %v2234, 0
    %v2350 = vsel %vm480, %v2249, 0
    %2352 = vmatpush.msra.mxu0 0.0
    %2353 = vmatpush.msra.mxu0 0.0
    %2354 = vmatpush.msra.mxu0 0.0
    %2355 = vmatpush.msra.mxu0 0.0
    %2356 = vmatpush.msra.mxu0 0.0
    %2357 = vmatpush.msra.mxu0 0.0
    %2358 = vmatpush.msra.mxu0 0.0
    %2359 = vmatpush.msra.mxu0 0.0
    %2360 = vmatpush.msra.mxu0 0.0
    %2361 = vmatpush.msra.mxu0 0.0
    %2362 = vmatpush.msra.mxu0 0.0
    %2363 = vmatpush.msra.mxu0 0.0
    %2364 = vmatpush.msra.mxu0 0.0
    %2365 = vmatpush.msra.mxu0 0.0
    %2366 = vmatpush.msra.mxu0 %v2343
    %2367 = vmatpush.msra.mxu0 %v2341
    %2368 = vmatmul.f32.gmra.mxu0 %v2347
    %v2369 = vpop.f32.mrf.mxu0
    %v2370 = vadd.f32 0.0, %v2369
    %2371 = vmatmul.f32.gmra.mxu0 %v2350
    %v2372 = vpop.f32.mrf.mxu0
    %v2373 = vadd.f32 0.0, %v2372
    %2374 = vdwg.mxu0
    %2375 = vrot.lane.b32.xlu0 %v314, 40
    %v2376 = vpop.permute.xlu0 %2375
    %2377 = vrot.lane.b32.xlu0 %v317, 40
    %v2378 = vpop.permute.xlu0 %2377
    %v2382 = vsel %vm480, %v2264, 0
    %v2385 = vsel %vm480, %v2279, 0
    %2387 = vmatpush.msra.mxu0 0.0
    %2388 = vmatpush.msra.mxu0 0.0
    %2389 = vmatpush.msra.mxu0 0.0
    %2390 = vmatpush.msra.mxu0 0.0
    %2391 = vmatpush.msra.mxu0 0.0
    %2392 = vmatpush.msra.mxu0 0.0
    %2393 = vmatpush.msra.mxu0 0.0
    %2394 = vmatpush.msra.mxu0 0.0
    %2395 = vmatpush.msra.mxu0 0.0
    %2396 = vmatpush.msra.mxu0 0.0
    %2397 = vmatpush.msra.mxu0 0.0
    %2398 = vmatpush.msra.mxu0 0.0
    %2399 = vmatpush.msra.mxu0 0.0
    %2400 = vmatpush.msra.mxu0 0.0
    %2401 = vmatpush.msra.mxu0 %v2378
    %2402 = vmatpush.msra.mxu0 %v2376
    %2403 = vmatmul.f32.gmra.mxu0 %v2382
    %v2404 = vpop.f32.mrf.mxu0
    %v2405 = vadd.f32 0.0, %v2404
    %2406 = vmatmul.f32.gmra.mxu0 %v2385
    %v2407 = vpop.f32.mrf.mxu0
    %v2408 = vadd.f32 0.0, %v2407
    %2409 = vdwg.mxu0
    %2410 = vrot.lane.b32.xlu0 %v320, 40
    %v2411 = vpop.permute.xlu0 %2410
    %2412 = vrot.lane.b32.xlu0 %v323, 40
    %v2413 = vpop.permute.xlu0 %2412
    %v2417 = vsel %vm480, %v2294, 0
    %v2420 = vsel %vm480, %v2309, 0
    %2422 = vmatpush.msra.mxu0 0.0
    %2423 = vmatpush.msra.mxu0 0.0
    %2424 = vmatpush.msra.mxu0 0.0
    %2425 = vmatpush.msra.mxu0 0.0
    %2426 = vmatpush.msra.mxu0 0.0
    %2427 = vmatpush.msra.mxu0 0.0
    %2428 = vmatpush.msra.mxu0 0.0
    %2429 = vmatpush.msra.mxu0 0.0
    %2430 = vmatpush.msra.mxu0 0.0
    %2431 = vmatpush.msra.mxu0 0.0
    %2432 = vmatpush.msra.mxu0 0.0
    %2433 = vmatpush.msra.mxu0 0.0
    %2434 = vmatpush.msra.mxu0 0.0
    %2435 = vmatpush.msra.mxu0 0.0
    %2436 = vmatpush.msra.mxu0 %v2413
    %2437 = vmatpush.msra.mxu0 %v2411
    %2438 = vmatmul.f32.gmra.mxu0 %v2417
    %v2439 = vpop.f32.mrf.mxu0
    %v2440 = vadd.f32 0.0, %v2439
    %2441 = vmatmul.f32.gmra.mxu0 %v2420
    %v2442 = vpop.f32.mrf.mxu0
    %v2443 = vadd.f32 0.0, %v2442
    %2444 = vdwg.mxu0
    %2445 = vrot.lane.b32.xlu0 %v326, 40
    %v2446 = vpop.permute.xlu0 %2445
    %2447 = vrot.lane.b32.xlu0 %v329, 40
    %v2448 = vpop.permute.xlu0 %2447
    %v2452 = vsel %vm480, %v2324, 0
    %v2455 = vsel %vm480, %v2339, 0
    %2457 = vmatpush.msra.mxu0 0.0
    %2458 = vmatpush.msra.mxu0 0.0
    %2459 = vmatpush.msra.mxu0 0.0
    %2460 = vmatpush.msra.mxu0 0.0
    %2461 = vmatpush.msra.mxu0 0.0
    %2462 = vmatpush.msra.mxu0 0.0
    %2463 = vmatpush.msra.mxu0 0.0
    %2464 = vmatpush.msra.mxu0 0.0
    %2465 = vmatpush.msra.mxu0 0.0
    %2466 = vmatpush.msra.mxu0 0.0
    %2467 = vmatpush.msra.mxu0 0.0
    %2468 = vmatpush.msra.mxu0 0.0
    %2469 = vmatpush.msra.mxu0 0.0
    %2470 = vmatpush.msra.mxu0 0.0
    %2471 = vmatpush.msra.mxu0 %v2448
    %2472 = vmatpush.msra.mxu0 %v2446
    %2473 = vmatmul.f32.gmra.mxu0 %v2452
    %v2474 = vpop.f32.mrf.mxu0
    %v2475 = vadd.f32 0.0, %v2474
    %2476 = vmatmul.f32.gmra.mxu0 %v2455
    %v2477 = vpop.f32.mrf.mxu0
    %v2478 = vadd.f32 0.0, %v2477
    %2479 = vdwg.mxu0
    %v2481 = vsel %vm337, %v2370, 0
    %v2484 = vsel %vm337, %v2373, 0
    %v2487 = vsel %vm337, %v2405, 0
    %v2490 = vsel %vm337, %v2408, 0
    %v2493 = vsel %vm337, %v2440, 0
    %v2496 = vsel %vm337, %v2443, 0
    %v2499 = vsel %vm337, %v2475, 0
    %v2502 = vsel %vm337, %v2478, 0
    %2504 = vmatpush.msra.mxu0 0.0
    %2505 = vmatpush.msra.mxu0 0.0
    %2506 = vmatpush.msra.mxu0 0.0
    %2507 = vmatpush.msra.mxu0 0.0
    %2508 = vmatpush.msra.mxu0 0.0
    %2509 = vmatpush.msra.mxu0 0.0
    %2510 = vmatpush.msra.mxu0 0.0
    %2511 = vmatpush.msra.mxu0 0.0
    %2512 = vmatpush.msra.mxu0 0.0
    %2513 = vmatpush.msra.mxu0 0.0
    %2514 = vmatpush.msra.mxu0 0.0
    %2515 = vmatpush.msra.mxu0 0.0
    %2516 = vmatpush.msra.mxu0 0.0
    %2517 = vmatpush.msra.mxu0 0.0
    %2518 = vmatpush.msra.mxu0 0.0
    %2519 = vmatpush.msra.mxu0 %v53
    %2520 = vmatmul.f32.gmra.mxu0 %v2481
    %v2521 = vpop.f32.mrf.mxu0
    %v2522 = vadd.f32 0.0, %v2521
    %2523 = vmatmul.f32.gmra.mxu0 %v2484
    %v2524 = vpop.f32.mrf.mxu0
    %v2525 = vadd.f32 0.0, %v2524
    %2526 = vmatmul.f32.gmra.mxu0 %v2487
    %v2527 = vpop.f32.mrf.mxu0
    %v2528 = vadd.f32 0.0, %v2527
    %2529 = vmatmul.f32.gmra.mxu0 %v2490
    %v2530 = vpop.f32.mrf.mxu0
    %v2531 = vadd.f32 0.0, %v2530
    %2532 = vmatmul.f32.gmra.mxu0 %v2493
    %v2533 = vpop.f32.mrf.mxu0
    %v2534 = vadd.f32 0.0, %v2533
    %2535 = vmatmul.f32.gmra.mxu0 %v2496
    %v2536 = vpop.f32.mrf.mxu0
    %v2537 = vadd.f32 0.0, %v2536
    %2538 = vmatmul.f32.gmra.mxu0 %v2499
    %v2539 = vpop.f32.mrf.mxu0
    %v2540 = vadd.f32 0.0, %v2539
    %2541 = vmatmul.f32.gmra.mxu0 %v2502
    %v2542 = vpop.f32.mrf.mxu0
    %v2543 = vadd.f32 0.0, %v2542
    %2544 = vdwg.mxu0
    %v2545 = vadd.f32 %v1984, %v2522
    %v2546 = vadd.f32 %v1985, %v2525
    %v2547 = vadd.f32 %v1986, %v2528
    %v2548 = vadd.f32 %v1987, %v2531
    %v2549 = vadd.f32 %v1988, %v2534
    %v2550 = vadd.f32 %v1989, %v2537
    %v2551 = vadd.f32 %v1990, %v2540
    %v2552 = vadd.f32 %v1991, %v2543
    %v2553 = vperm.slane %v62, 6
    %v2554 = vadd.f32 %v2545, %v2553
    %v2555 = vadd.f32 %v2546, %v2553
    %v2556 = vadd.f32 %v2547, %v2553
    %v2557 = vadd.f32 %v2548, %v2553
    %v2558 = vadd.f32 %v2549, %v2553
    %v2559 = vadd.f32 %v2550, %v2553
    %v2560 = vadd.f32 %v2551, %v2553
    %v2561 = vadd.f32 %v2552, %v2553
    %v2562 = vadd.f32 %v2554, %v30
    %v2563 = vadd.f32 %v2555, %v31
    %v2564 = vadd.f32 %v2556, %v32
    %v2565 = vadd.f32 %v2557, %v33
    %v2566 = vadd.f32 %v2558, %v34
    %v2567 = vadd.f32 %v2559, %v35
    %v2568 = vadd.f32 %v2560, %v36
    %v2569 = vadd.f32 %v2561, %v37
    %v2570 = vsel %vm64, %v2562, 0.0
    %2571 = vadd.xlane.f32.xlu0 %v2570
    %v2572 = vpop.xlane.xlu0 %2571
    %v2573 = vsel %vm64, %v2563, 0.0
    %2574 = vadd.xlane.f32.xlu0 %v2573
    %v2575 = vpop.xlane.xlu0 %2574
    %v2576 = vsel %vm64, %v2564, 0.0
    %2577 = vadd.xlane.f32.xlu0 %v2576
    %v2578 = vpop.xlane.xlu0 %2577
    %v2579 = vsel %vm64, %v2565, 0.0
    %2580 = vadd.xlane.f32.xlu0 %v2579
    %v2581 = vpop.xlane.xlu0 %2580
    %v2582 = vsel %vm64, %v2566, 0.0
    %2583 = vadd.xlane.f32.xlu0 %v2582
    %v2584 = vpop.xlane.xlu0 %2583
    %v2585 = vsel %vm64, %v2567, 0.0
    %2586 = vadd.xlane.f32.xlu0 %v2585
    %v2587 = vpop.xlane.xlu0 %2586
    %v2588 = vsel %vm64, %v2568, 0.0
    %2589 = vadd.xlane.f32.xlu0 %v2588
    %v2590 = vpop.xlane.xlu0 %2589
    %v2591 = vsel %vm64, %v2569, 0.0
    %2592 = vadd.xlane.f32.xlu0 %v2591
    %v2593 = vpop.xlane.xlu0 %2592
    %v2594 = vmul.f32 %v2572, %v95
    %v2595 = vmul.f32 %v2575, %v95
    %v2596 = vmul.f32 %v2578, %v95
    %v2597 = vmul.f32 %v2581, %v95
    %v2598 = vmul.f32 %v2584, %v95
    %v2599 = vmul.f32 %v2587, %v95
    %v2600 = vmul.f32 %v2590, %v95
    %v2601 = vmul.f32 %v2593, %v95
    %v2602 = vsub.f32 %v2562, %v2594
    %v2603 = vsub.f32 %v2563, %v2595
    %v2604 = vsub.f32 %v2564, %v2596
    %v2605 = vsub.f32 %v2565, %v2597
    %v2606 = vsub.f32 %v2566, %v2598
    %v2607 = vsub.f32 %v2567, %v2599
    %v2608 = vsub.f32 %v2568, %v2600
    %v2609 = vsub.f32 %v2569, %v2601
    %v2610 = vmul.f32 %v2602, %v2602
    %v2611 = vmul.f32 %v2603, %v2603
    %v2612 = vmul.f32 %v2604, %v2604
    %v2613 = vmul.f32 %v2605, %v2605
    %v2614 = vmul.f32 %v2606, %v2606
    %v2615 = vmul.f32 %v2607, %v2607
    %v2616 = vmul.f32 %v2608, %v2608
    %v2617 = vmul.f32 %v2609, %v2609
    %v2618 = vsel %vm64, %v2610, 0.0
    %2619 = vadd.xlane.f32.xlu0 %v2618
    %v2620 = vpop.xlane.xlu0 %2619
    %v2621 = vsel %vm64, %v2611, 0.0
    %2622 = vadd.xlane.f32.xlu0 %v2621
    %v2623 = vpop.xlane.xlu0 %2622
    %v2624 = vsel %vm64, %v2612, 0.0
    %2625 = vadd.xlane.f32.xlu0 %v2624
    %v2626 = vpop.xlane.xlu0 %2625
    %v2627 = vsel %vm64, %v2613, 0.0
    %2628 = vadd.xlane.f32.xlu0 %v2627
    %v2629 = vpop.xlane.xlu0 %2628
    %v2630 = vsel %vm64, %v2614, 0.0
    %2631 = vadd.xlane.f32.xlu0 %v2630
    %v2632 = vpop.xlane.xlu0 %2631
    %v2633 = vsel %vm64, %v2615, 0.0
    %2634 = vadd.xlane.f32.xlu0 %v2633
    %v2635 = vpop.xlane.xlu0 %2634
    %v2636 = vsel %vm64, %v2616, 0.0
    %2637 = vadd.xlane.f32.xlu0 %v2636
    %v2638 = vpop.xlane.xlu0 %2637
    %v2639 = vsel %vm64, %v2617, 0.0
    %2640 = vadd.xlane.f32.xlu0 %v2639
    %v2641 = vpop.xlane.xlu0 %2640
    %v2642 = vmul.f32 %v2620, %v95
    %v2643 = vmul.f32 %v2623, %v95
    %v2644 = vmul.f32 %v2626, %v95
    %v2645 = vmul.f32 %v2629, %v95
    %v2646 = vmul.f32 %v2632, %v95
    %v2647 = vmul.f32 %v2635, %v95
    %v2648 = vmul.f32 %v2638, %v95
    %v2649 = vmul.f32 %v2641, %v95
    %v2650 = vadd.f32 %v2642, 1e-05
    %v2651 = vadd.f32 %v2643, 1e-05
    %v2652 = vadd.f32 %v2644, 1e-05
    %v2653 = vadd.f32 %v2645, 1e-05
    %v2654 = vadd.f32 %v2646, 1e-05
    %v2655 = vadd.f32 %v2647, 1e-05
    %v2656 = vadd.f32 %v2648, 1e-05
    %v2657 = vadd.f32 %v2649, 1e-05
    %v2658 = vrsqrt.pop %v2650
    %v2659 = vmul.f32 %v2658, %v2650
    %v2660 = vmul.f32 %v2659, %v2658
    %v2661 = vmul.f32 0.5, %v2660
    %v2662 = vsub.f32 1.5, %v2661
    %v2663 = vmul.f32 %v2658, %v2662
    %vm2664 = vweird.f32 %v2650
    %vm2665 = vweird.f32 %v2658
    %vm2666 = vmor %vm2664, %vm2665
    %v2667 = vsel %vm2666, %v2658, %v2663
    %v2668 = vrsqrt.pop %v2651
    %v2669 = vmul.f32 %v2668, %v2651
    %v2670 = vmul.f32 %v2669, %v2668
    %v2671 = vmul.f32 0.5, %v2670
    %v2672 = vsub.f32 1.5, %v2671
    %v2673 = vmul.f32 %v2668, %v2672
    %vm2674 = vweird.f32 %v2651
    %vm2675 = vweird.f32 %v2668
    %vm2676 = vmor %vm2674, %vm2675
    %v2677 = vsel %vm2676, %v2668, %v2673
    %v2678 = vrsqrt.pop %v2652
    %v2679 = vmul.f32 %v2678, %v2652
    %v2680 = vmul.f32 %v2679, %v2678
    %v2681 = vmul.f32 0.5, %v2680
    %v2682 = vsub.f32 1.5, %v2681
    %v2683 = vmul.f32 %v2678, %v2682
    %vm2684 = vweird.f32 %v2652
    %vm2685 = vweird.f32 %v2678
    %vm2686 = vmor %vm2684, %vm2685
    %v2687 = vsel %vm2686, %v2678, %v2683
    %v2688 = vrsqrt.pop %v2653
    %v2689 = vmul.f32 %v2688, %v2653
    %v2690 = vmul.f32 %v2689, %v2688
    %v2691 = vmul.f32 0.5, %v2690
    %v2692 = vsub.f32 1.5, %v2691
    %v2693 = vmul.f32 %v2688, %v2692
    %vm2694 = vweird.f32 %v2653
    %vm2695 = vweird.f32 %v2688
    %vm2696 = vmor %vm2694, %vm2695
    %v2697 = vsel %vm2696, %v2688, %v2693
    %v2698 = vrsqrt.pop %v2654
    %v2699 = vmul.f32 %v2698, %v2654
    %v2700 = vmul.f32 %v2699, %v2698
    %v2701 = vmul.f32 0.5, %v2700
    %v2702 = vsub.f32 1.5, %v2701
    %v2703 = vmul.f32 %v2698, %v2702
    %vm2704 = vweird.f32 %v2654
    %vm2705 = vweird.f32 %v2698
    %vm2706 = vmor %vm2704, %vm2705
    %v2707 = vsel %vm2706, %v2698, %v2703
    %v2708 = vrsqrt.pop %v2655
    %v2709 = vmul.f32 %v2708, %v2655
    %v2710 = vmul.f32 %v2709, %v2708
    %v2711 = vmul.f32 0.5, %v2710
    %v2712 = vsub.f32 1.5, %v2711
    %v2713 = vmul.f32 %v2708, %v2712
    %vm2714 = vweird.f32 %v2655
    %vm2715 = vweird.f32 %v2708
    %vm2716 = vmor %vm2714, %vm2715
    %v2717 = vsel %vm2716, %v2708, %v2713
    %v2718 = vrsqrt.pop %v2656
    %v2719 = vmul.f32 %v2718, %v2656
    %v2720 = vmul.f32 %v2719, %v2718
    %v2721 = vmul.f32 0.5, %v2720
    %v2722 = vsub.f32 1.5, %v2721
    %v2723 = vmul.f32 %v2718, %v2722
    %vm2724 = vweird.f32 %v2656
    %vm2725 = vweird.f32 %v2718
    %vm2726 = vmor %vm2724, %vm2725
    %v2727 = vsel %vm2726, %v2718, %v2723
    %v2728 = vrsqrt.pop %v2657
    %v2729 = vmul.f32 %v2728, %v2657
    %v2730 = vmul.f32 %v2729, %v2728
    %v2731 = vmul.f32 0.5, %v2730
    %v2732 = vsub.f32 1.5, %v2731
    %v2733 = vmul.f32 %v2728, %v2732
    %vm2734 = vweird.f32 %v2657
    %vm2735 = vweird.f32 %v2728
    %vm2736 = vmor %vm2734, %vm2735
    %v2737 = vsel %vm2736, %v2728, %v2733
    %v2738 = vmul.f32 %v2602, %v2667
    %v2739 = vmul.f32 %v2603, %v2677
    %v2740 = vmul.f32 %v2604, %v2687
    %v2741 = vmul.f32 %v2605, %v2697
    %v2742 = vmul.f32 %v2606, %v2707
    %v2743 = vmul.f32 %v2607, %v2717
    %v2744 = vmul.f32 %v2608, %v2727
    %v2745 = vmul.f32 %v2609, %v2737
    %v2746 = vperm.slane %v62, 2
    %v2747 = vmul.f32 %v2738, %v2746
    %v2748 = vmul.f32 %v2739, %v2746
    %v2749 = vmul.f32 %v2740, %v2746
    %v2750 = vmul.f32 %v2741, %v2746
    %v2751 = vmul.f32 %v2742, %v2746
    %v2752 = vmul.f32 %v2743, %v2746
    %v2753 = vmul.f32 %v2744, %v2746
    %v2754 = vmul.f32 %v2745, %v2746
    %v2755 = vperm.slane %v62, 3
    %v2756 = vadd.f32 %v2747, %v2755
    %v2757 = vadd.f32 %v2748, %v2755
    %v2758 = vadd.f32 %v2749, %v2755
    %v2759 = vadd.f32 %v2750, %v2755
    %v2760 = vadd.f32 %v2751, %v2755
    %v2761 = vadd.f32 %v2752, %v2755
    %v2762 = vadd.f32 %v2753, %v2755
    %v2763 = vadd.f32 %v2754, %v2755
    %2772 = vrot.lane.b32.xlu0 %v42, 32
    %v2773 = vpop.permute.xlu0 %2772
    %2774 = vrot.lane.b32.xlu0 %v43, 32
    %v2775 = vpop.permute.xlu0 %2774
    %2776 = vrot.lane.b32.xlu0 %v44, 32
    %v2777 = vpop.permute.xlu0 %2776
    %2778 = vrot.lane.b32.xlu0 %v45, 32
    %v2779 = vpop.permute.xlu0 %2778
    %2780 = vrot.lane.b32.xlu0 %v46, 32
    %v2781 = vpop.permute.xlu0 %2780
    %2782 = vrot.lane.b32.xlu0 %v47, 32
    %v2783 = vpop.permute.xlu0 %2782
    %2784 = vrot.lane.b32.xlu0 %v48, 32
    %v2785 = vpop.permute.xlu0 %2784
    %2786 = vrot.lane.b32.xlu0 %v49, 32
    %v2787 = vpop.permute.xlu0 %2786
    %v2788 = vsel %vm64, %v2773, %v2775
    %v2789 = vsel %vm64, %v2777, %v2779
    %v2790 = vsel %vm64, %v2781, %v2783
    %v2791 = vsel %vm64, %v2785, %v2787
    %v2797 = vsel %vm64, %v2756, 0
    %v2800 = vsel %vm64, %v2757, 0
    %v2803 = vsel %vm64, %v2758, 0
    %v2806 = vsel %vm64, %v2759, 0
    %v2809 = vsel %vm64, %v2760, 0
    %v2812 = vsel %vm64, %v2761, 0
    %v2815 = vsel %vm64, %v2762, 0
    %v2818 = vsel %vm64, %v2763, 0
    %v2821 = vsel %vm64, %v38, 0
    %v2824 = vsel %vm64, %v39, 0
    %v2827 = vsel %vm64, %v40, 0
    %v2830 = vsel %vm64, %v41, 0
    %2832 = vmatpush.msra.mxu0 0.0
    %2833 = vmatpush.msra.mxu0 0.0
    %2834 = vmatpush.msra.mxu0 0.0
    %2835 = vmatpush.msra.mxu0 0.0
    %2836 = vmatpush.msra.mxu0 0.0
    %2837 = vmatpush.msra.mxu0 0.0
    %2838 = vmatpush.msra.mxu0 0.0
    %2839 = vmatpush.msra.mxu0 0.0
    %2840 = vmatpush.msra.mxu0 0.0
    %2841 = vmatpush.msra.mxu0 0.0
    %2842 = vmatpush.msra.mxu0 0.0
    %2843 = vmatpush.msra.mxu0 0.0
    %2844 = vmatpush.msra.mxu0 %v2791
    %2845 = vmatpush.msra.mxu0 %v2790
    %2846 = vmatpush.msra.mxu0 %v2789
    %2847 = vmatpush.msra.mxu0 %v2788
    %2848 = vmatmul.f32.gmra.mxu0 %v2797
    %v2849 = vpop.f32.mrf.mxu0
    %v2850 = vadd.f32 0.0, %v2849
    %2851 = vmatmul.f32.gmra.mxu0 %v2800
    %v2852 = vpop.f32.mrf.mxu0
    %v2853 = vadd.f32 0.0, %v2852
    %2854 = vmatmul.f32.gmra.mxu0 %v2803
    %v2855 = vpop.f32.mrf.mxu0
    %v2856 = vadd.f32 0.0, %v2855
    %2857 = vmatmul.f32.gmra.mxu0 %v2806
    %v2858 = vpop.f32.mrf.mxu0
    %v2859 = vadd.f32 0.0, %v2858
    %2860 = vmatmul.f32.gmra.mxu0 %v2809
    %v2861 = vpop.f32.mrf.mxu0
    %v2862 = vadd.f32 0.0, %v2861
    %2863 = vmatmul.f32.gmra.mxu0 %v2812
    %v2864 = vpop.f32.mrf.mxu0
    %v2865 = vadd.f32 0.0, %v2864
    %2866 = vmatmul.f32.gmra.mxu0 %v2815
    %v2867 = vpop.f32.mrf.mxu0
    %v2868 = vadd.f32 0.0, %v2867
    %2869 = vmatmul.f32.gmra.mxu0 %v2818
    %v2870 = vpop.f32.mrf.mxu0
    %v2871 = vadd.f32 0.0, %v2870
    %2872 = vmatmul.f32.gmra.mxu0 %v2821
    %v2873 = vpop.f32.mrf.mxu0
    %v2874 = vadd.f32 0.0, %v2873
    %2875 = vmatmul.f32.gmra.mxu0 %v2824
    %v2876 = vpop.f32.mrf.mxu0
    %v2877 = vadd.f32 0.0, %v2876
    %2878 = vmatmul.f32.gmra.mxu0 %v2827
    %v2879 = vpop.f32.mrf.mxu0
    %v2880 = vadd.f32 0.0, %v2879
    %2881 = vmatmul.f32.gmra.mxu0 %v2830
    %v2882 = vpop.f32.mrf.mxu0
    %v2883 = vadd.f32 0.0, %v2882
    %2884 = vdwg.mxu0
    %2886 = vrot.lane.b32.xlu0 %v2874, 96
    %v2887 = vpop.permute.xlu0 %2886
    %v2889 = vsel %vm337, %v2850, 0
    %v2892 = vsel %vm337, %v2853, 0
    %v2894 = vsel %vm337, %v2887, 0
    %2896 = vmatpush.xpose.msra.mxu0 0.0
    %2897 = vmatpush.xpose.msra.mxu0 0.0
    %2898 = vmatpush.xpose.msra.mxu0 0.0
    %2899 = vmatpush.xpose.msra.mxu0 0.0
    %2900 = vmatpush.xpose.msra.mxu0 0.0
    %2901 = vmatpush.xpose.msra.mxu0 0.0
    %2902 = vmatpush.xpose.msra.mxu0 0.0
    %2903 = vmatpush.xpose.msra.mxu0 0.0
    %2904 = vmatpush.xpose.msra.mxu0 0.0
    %2905 = vmatpush.xpose.msra.mxu0 0.0
    %2906 = vmatpush.xpose.msra.mxu0 0.0
    %2907 = vmatpush.xpose.msra.mxu0 0.0
    %2908 = vmatpush.xpose.msra.mxu0 0.0
    %2909 = vmatpush.xpose.msra.mxu0 0.0
    %2910 = vmatpush.xpose.msra.mxu0 0.0
    %2911 = vmatpush.xpose.msra.mxu0 %v2894
    %2912 = vmatmul.f32.gmra.mxu0 %v2889
    %v2913 = vpop.f32.mrf.mxu0
    %v2914 = vadd.f32 0.0, %v2913
    %2915 = vmatmul.f32.gmra.mxu0 %v2892
    %v2916 = vpop.f32.mrf.mxu0
    %v2917 = vadd.f32 0.0, %v2916
    %2918 = vdwg.mxu0
    %2920 = vrot.lane.b32.xlu0 %v2877, 96
    %v2921 = vpop.permute.xlu0 %2920
    %v2923 = vsel %vm337, %v2856, 0
    %v2926 = vsel %vm337, %v2859, 0
    %v2928 = vsel %vm337, %v2921, 0
    %2930 = vmatpush.xpose.msra.mxu0 0.0
    %2931 = vmatpush.xpose.msra.mxu0 0.0
    %2932 = vmatpush.xpose.msra.mxu0 0.0
    %2933 = vmatpush.xpose.msra.mxu0 0.0
    %2934 = vmatpush.xpose.msra.mxu0 0.0
    %2935 = vmatpush.xpose.msra.mxu0 0.0
    %2936 = vmatpush.xpose.msra.mxu0 0.0
    %2937 = vmatpush.xpose.msra.mxu0 0.0
    %2938 = vmatpush.xpose.msra.mxu0 0.0
    %2939 = vmatpush.xpose.msra.mxu0 0.0
    %2940 = vmatpush.xpose.msra.mxu0 0.0
    %2941 = vmatpush.xpose.msra.mxu0 0.0
    %2942 = vmatpush.xpose.msra.mxu0 0.0
    %2943 = vmatpush.xpose.msra.mxu0 0.0
    %2944 = vmatpush.xpose.msra.mxu0 0.0
    %2945 = vmatpush.xpose.msra.mxu0 %v2928
    %2946 = vmatmul.f32.gmra.mxu0 %v2923
    %v2947 = vpop.f32.mrf.mxu0
    %v2948 = vadd.f32 0.0, %v2947
    %2949 = vmatmul.f32.gmra.mxu0 %v2926
    %v2950 = vpop.f32.mrf.mxu0
    %v2951 = vadd.f32 0.0, %v2950
    %2952 = vdwg.mxu0
    %2954 = vrot.lane.b32.xlu0 %v2880, 96
    %v2955 = vpop.permute.xlu0 %2954
    %v2957 = vsel %vm337, %v2862, 0
    %v2960 = vsel %vm337, %v2865, 0
    %v2962 = vsel %vm337, %v2955, 0
    %2964 = vmatpush.xpose.msra.mxu0 0.0
    %2965 = vmatpush.xpose.msra.mxu0 0.0
    %2966 = vmatpush.xpose.msra.mxu0 0.0
    %2967 = vmatpush.xpose.msra.mxu0 0.0
    %2968 = vmatpush.xpose.msra.mxu0 0.0
    %2969 = vmatpush.xpose.msra.mxu0 0.0
    %2970 = vmatpush.xpose.msra.mxu0 0.0
    %2971 = vmatpush.xpose.msra.mxu0 0.0
    %2972 = vmatpush.xpose.msra.mxu0 0.0
    %2973 = vmatpush.xpose.msra.mxu0 0.0
    %2974 = vmatpush.xpose.msra.mxu0 0.0
    %2975 = vmatpush.xpose.msra.mxu0 0.0
    %2976 = vmatpush.xpose.msra.mxu0 0.0
    %2977 = vmatpush.xpose.msra.mxu0 0.0
    %2978 = vmatpush.xpose.msra.mxu0 0.0
    %2979 = vmatpush.xpose.msra.mxu0 %v2962
    %2980 = vmatmul.f32.gmra.mxu0 %v2957
    %v2981 = vpop.f32.mrf.mxu0
    %v2982 = vadd.f32 0.0, %v2981
    %2983 = vmatmul.f32.gmra.mxu0 %v2960
    %v2984 = vpop.f32.mrf.mxu0
    %v2985 = vadd.f32 0.0, %v2984
    %2986 = vdwg.mxu0
    %2988 = vrot.lane.b32.xlu0 %v2883, 96
    %v2989 = vpop.permute.xlu0 %2988
    %v2991 = vsel %vm337, %v2868, 0
    %v2994 = vsel %vm337, %v2871, 0
    %v2996 = vsel %vm337, %v2989, 0
    %2998 = vmatpush.xpose.msra.mxu0 0.0
    %2999 = vmatpush.xpose.msra.mxu0 0.0
    %3000 = vmatpush.xpose.msra.mxu0 0.0
    %3001 = vmatpush.xpose.msra.mxu0 0.0
    %3002 = vmatpush.xpose.msra.mxu0 0.0
    %3003 = vmatpush.xpose.msra.mxu0 0.0
    %3004 = vmatpush.xpose.msra.mxu0 0.0
    %3005 = vmatpush.xpose.msra.mxu0 0.0
    %3006 = vmatpush.xpose.msra.mxu0 0.0
    %3007 = vmatpush.xpose.msra.mxu0 0.0
    %3008 = vmatpush.xpose.msra.mxu0 0.0
    %3009 = vmatpush.xpose.msra.mxu0 0.0
    %3010 = vmatpush.xpose.msra.mxu0 0.0
    %3011 = vmatpush.xpose.msra.mxu0 0.0
    %3012 = vmatpush.xpose.msra.mxu0 0.0
    %3013 = vmatpush.xpose.msra.mxu0 %v2996
    %3014 = vmatmul.f32.gmra.mxu0 %v2991
    %v3015 = vpop.f32.mrf.mxu0
    %v3016 = vadd.f32 0.0, %v3015
    %3017 = vmatmul.f32.gmra.mxu0 %v2994
    %v3018 = vpop.f32.mrf.mxu0
    %v3019 = vadd.f32 0.0, %v3018
    %3020 = vdwg.mxu0
    %v3021 = vsel %vm337, %v2914, -inf
    %3022 = vmax.xlane.f32.xlu0 %v3021
    %v3023 = vpop.xlane.xlu0 %3022
    %v3024 = vsel %vm337, %v2917, -inf
    %3025 = vmax.xlane.f32.xlu0 %v3024
    %v3026 = vpop.xlane.xlu0 %3025
    %v3027 = vsel %vm337, %v2948, -inf
    %3028 = vmax.xlane.f32.xlu0 %v3027
    %v3029 = vpop.xlane.xlu0 %3028
    %v3030 = vsel %vm337, %v2951, -inf
    %3031 = vmax.xlane.f32.xlu0 %v3030
    %v3032 = vpop.xlane.xlu0 %3031
    %v3033 = vsel %vm337, %v2982, -inf
    %3034 = vmax.xlane.f32.xlu0 %v3033
    %v3035 = vpop.xlane.xlu0 %3034
    %v3036 = vsel %vm337, %v2985, -inf
    %3037 = vmax.xlane.f32.xlu0 %v3036
    %v3038 = vpop.xlane.xlu0 %3037
    %v3039 = vsel %vm337, %v3016, -inf
    %3040 = vmax.xlane.f32.xlu0 %v3039
    %v3041 = vpop.xlane.xlu0 %3040
    %v3042 = vsel %vm337, %v3019, -inf
    %3043 = vmax.xlane.f32.xlu0 %v3042
    %v3044 = vpop.xlane.xlu0 %3043
    %v3045 = vsub.f32 %v2914, %v3023
    %v3046 = vsub.f32 %v2917, %v3026
    %v3047 = vsub.f32 %v2948, %v3029
    %v3048 = vsub.f32 %v2951, %v3032
    %v3049 = vsub.f32 %v2982, %v3035
    %v3050 = vsub.f32 %v2985, %v3038
    %v3051 = vsub.f32 %v3016, %v3041
    %v3052 = vsub.f32 %v3019, %v3044
    %v3053 = vmul.f32 %v3045, 1.442695
    %v3054 = vpow.pop %v3053
    %v3055 = vmul.f32 %v3046, 1.442695
    %v3056 = vpow.pop %v3055
    %v3057 = vmul.f32 %v3047, 1.442695
    %v3058 = vpow.pop %v3057
    %v3059 = vmul.f32 %v3048, 1.442695
    %v3060 = vpow.pop %v3059
    %v3061 = vmul.f32 %v3049, 1.442695
    %v3062 = vpow.pop %v3061
    %v3063 = vmul.f32 %v3050, 1.442695
    %v3064 = vpow.pop %v3063
    %v3065 = vmul.f32 %v3051, 1.442695
    %v3066 = vpow.pop %v3065
    %v3067 = vmul.f32 %v3052, 1.442695
    %v3068 = vpow.pop %v3067
    %v3069 = vsel %vm337, %v3054, 0.0
    %3070 = vadd.xlane.f32.xlu0 %v3069
    %v3071 = vpop.xlane.xlu0 %3070
    %v3072 = vsel %vm337, %v3056, 0.0
    %3073 = vadd.xlane.f32.xlu0 %v3072
    %v3074 = vpop.xlane.xlu0 %3073
    %v3075 = vsel %vm337, %v3058, 0.0
    %3076 = vadd.xlane.f32.xlu0 %v3075
    %v3077 = vpop.xlane.xlu0 %3076
    %v3078 = vsel %vm337, %v3060, 0.0
    %3079 = vadd.xlane.f32.xlu0 %v3078
    %v3080 = vpop.xlane.xlu0 %3079
    %v3081 = vsel %vm337, %v3062, 0.0
    %3082 = vadd.xlane.f32.xlu0 %v3081
    %v3083 = vpop.xlane.xlu0 %3082
    %v3084 = vsel %vm337, %v3064, 0.0
    %3085 = vadd.xlane.f32.xlu0 %v3084
    %v3086 = vpop.xlane.xlu0 %3085
    %v3087 = vsel %vm337, %v3066, 0.0
    %3088 = vadd.xlane.f32.xlu0 %v3087
    %v3089 = vpop.xlane.xlu0 %3088
    %v3090 = vsel %vm337, %v3068, 0.0
    %3091 = vadd.xlane.f32.xlu0 %v3090
    %v3092 = vpop.xlane.xlu0 %3091
    %v3093 = vrcp.pop %v3071
    %v3094 = vmul.f32 %v3071, %v3093
    %v3095 = vsub.f32 1.0, %v3094
    %v3096 = vmul.f32 %v3093, %v3095
    %v3097 = vadd.f32 %v3093, %v3096
    %vm3098 = vweird.f32 %v3071
    %vm3099 = vweird.f32 %v3093
    %vm3100 = vmor %vm3098, %vm3099
    %v3101 = vsel %vm3100, %v3093, %v3097
    %v3102 = vand.u32 2147483647, %v3071
    %vm3103 = vcmp.eq.f32.partialorder %v3102, 8.507059e+37
    %v3104 = vand.u32 %v3071, 2147483648
    %v3105 = vor.u32 1.1754944e-38, %v3104
    %v3106 = vsel %vm3103, %v3105, %v3101
    %v3107 = vmul.f32 %v3054, %v3106
    %v3108 = vrcp.pop %v3074
    %v3109 = vmul.f32 %v3074, %v3108
    %v3110 = vsub.f32 1.0, %v3109
    %v3111 = vmul.f32 %v3108, %v3110
    %v3112 = vadd.f32 %v3108, %v3111
    %vm3113 = vweird.f32 %v3074
    %vm3114 = vweird.f32 %v3108
    %vm3115 = vmor %vm3113, %vm3114
    %v3116 = vsel %vm3115, %v3108, %v3112
    %v3117 = vand.u32 2147483647, %v3074
    %vm3118 = vcmp.eq.f32.partialorder %v3117, 8.507059e+37
    %v3119 = vand.u32 %v3074, 2147483648
    %v3120 = vor.u32 1.1754944e-38, %v3119
    %v3121 = vsel %vm3118, %v3120, %v3116
    %v3122 = vmul.f32 %v3056, %v3121
    %v3123 = vrcp.pop %v3077
    %v3124 = vmul.f32 %v3077, %v3123
    %v3125 = vsub.f32 1.0, %v3124
    %v3126 = vmul.f32 %v3123, %v3125
    %v3127 = vadd.f32 %v3123, %v3126
    %vm3128 = vweird.f32 %v3077
    %vm3129 = vweird.f32 %v3123
    %vm3130 = vmor %vm3128, %vm3129
    %v3131 = vsel %vm3130, %v3123, %v3127
    %v3132 = vand.u32 2147483647, %v3077
    %vm3133 = vcmp.eq.f32.partialorder %v3132, 8.507059e+37
    %v3134 = vand.u32 %v3077, 2147483648
    %v3135 = vor.u32 1.1754944e-38, %v3134
    %v3136 = vsel %vm3133, %v3135, %v3131
    %v3137 = vmul.f32 %v3058, %v3136
    %v3138 = vrcp.pop %v3080
    %v3139 = vmul.f32 %v3080, %v3138
    %v3140 = vsub.f32 1.0, %v3139
    %v3141 = vmul.f32 %v3138, %v3140
    %v3142 = vadd.f32 %v3138, %v3141
    %vm3143 = vweird.f32 %v3080
    %vm3144 = vweird.f32 %v3138
    %vm3145 = vmor %vm3143, %vm3144
    %v3146 = vsel %vm3145, %v3138, %v3142
    %v3147 = vand.u32 2147483647, %v3080
    %vm3148 = vcmp.eq.f32.partialorder %v3147, 8.507059e+37
    %v3149 = vand.u32 %v3080, 2147483648
    %v3150 = vor.u32 1.1754944e-38, %v3149
    %v3151 = vsel %vm3148, %v3150, %v3146
    %v3152 = vmul.f32 %v3060, %v3151
    %v3153 = vrcp.pop %v3083
    %v3154 = vmul.f32 %v3083, %v3153
    %v3155 = vsub.f32 1.0, %v3154
    %v3156 = vmul.f32 %v3153, %v3155
    %v3157 = vadd.f32 %v3153, %v3156
    %vm3158 = vweird.f32 %v3083
    %vm3159 = vweird.f32 %v3153
    %vm3160 = vmor %vm3158, %vm3159
    %v3161 = vsel %vm3160, %v3153, %v3157
    %v3162 = vand.u32 2147483647, %v3083
    %vm3163 = vcmp.eq.f32.partialorder %v3162, 8.507059e+37
    %v3164 = vand.u32 %v3083, 2147483648
    %v3165 = vor.u32 1.1754944e-38, %v3164
    %v3166 = vsel %vm3163, %v3165, %v3161
    %v3167 = vmul.f32 %v3062, %v3166
    %v3168 = vrcp.pop %v3086
    %v3169 = vmul.f32 %v3086, %v3168
    %v3170 = vsub.f32 1.0, %v3169
    %v3171 = vmul.f32 %v3168, %v3170
    %v3172 = vadd.f32 %v3168, %v3171
    %vm3173 = vweird.f32 %v3086
    %vm3174 = vweird.f32 %v3168
    %vm3175 = vmor %vm3173, %vm3174
    %v3176 = vsel %vm3175, %v3168, %v3172
    %v3177 = vand.u32 2147483647, %v3086
    %vm3178 = vcmp.eq.f32.partialorder %v3177, 8.507059e+37
    %v3179 = vand.u32 %v3086, 2147483648
    %v3180 = vor.u32 1.1754944e-38, %v3179
    %v3181 = vsel %vm3178, %v3180, %v3176
    %v3182 = vmul.f32 %v3064, %v3181
    %v3183 = vrcp.pop %v3089
    %v3184 = vmul.f32 %v3089, %v3183
    %v3185 = vsub.f32 1.0, %v3184
    %v3186 = vmul.f32 %v3183, %v3185
    %v3187 = vadd.f32 %v3183, %v3186
    %vm3188 = vweird.f32 %v3089
    %vm3189 = vweird.f32 %v3183
    %vm3190 = vmor %vm3188, %vm3189
    %v3191 = vsel %vm3190, %v3183, %v3187
    %v3192 = vand.u32 2147483647, %v3089
    %vm3193 = vcmp.eq.f32.partialorder %v3192, 8.507059e+37
    %v3194 = vand.u32 %v3089, 2147483648
    %v3195 = vor.u32 1.1754944e-38, %v3194
    %v3196 = vsel %vm3193, %v3195, %v3191
    %v3197 = vmul.f32 %v3066, %v3196
    %v3198 = vrcp.pop %v3092
    %v3199 = vmul.f32 %v3092, %v3198
    %v3200 = vsub.f32 1.0, %v3199
    %v3201 = vmul.f32 %v3198, %v3200
    %v3202 = vadd.f32 %v3198, %v3201
    %vm3203 = vweird.f32 %v3092
    %vm3204 = vweird.f32 %v3198
    %vm3205 = vmor %vm3203, %vm3204
    %v3206 = vsel %vm3205, %v3198, %v3202
    %v3207 = vand.u32 2147483647, %v3092
    %vm3208 = vcmp.eq.f32.partialorder %v3207, 8.507059e+37
    %v3209 = vand.u32 %v3092, 2147483648
    %v3210 = vor.u32 1.1754944e-38, %v3209
    %v3211 = vsel %vm3208, %v3210, %v3206
    %v3212 = vmul.f32 %v3068, %v3211
    %3213 = vrot.lane.b32.xlu0 %v2874, 64
    %v3214 = vpop.permute.xlu0 %3213
    %v3217 = vsel %vm337, %v3107, 0
    %v3220 = vsel %vm337, %v3122, 0
    %3222 = vmatpush.msra.mxu0 0.0
    %3223 = vmatpush.msra.mxu0 0.0
    %3224 = vmatpush.msra.mxu0 0.0
    %3225 = vmatpush.msra.mxu0 0.0
    %3226 = vmatpush.msra.mxu0 0.0
    %3227 = vmatpush.msra.mxu0 0.0
    %3228 = vmatpush.msra.mxu0 0.0
    %3229 = vmatpush.msra.mxu0 0.0
    %3230 = vmatpush.msra.mxu0 0.0
    %3231 = vmatpush.msra.mxu0 0.0
    %3232 = vmatpush.msra.mxu0 0.0
    %3233 = vmatpush.msra.mxu0 0.0
    %3234 = vmatpush.msra.mxu0 0.0
    %3235 = vmatpush.msra.mxu0 0.0
    %3236 = vmatpush.msra.mxu0 0.0
    %3237 = vmatpush.msra.mxu0 %v3214
    %3238 = vmatmul.f32.gmra.mxu0 %v3217
    %v3239 = vpop.f32.mrf.mxu0
    %v3240 = vadd.f32 0.0, %v3239
    %3241 = vmatmul.f32.gmra.mxu0 %v3220
    %v3242 = vpop.f32.mrf.mxu0
    %v3243 = vadd.f32 0.0, %v3242
    %3244 = vdwg.mxu0
    %3245 = vrot.lane.b32.xlu0 %v2877, 64
    %v3246 = vpop.permute.xlu0 %3245
    %v3249 = vsel %vm337, %v3137, 0
    %v3252 = vsel %vm337, %v3152, 0
    %3254 = vmatpush.msra.mxu0 0.0
    %3255 = vmatpush.msra.mxu0 0.0
    %3256 = vmatpush.msra.mxu0 0.0
    %3257 = vmatpush.msra.mxu0 0.0
    %3258 = vmatpush.msra.mxu0 0.0
    %3259 = vmatpush.msra.mxu0 0.0
    %3260 = vmatpush.msra.mxu0 0.0
    %3261 = vmatpush.msra.mxu0 0.0
    %3262 = vmatpush.msra.mxu0 0.0
    %3263 = vmatpush.msra.mxu0 0.0
    %3264 = vmatpush.msra.mxu0 0.0
    %3265 = vmatpush.msra.mxu0 0.0
    %3266 = vmatpush.msra.mxu0 0.0
    %3267 = vmatpush.msra.mxu0 0.0
    %3268 = vmatpush.msra.mxu0 0.0
    %3269 = vmatpush.msra.mxu0 %v3246
    %3270 = vmatmul.f32.gmra.mxu0 %v3249
    %v3271 = vpop.f32.mrf.mxu0
    %v3272 = vadd.f32 0.0, %v3271
    %3273 = vmatmul.f32.gmra.mxu0 %v3252
    %v3274 = vpop.f32.mrf.mxu0
    %v3275 = vadd.f32 0.0, %v3274
    %3276 = vdwg.mxu0
    %3277 = vrot.lane.b32.xlu0 %v2880, 64
    %v3278 = vpop.permute.xlu0 %3277
    %v3281 = vsel %vm337, %v3167, 0
    %v3284 = vsel %vm337, %v3182, 0
    %3286 = vmatpush.msra.mxu0 0.0
    %3287 = vmatpush.msra.mxu0 0.0
    %3288 = vmatpush.msra.mxu0 0.0
    %3289 = vmatpush.msra.mxu0 0.0
    %3290 = vmatpush.msra.mxu0 0.0
    %3291 = vmatpush.msra.mxu0 0.0
    %3292 = vmatpush.msra.mxu0 0.0
    %3293 = vmatpush.msra.mxu0 0.0
    %3294 = vmatpush.msra.mxu0 0.0
    %3295 = vmatpush.msra.mxu0 0.0
    %3296 = vmatpush.msra.mxu0 0.0
    %3297 = vmatpush.msra.mxu0 0.0
    %3298 = vmatpush.msra.mxu0 0.0
    %3299 = vmatpush.msra.mxu0 0.0
    %3300 = vmatpush.msra.mxu0 0.0
    %3301 = vmatpush.msra.mxu0 %v3278
    %3302 = vmatmul.f32.gmra.mxu0 %v3281
    %v3303 = vpop.f32.mrf.mxu0
    %v3304 = vadd.f32 0.0, %v3303
    %3305 = vmatmul.f32.gmra.mxu0 %v3284
    %v3306 = vpop.f32.mrf.mxu0
    %v3307 = vadd.f32 0.0, %v3306
    %3308 = vdwg.mxu0
    %3309 = vrot.lane.b32.xlu0 %v2883, 64
    %v3310 = vpop.permute.xlu0 %3309
    %v3313 = vsel %vm337, %v3197, 0
    %v3316 = vsel %vm337, %v3212, 0
    %3318 = vmatpush.msra.mxu0 0.0
    %3319 = vmatpush.msra.mxu0 0.0
    %3320 = vmatpush.msra.mxu0 0.0
    %3321 = vmatpush.msra.mxu0 0.0
    %3322 = vmatpush.msra.mxu0 0.0
    %3323 = vmatpush.msra.mxu0 0.0
    %3324 = vmatpush.msra.mxu0 0.0
    %3325 = vmatpush.msra.mxu0 0.0
    %3326 = vmatpush.msra.mxu0 0.0
    %3327 = vmatpush.msra.mxu0 0.0
    %3328 = vmatpush.msra.mxu0 0.0
    %3329 = vmatpush.msra.mxu0 0.0
    %3330 = vmatpush.msra.mxu0 0.0
    %3331 = vmatpush.msra.mxu0 0.0
    %3332 = vmatpush.msra.mxu0 0.0
    %3333 = vmatpush.msra.mxu0 %v3310
    %3334 = vmatmul.f32.gmra.mxu0 %v3313
    %v3335 = vpop.f32.mrf.mxu0
    %v3336 = vadd.f32 0.0, %v3335
    %3337 = vmatmul.f32.gmra.mxu0 %v3316
    %v3338 = vpop.f32.mrf.mxu0
    %v3339 = vadd.f32 0.0, %v3338
    %3340 = vdwg.mxu0
    %3341 = vrot.lane.b32.xlu0 %v2850, 120
    %v3342 = vpop.permute.xlu0 %3341
    %3343 = vrot.lane.b32.xlu0 %v2853, 120
    %v3344 = vpop.permute.xlu0 %3343
    %3345 = vrot.lane.b32.xlu0 %v2874, 88
    %v3346 = vpop.permute.xlu0 %3345
    %v3347 = vsel %vm337, %v3342, 0
    %v3349 = vsel %vm337, %v3344, 0
    %v3351 = vsel %vm337, %v3346, 0
    %3353 = vmatpush.xpose.msra.mxu0 0.0
    %3354 = vmatpush.xpose.msra.mxu0 0.0
    %3355 = vmatpush.xpose.msra.mxu0 0.0
    %3356 = vmatpush.xpose.msra.mxu0 0.0
    %3357 = vmatpush.xpose.msra.mxu0 0.0
    %3358 = vmatpush.xpose.msra.mxu0 0.0
    %3359 = vmatpush.xpose.msra.mxu0 0.0
    %3360 = vmatpush.xpose.msra.mxu0 0.0
    %3361 = vmatpush.xpose.msra.mxu0 0.0
    %3362 = vmatpush.xpose.msra.mxu0 0.0
    %3363 = vmatpush.xpose.msra.mxu0 0.0
    %3364 = vmatpush.xpose.msra.mxu0 0.0
    %3365 = vmatpush.xpose.msra.mxu0 0.0
    %3366 = vmatpush.xpose.msra.mxu0 0.0
    %3367 = vmatpush.xpose.msra.mxu0 0.0
    %3368 = vmatpush.xpose.msra.mxu0 %v3351
    %3369 = vmatmul.f32.gmra.mxu0 %v3347
    %v3370 = vpop.f32.mrf.mxu0
    %v3371 = vadd.f32 0.0, %v3370
    %3372 = vmatmul.f32.gmra.mxu0 %v3349
    %v3373 = vpop.f32.mrf.mxu0
    %v3374 = vadd.f32 0.0, %v3373
    %3375 = vdwg.mxu0
    %3376 = vrot.lane.b32.xlu0 %v2856, 120
    %v3377 = vpop.permute.xlu0 %3376
    %3378 = vrot.lane.b32.xlu0 %v2859, 120
    %v3379 = vpop.permute.xlu0 %3378
    %3380 = vrot.lane.b32.xlu0 %v2877, 88
    %v3381 = vpop.permute.xlu0 %3380
    %v3382 = vsel %vm337, %v3377, 0
    %v3384 = vsel %vm337, %v3379, 0
    %v3386 = vsel %vm337, %v3381, 0
    %3388 = vmatpush.xpose.msra.mxu0 0.0
    %3389 = vmatpush.xpose.msra.mxu0 0.0
    %3390 = vmatpush.xpose.msra.mxu0 0.0
    %3391 = vmatpush.xpose.msra.mxu0 0.0
    %3392 = vmatpush.xpose.msra.mxu0 0.0
    %3393 = vmatpush.xpose.msra.mxu0 0.0
    %3394 = vmatpush.xpose.msra.mxu0 0.0
    %3395 = vmatpush.xpose.msra.mxu0 0.0
    %3396 = vmatpush.xpose.msra.mxu0 0.0
    %3397 = vmatpush.xpose.msra.mxu0 0.0
    %3398 = vmatpush.xpose.msra.mxu0 0.0
    %3399 = vmatpush.xpose.msra.mxu0 0.0
    %3400 = vmatpush.xpose.msra.mxu0 0.0
    %3401 = vmatpush.xpose.msra.mxu0 0.0
    %3402 = vmatpush.xpose.msra.mxu0 0.0
    %3403 = vmatpush.xpose.msra.mxu0 %v3386
    %3404 = vmatmul.f32.gmra.mxu0 %v3382
    %v3405 = vpop.f32.mrf.mxu0
    %v3406 = vadd.f32 0.0, %v3405
    %3407 = vmatmul.f32.gmra.mxu0 %v3384
    %v3408 = vpop.f32.mrf.mxu0
    %v3409 = vadd.f32 0.0, %v3408
    %3410 = vdwg.mxu0
    %3411 = vrot.lane.b32.xlu0 %v2862, 120
    %v3412 = vpop.permute.xlu0 %3411
    %3413 = vrot.lane.b32.xlu0 %v2865, 120
    %v3414 = vpop.permute.xlu0 %3413
    %3415 = vrot.lane.b32.xlu0 %v2880, 88
    %v3416 = vpop.permute.xlu0 %3415
    %v3417 = vsel %vm337, %v3412, 0
    %v3419 = vsel %vm337, %v3414, 0
    %v3421 = vsel %vm337, %v3416, 0
    %3423 = vmatpush.xpose.msra.mxu0 0.0
    %3424 = vmatpush.xpose.msra.mxu0 0.0
    %3425 = vmatpush.xpose.msra.mxu0 0.0
    %3426 = vmatpush.xpose.msra.mxu0 0.0
    %3427 = vmatpush.xpose.msra.mxu0 0.0
    %3428 = vmatpush.xpose.msra.mxu0 0.0
    %3429 = vmatpush.xpose.msra.mxu0 0.0
    %3430 = vmatpush.xpose.msra.mxu0 0.0
    %3431 = vmatpush.xpose.msra.mxu0 0.0
    %3432 = vmatpush.xpose.msra.mxu0 0.0
    %3433 = vmatpush.xpose.msra.mxu0 0.0
    %3434 = vmatpush.xpose.msra.mxu0 0.0
    %3435 = vmatpush.xpose.msra.mxu0 0.0
    %3436 = vmatpush.xpose.msra.mxu0 0.0
    %3437 = vmatpush.xpose.msra.mxu0 0.0
    %3438 = vmatpush.xpose.msra.mxu0 %v3421
    %3439 = vmatmul.f32.gmra.mxu0 %v3417
    %v3440 = vpop.f32.mrf.mxu0
    %v3441 = vadd.f32 0.0, %v3440
    %3442 = vmatmul.f32.gmra.mxu0 %v3419
    %v3443 = vpop.f32.mrf.mxu0
    %v3444 = vadd.f32 0.0, %v3443
    %3445 = vdwg.mxu0
    %3446 = vrot.lane.b32.xlu0 %v2868, 120
    %v3447 = vpop.permute.xlu0 %3446
    %3448 = vrot.lane.b32.xlu0 %v2871, 120
    %v3449 = vpop.permute.xlu0 %3448
    %3450 = vrot.lane.b32.xlu0 %v2883, 88
    %v3451 = vpop.permute.xlu0 %3450
    %v3452 = vsel %vm337, %v3447, 0
    %v3454 = vsel %vm337, %v3449, 0
    %v3456 = vsel %vm337, %v3451, 0
    %3458 = vmatpush.xpose.msra.mxu0 0.0
    %3459 = vmatpush.xpose.msra.mxu0 0.0
    %3460 = vmatpush.xpose.msra.mxu0 0.0
    %3461 = vmatpush.xpose.msra.mxu0 0.0
    %3462 = vmatpush.xpose.msra.mxu0 0.0
    %3463 = vmatpush.xpose.msra.mxu0 0.0
    %3464 = vmatpush.xpose.msra.mxu0 0.0
    %3465 = vmatpush.xpose.msra.mxu0 0.0
    %3466 = vmatpush.xpose.msra.mxu0 0.0
    %3467 = vmatpush.xpose.msra.mxu0 0.0
    %3468 = vmatpush.xpose.msra.mxu0 0.0
    %3469 = vmatpush.xpose.msra.mxu0 0.0
    %3470 = vmatpush.xpose.msra.mxu0 0.0
    %3471 = vmatpush.xpose.msra.mxu0 0.0
    %3472 = vmatpush.xpose.msra.mxu0 0.0
    %3473 = vmatpush.xpose.msra.mxu0 %v3456
    %3474 = vmatmul.f32.gmra.mxu0 %v3452
    %v3475 = vpop.f32.mrf.mxu0
    %v3476 = vadd.f32 0.0, %v3475
    %3477 = vmatmul.f32.gmra.mxu0 %v3454
    %v3478 = vpop.f32.mrf.mxu0
    %v3479 = vadd.f32 0.0, %v3478
    %3480 = vdwg.mxu0
    %v3481 = vsel %vm337, %v3371, -inf
    %3482 = vmax.xlane.f32.xlu0 %v3481
    %v3483 = vpop.xlane.xlu0 %3482
    %v3484 = vsel %vm337, %v3374, -inf
    %3485 = vmax.xlane.f32.xlu0 %v3484
    %v3486 = vpop.xlane.xlu0 %3485
    %v3487 = vsel %vm337, %v3406, -inf
    %3488 = vmax.xlane.f32.xlu0 %v3487
    %v3489 = vpop.xlane.xlu0 %3488
    %v3490 = vsel %vm337, %v3409, -inf
    %3491 = vmax.xlane.f32.xlu0 %v3490
    %v3492 = vpop.xlane.xlu0 %3491
    %v3493 = vsel %vm337, %v3441, -inf
    %3494 = vmax.xlane.f32.xlu0 %v3493
    %v3495 = vpop.xlane.xlu0 %3494
    %v3496 = vsel %vm337, %v3444, -inf
    %3497 = vmax.xlane.f32.xlu0 %v3496
    %v3498 = vpop.xlane.xlu0 %3497
    %v3499 = vsel %vm337, %v3476, -inf
    %3500 = vmax.xlane.f32.xlu0 %v3499
    %v3501 = vpop.xlane.xlu0 %3500
    %v3502 = vsel %vm337, %v3479, -inf
    %3503 = vmax.xlane.f32.xlu0 %v3502
    %v3504 = vpop.xlane.xlu0 %3503
    %v3505 = vsub.f32 %v3371, %v3483
    %v3506 = vsub.f32 %v3374, %v3486
    %v3507 = vsub.f32 %v3406, %v3489
    %v3508 = vsub.f32 %v3409, %v3492
    %v3509 = vsub.f32 %v3441, %v3495
    %v3510 = vsub.f32 %v3444, %v3498
    %v3511 = vsub.f32 %v3476, %v3501
    %v3512 = vsub.f32 %v3479, %v3504
    %v3513 = vmul.f32 %v3505, 1.442695
    %v3514 = vpow.pop %v3513
    %v3515 = vmul.f32 %v3506, 1.442695
    %v3516 = vpow.pop %v3515
    %v3517 = vmul.f32 %v3507, 1.442695
    %v3518 = vpow.pop %v3517
    %v3519 = vmul.f32 %v3508, 1.442695
    %v3520 = vpow.pop %v3519
    %v3521 = vmul.f32 %v3509, 1.442695
    %v3522 = vpow.pop %v3521
    %v3523 = vmul.f32 %v3510, 1.442695
    %v3524 = vpow.pop %v3523
    %v3525 = vmul.f32 %v3511, 1.442695
    %v3526 = vpow.pop %v3525
    %v3527 = vmul.f32 %v3512, 1.442695
    %v3528 = vpow.pop %v3527
    %v3529 = vsel %vm337, %v3514, 0.0
    %3530 = vadd.xlane.f32.xlu0 %v3529
    %v3531 = vpop.xlane.xlu0 %3530
    %v3532 = vsel %vm337, %v3516, 0.0
    %3533 = vadd.xlane.f32.xlu0 %v3532
    %v3534 = vpop.xlane.xlu0 %3533
    %v3535 = vsel %vm337, %v3518, 0.0
    %3536 = vadd.xlane.f32.xlu0 %v3535
    %v3537 = vpop.xlane.xlu0 %3536
    %v3538 = vsel %vm337, %v3520, 0.0
    %3539 = vadd.xlane.f32.xlu0 %v3538
    %v3540 = vpop.xlane.xlu0 %3539
    %v3541 = vsel %vm337, %v3522, 0.0
    %3542 = vadd.xlane.f32.xlu0 %v3541
    %v3543 = vpop.xlane.xlu0 %3542
    %v3544 = vsel %vm337, %v3524, 0.0
    %3545 = vadd.xlane.f32.xlu0 %v3544
    %v3546 = vpop.xlane.xlu0 %3545
    %v3547 = vsel %vm337, %v3526, 0.0
    %3548 = vadd.xlane.f32.xlu0 %v3547
    %v3549 = vpop.xlane.xlu0 %3548
    %v3550 = vsel %vm337, %v3528, 0.0
    %3551 = vadd.xlane.f32.xlu0 %v3550
    %v3552 = vpop.xlane.xlu0 %3551
    %v3553 = vrcp.pop %v3531
    %v3554 = vmul.f32 %v3531, %v3553
    %v3555 = vsub.f32 1.0, %v3554
    %v3556 = vmul.f32 %v3553, %v3555
    %v3557 = vadd.f32 %v3553, %v3556
    %vm3558 = vweird.f32 %v3531
    %vm3559 = vweird.f32 %v3553
    %vm3560 = vmor %vm3558, %vm3559
    %v3561 = vsel %vm3560, %v3553, %v3557
    %v3562 = vand.u32 2147483647, %v3531
    %vm3563 = vcmp.eq.f32.partialorder %v3562, 8.507059e+37
    %v3564 = vand.u32 %v3531, 2147483648
    %v3565 = vor.u32 1.1754944e-38, %v3564
    %v3566 = vsel %vm3563, %v3565, %v3561
    %v3567 = vmul.f32 %v3514, %v3566
    %v3568 = vrcp.pop %v3534
    %v3569 = vmul.f32 %v3534, %v3568
    %v3570 = vsub.f32 1.0, %v3569
    %v3571 = vmul.f32 %v3568, %v3570
    %v3572 = vadd.f32 %v3568, %v3571
    %vm3573 = vweird.f32 %v3534
    %vm3574 = vweird.f32 %v3568
    %vm3575 = vmor %vm3573, %vm3574
    %v3576 = vsel %vm3575, %v3568, %v3572
    %v3577 = vand.u32 2147483647, %v3534
    %vm3578 = vcmp.eq.f32.partialorder %v3577, 8.507059e+37
    %v3579 = vand.u32 %v3534, 2147483648
    %v3580 = vor.u32 1.1754944e-38, %v3579
    %v3581 = vsel %vm3578, %v3580, %v3576
    %v3582 = vmul.f32 %v3516, %v3581
    %v3583 = vrcp.pop %v3537
    %v3584 = vmul.f32 %v3537, %v3583
    %v3585 = vsub.f32 1.0, %v3584
    %v3586 = vmul.f32 %v3583, %v3585
    %v3587 = vadd.f32 %v3583, %v3586
    %vm3588 = vweird.f32 %v3537
    %vm3589 = vweird.f32 %v3583
    %vm3590 = vmor %vm3588, %vm3589
    %v3591 = vsel %vm3590, %v3583, %v3587
    %v3592 = vand.u32 2147483647, %v3537
    %vm3593 = vcmp.eq.f32.partialorder %v3592, 8.507059e+37
    %v3594 = vand.u32 %v3537, 2147483648
    %v3595 = vor.u32 1.1754944e-38, %v3594
    %v3596 = vsel %vm3593, %v3595, %v3591
    %v3597 = vmul.f32 %v3518, %v3596
    %v3598 = vrcp.pop %v3540
    %v3599 = vmul.f32 %v3540, %v3598
    %v3600 = vsub.f32 1.0, %v3599
    %v3601 = vmul.f32 %v3598, %v3600
    %v3602 = vadd.f32 %v3598, %v3601
    %vm3603 = vweird.f32 %v3540
    %vm3604 = vweird.f32 %v3598
    %vm3605 = vmor %vm3603, %vm3604
    %v3606 = vsel %vm3605, %v3598, %v3602
    %v3607 = vand.u32 2147483647, %v3540
    %vm3608 = vcmp.eq.f32.partialorder %v3607, 8.507059e+37
    %v3609 = vand.u32 %v3540, 2147483648
    %v3610 = vor.u32 1.1754944e-38, %v3609
    %v3611 = vsel %vm3608, %v3610, %v3606
    %v3612 = vmul.f32 %v3520, %v3611
    %v3613 = vrcp.pop %v3543
    %v3614 = vmul.f32 %v3543, %v3613
    %v3615 = vsub.f32 1.0, %v3614
    %v3616 = vmul.f32 %v3613, %v3615
    %v3617 = vadd.f32 %v3613, %v3616
    %vm3618 = vweird.f32 %v3543
    %vm3619 = vweird.f32 %v3613
    %vm3620 = vmor %vm3618, %vm3619
    %v3621 = vsel %vm3620, %v3613, %v3617
    %v3622 = vand.u32 2147483647, %v3543
    %vm3623 = vcmp.eq.f32.partialorder %v3622, 8.507059e+37
    %v3624 = vand.u32 %v3543, 2147483648
    %v3625 = vor.u32 1.1754944e-38, %v3624
    %v3626 = vsel %vm3623, %v3625, %v3621
    %v3627 = vmul.f32 %v3522, %v3626
    %v3628 = vrcp.pop %v3546
    %v3629 = vmul.f32 %v3546, %v3628
    %v3630 = vsub.f32 1.0, %v3629
    %v3631 = vmul.f32 %v3628, %v3630
    %v3632 = vadd.f32 %v3628, %v3631
    %vm3633 = vweird.f32 %v3546
    %vm3634 = vweird.f32 %v3628
    %vm3635 = vmor %vm3633, %vm3634
    %v3636 = vsel %vm3635, %v3628, %v3632
    %v3637 = vand.u32 2147483647, %v3546
    %vm3638 = vcmp.eq.f32.partialorder %v3637, 8.507059e+37
    %v3639 = vand.u32 %v3546, 2147483648
    %v3640 = vor.u32 1.1754944e-38, %v3639
    %v3641 = vsel %vm3638, %v3640, %v3636
    %v3642 = vmul.f32 %v3524, %v3641
    %v3643 = vrcp.pop %v3549
    %v3644 = vmul.f32 %v3549, %v3643
    %v3645 = vsub.f32 1.0, %v3644
    %v3646 = vmul.f32 %v3643, %v3645
    %v3647 = vadd.f32 %v3643, %v3646
    %vm3648 = vweird.f32 %v3549
    %vm3649 = vweird.f32 %v3643
    %vm3650 = vmor %vm3648, %vm3649
    %v3651 = vsel %vm3650, %v3643, %v3647
    %v3652 = vand.u32 2147483647, %v3549
    %vm3653 = vcmp.eq.f32.partialorder %v3652, 8.507059e+37
    %v3654 = vand.u32 %v3549, 2147483648
    %v3655 = vor.u32 1.1754944e-38, %v3654
    %v3656 = vsel %vm3653, %v3655, %v3651
    %v3657 = vmul.f32 %v3526, %v3656
    %v3658 = vrcp.pop %v3552
    %v3659 = vmul.f32 %v3552, %v3658
    %v3660 = vsub.f32 1.0, %v3659
    %v3661 = vmul.f32 %v3658, %v3660
    %v3662 = vadd.f32 %v3658, %v3661
    %vm3663 = vweird.f32 %v3552
    %vm3664 = vweird.f32 %v3658
    %vm3665 = vmor %vm3663, %vm3664
    %v3666 = vsel %vm3665, %v3658, %v3662
    %v3667 = vand.u32 2147483647, %v3552
    %vm3668 = vcmp.eq.f32.partialorder %v3667, 8.507059e+37
    %v3669 = vand.u32 %v3552, 2147483648
    %v3670 = vor.u32 1.1754944e-38, %v3669
    %v3671 = vsel %vm3668, %v3670, %v3666
    %v3672 = vmul.f32 %v3528, %v3671
    %3673 = vrot.lane.b32.xlu0 %v2874, 56
    %v3674 = vpop.permute.xlu0 %3673
    %v3677 = vsel %vm337, %v3567, 0
    %v3680 = vsel %vm337, %v3582, 0
    %3682 = vmatpush.msra.mxu0 0.0
    %3683 = vmatpush.msra.mxu0 0.0
    %3684 = vmatpush.msra.mxu0 0.0
    %3685 = vmatpush.msra.mxu0 0.0
    %3686 = vmatpush.msra.mxu0 0.0
    %3687 = vmatpush.msra.mxu0 0.0
    %3688 = vmatpush.msra.mxu0 0.0
    %3689 = vmatpush.msra.mxu0 0.0
    %3690 = vmatpush.msra.mxu0 0.0
    %3691 = vmatpush.msra.mxu0 0.0
    %3692 = vmatpush.msra.mxu0 0.0
    %3693 = vmatpush.msra.mxu0 0.0
    %3694 = vmatpush.msra.mxu0 0.0
    %3695 = vmatpush.msra.mxu0 0.0
    %3696 = vmatpush.msra.mxu0 0.0
    %3697 = vmatpush.msra.mxu0 %v3674
    %3698 = vmatmul.f32.gmra.mxu0 %v3677
    %v3699 = vpop.f32.mrf.mxu0
    %v3700 = vadd.f32 0.0, %v3699
    %3701 = vmatmul.f32.gmra.mxu0 %v3680
    %v3702 = vpop.f32.mrf.mxu0
    %v3703 = vadd.f32 0.0, %v3702
    %3704 = vdwg.mxu0
    %3705 = vrot.lane.b32.xlu0 %v2877, 56
    %v3706 = vpop.permute.xlu0 %3705
    %v3709 = vsel %vm337, %v3597, 0
    %v3712 = vsel %vm337, %v3612, 0
    %3714 = vmatpush.msra.mxu0 0.0
    %3715 = vmatpush.msra.mxu0 0.0
    %3716 = vmatpush.msra.mxu0 0.0
    %3717 = vmatpush.msra.mxu0 0.0
    %3718 = vmatpush.msra.mxu0 0.0
    %3719 = vmatpush.msra.mxu0 0.0
    %3720 = vmatpush.msra.mxu0 0.0
    %3721 = vmatpush.msra.mxu0 0.0
    %3722 = vmatpush.msra.mxu0 0.0
    %3723 = vmatpush.msra.mxu0 0.0
    %3724 = vmatpush.msra.mxu0 0.0
    %3725 = vmatpush.msra.mxu0 0.0
    %3726 = vmatpush.msra.mxu0 0.0
    %3727 = vmatpush.msra.mxu0 0.0
    %3728 = vmatpush.msra.mxu0 0.0
    %3729 = vmatpush.msra.mxu0 %v3706
    %3730 = vmatmul.f32.gmra.mxu0 %v3709
    %v3731 = vpop.f32.mrf.mxu0
    %v3732 = vadd.f32 0.0, %v3731
    %3733 = vmatmul.f32.gmra.mxu0 %v3712
    %v3734 = vpop.f32.mrf.mxu0
    %v3735 = vadd.f32 0.0, %v3734
    %3736 = vdwg.mxu0
    %3737 = vrot.lane.b32.xlu0 %v2880, 56
    %v3738 = vpop.permute.xlu0 %3737
    %v3741 = vsel %vm337, %v3627, 0
    %v3744 = vsel %vm337, %v3642, 0
    %3746 = vmatpush.msra.mxu0 0.0
    %3747 = vmatpush.msra.mxu0 0.0
    %3748 = vmatpush.msra.mxu0 0.0
    %3749 = vmatpush.msra.mxu0 0.0
    %3750 = vmatpush.msra.mxu0 0.0
    %3751 = vmatpush.msra.mxu0 0.0
    %3752 = vmatpush.msra.mxu0 0.0
    %3753 = vmatpush.msra.mxu0 0.0
    %3754 = vmatpush.msra.mxu0 0.0
    %3755 = vmatpush.msra.mxu0 0.0
    %3756 = vmatpush.msra.mxu0 0.0
    %3757 = vmatpush.msra.mxu0 0.0
    %3758 = vmatpush.msra.mxu0 0.0
    %3759 = vmatpush.msra.mxu0 0.0
    %3760 = vmatpush.msra.mxu0 0.0
    %3761 = vmatpush.msra.mxu0 %v3738
    %3762 = vmatmul.f32.gmra.mxu0 %v3741
    %v3763 = vpop.f32.mrf.mxu0
    %v3764 = vadd.f32 0.0, %v3763
    %3765 = vmatmul.f32.gmra.mxu0 %v3744
    %v3766 = vpop.f32.mrf.mxu0
    %v3767 = vadd.f32 0.0, %v3766
    %3768 = vdwg.mxu0
    %3769 = vrot.lane.b32.xlu0 %v2883, 56
    %v3770 = vpop.permute.xlu0 %3769
    %v3773 = vsel %vm337, %v3657, 0
    %v3776 = vsel %vm337, %v3672, 0
    %3778 = vmatpush.msra.mxu0 0.0
    %3779 = vmatpush.msra.mxu0 0.0
    %3780 = vmatpush.msra.mxu0 0.0
    %3781 = vmatpush.msra.mxu0 0.0
    %3782 = vmatpush.msra.mxu0 0.0
    %3783 = vmatpush.msra.mxu0 0.0
    %3784 = vmatpush.msra.mxu0 0.0
    %3785 = vmatpush.msra.mxu0 0.0
    %3786 = vmatpush.msra.mxu0 0.0
    %3787 = vmatpush.msra.mxu0 0.0
    %3788 = vmatpush.msra.mxu0 0.0
    %3789 = vmatpush.msra.mxu0 0.0
    %3790 = vmatpush.msra.mxu0 0.0
    %3791 = vmatpush.msra.mxu0 0.0
    %3792 = vmatpush.msra.mxu0 0.0
    %3793 = vmatpush.msra.mxu0 %v3770
    %3794 = vmatmul.f32.gmra.mxu0 %v3773
    %v3795 = vpop.f32.mrf.mxu0
    %v3796 = vadd.f32 0.0, %v3795
    %3797 = vmatmul.f32.gmra.mxu0 %v3776
    %v3798 = vpop.f32.mrf.mxu0
    %v3799 = vadd.f32 0.0, %v3798
    %3800 = vdwg.mxu0
    %3802 = vrot.lane.b32.xlu0 %v51, 96
    %v3803 = vpop.permute.xlu0 %3802
    %v3806 = vsel %vm337, %v3700, 0
    %v3809 = vsel %vm337, %v3703, 0
    %v3812 = vsel %vm337, %v3732, 0
    %v3815 = vsel %vm337, %v3735, 0
    %v3818 = vsel %vm337, %v3764, 0
    %v3821 = vsel %vm337, %v3767, 0
    %v3824 = vsel %vm337, %v3796, 0
    %v3827 = vsel %vm337, %v3799, 0
    %3829 = vmatpush.msra.mxu0 0.0
    %3830 = vmatpush.msra.mxu0 0.0
    %3831 = vmatpush.msra.mxu0 0.0
    %3832 = vmatpush.msra.mxu0 0.0
    %3833 = vmatpush.msra.mxu0 0.0
    %3834 = vmatpush.msra.mxu0 0.0
    %3835 = vmatpush.msra.mxu0 0.0
    %3836 = vmatpush.msra.mxu0 0.0
    %3837 = vmatpush.msra.mxu0 0.0
    %3838 = vmatpush.msra.mxu0 0.0
    %3839 = vmatpush.msra.mxu0 0.0
    %3840 = vmatpush.msra.mxu0 0.0
    %3841 = vmatpush.msra.mxu0 0.0
    %3842 = vmatpush.msra.mxu0 0.0
    %3843 = vmatpush.msra.mxu0 0.0
    %3844 = vmatpush.msra.mxu0 %v3803
    %3845 = vmatmul.f32.gmra.mxu0 %v3806
    %v3846 = vpop.f32.mrf.mxu0
    %v3847 = vadd.f32 0.0, %v3846
    %3848 = vmatmul.f32.gmra.mxu0 %v3809
    %v3849 = vpop.f32.mrf.mxu0
    %v3850 = vadd.f32 0.0, %v3849
    %3851 = vmatmul.f32.gmra.mxu0 %v3812
    %v3852 = vpop.f32.mrf.mxu0
    %v3853 = vadd.f32 0.0, %v3852
    %3854 = vmatmul.f32.gmra.mxu0 %v3815
    %v3855 = vpop.f32.mrf.mxu0
    %v3856 = vadd.f32 0.0, %v3855
    %3857 = vmatmul.f32.gmra.mxu0 %v3818
    %v3858 = vpop.f32.mrf.mxu0
    %v3859 = vadd.f32 0.0, %v3858
    %3860 = vmatmul.f32.gmra.mxu0 %v3821
    %v3861 = vpop.f32.mrf.mxu0
    %v3862 = vadd.f32 0.0, %v3861
    %3863 = vmatmul.f32.gmra.mxu0 %v3824
    %v3864 = vpop.f32.mrf.mxu0
    %v3865 = vadd.f32 0.0, %v3864
    %3866 = vmatmul.f32.gmra.mxu0 %v3827
    %v3867 = vpop.f32.mrf.mxu0
    %v3868 = vadd.f32 0.0, %v3867
    %3869 = vdwg.mxu0
    %3871 = vrot.lane.b32.xlu0 %v50, 96
    %v3872 = vpop.permute.xlu0 %3871
    %v3875 = vsel %vm337, %v3240, 0
    %v3878 = vsel %vm337, %v3243, 0
    %v3881 = vsel %vm337, %v3272, 0
    %v3884 = vsel %vm337, %v3275, 0
    %v3887 = vsel %vm337, %v3304, 0
    %v3890 = vsel %vm337, %v3307, 0
    %v3893 = vsel %vm337, %v3336, 0
    %v3896 = vsel %vm337, %v3339, 0
    %3898 = vmatpush.msra.mxu0 0.0
    %3899 = vmatpush.msra.mxu0 0.0
    %3900 = vmatpush.msra.mxu0 0.0
    %3901 = vmatpush.msra.mxu0 0.0
    %3902 = vmatpush.msra.mxu0 0.0
    %3903 = vmatpush.msra.mxu0 0.0
    %3904 = vmatpush.msra.mxu0 0.0
    %3905 = vmatpush.msra.mxu0 0.0
    %3906 = vmatpush.msra.mxu0 0.0
    %3907 = vmatpush.msra.mxu0 0.0
    %3908 = vmatpush.msra.mxu0 0.0
    %3909 = vmatpush.msra.mxu0 0.0
    %3910 = vmatpush.msra.mxu0 0.0
    %3911 = vmatpush.msra.mxu0 0.0
    %3912 = vmatpush.msra.mxu0 0.0
    %3913 = vmatpush.msra.mxu0 %v3872
    %3914 = vmatmul.f32.gmra.mxu0 %v3875
    %v3915 = vpop.f32.mrf.mxu0
    %v3916 = vadd.f32 %v3847, %v3915
    %3917 = vmatmul.f32.gmra.mxu0 %v3878
    %v3918 = vpop.f32.mrf.mxu0
    %v3919 = vadd.f32 %v3850, %v3918
    %3920 = vmatmul.f32.gmra.mxu0 %v3881
    %v3921 = vpop.f32.mrf.mxu0
    %v3922 = vadd.f32 %v3853, %v3921
    %3923 = vmatmul.f32.gmra.mxu0 %v3884
    %v3924 = vpop.f32.mrf.mxu0
    %v3925 = vadd.f32 %v3856, %v3924
    %3926 = vmatmul.f32.gmra.mxu0 %v3887
    %v3927 = vpop.f32.mrf.mxu0
    %v3928 = vadd.f32 %v3859, %v3927
    %3929 = vmatmul.f32.gmra.mxu0 %v3890
    %v3930 = vpop.f32.mrf.mxu0
    %v3931 = vadd.f32 %v3862, %v3930
    %3932 = vmatmul.f32.gmra.mxu0 %v3893
    %v3933 = vpop.f32.mrf.mxu0
    %v3934 = vadd.f32 %v3865, %v3933
    %3935 = vmatmul.f32.gmra.mxu0 %v3896
    %v3936 = vpop.f32.mrf.mxu0
    %v3937 = vadd.f32 %v3868, %v3936
    %3938 = vdwg.mxu0
    %3939 = vrot.lane.b32.xlu0 %v2850, 112
    %v3940 = vpop.permute.xlu0 %3939
    %3941 = vrot.lane.b32.xlu0 %v2853, 112
    %v3942 = vpop.permute.xlu0 %3941
    %3943 = vrot.lane.b32.xlu0 %v2874, 80
    %v3944 = vpop.permute.xlu0 %3943
    %v3945 = vsel %vm337, %v3940, 0
    %v3947 = vsel %vm337, %v3942, 0
    %v3949 = vsel %vm337, %v3944, 0
    %3951 = vmatpush.xpose.msra.mxu0 0.0
    %3952 = vmatpush.xpose.msra.mxu0 0.0
    %3953 = vmatpush.xpose.msra.mxu0 0.0
    %3954 = vmatpush.xpose.msra.mxu0 0.0
    %3955 = vmatpush.xpose.msra.mxu0 0.0
    %3956 = vmatpush.xpose.msra.mxu0 0.0
    %3957 = vmatpush.xpose.msra.mxu0 0.0
    %3958 = vmatpush.xpose.msra.mxu0 0.0
    %3959 = vmatpush.xpose.msra.mxu0 0.0
    %3960 = vmatpush.xpose.msra.mxu0 0.0
    %3961 = vmatpush.xpose.msra.mxu0 0.0
    %3962 = vmatpush.xpose.msra.mxu0 0.0
    %3963 = vmatpush.xpose.msra.mxu0 0.0
    %3964 = vmatpush.xpose.msra.mxu0 0.0
    %3965 = vmatpush.xpose.msra.mxu0 0.0
    %3966 = vmatpush.xpose.msra.mxu0 %v3949
    %3967 = vmatmul.f32.gmra.mxu0 %v3945
    %v3968 = vpop.f32.mrf.mxu0
    %v3969 = vadd.f32 0.0, %v3968
    %3970 = vmatmul.f32.gmra.mxu0 %v3947
    %v3971 = vpop.f32.mrf.mxu0
    %v3972 = vadd.f32 0.0, %v3971
    %3973 = vdwg.mxu0
    %3974 = vrot.lane.b32.xlu0 %v2856, 112
    %v3975 = vpop.permute.xlu0 %3974
    %3976 = vrot.lane.b32.xlu0 %v2859, 112
    %v3977 = vpop.permute.xlu0 %3976
    %3978 = vrot.lane.b32.xlu0 %v2877, 80
    %v3979 = vpop.permute.xlu0 %3978
    %v3980 = vsel %vm337, %v3975, 0
    %v3982 = vsel %vm337, %v3977, 0
    %v3984 = vsel %vm337, %v3979, 0
    %3986 = vmatpush.xpose.msra.mxu0 0.0
    %3987 = vmatpush.xpose.msra.mxu0 0.0
    %3988 = vmatpush.xpose.msra.mxu0 0.0
    %3989 = vmatpush.xpose.msra.mxu0 0.0
    %3990 = vmatpush.xpose.msra.mxu0 0.0
    %3991 = vmatpush.xpose.msra.mxu0 0.0
    %3992 = vmatpush.xpose.msra.mxu0 0.0
    %3993 = vmatpush.xpose.msra.mxu0 0.0
    %3994 = vmatpush.xpose.msra.mxu0 0.0
    %3995 = vmatpush.xpose.msra.mxu0 0.0
    %3996 = vmatpush.xpose.msra.mxu0 0.0
    %3997 = vmatpush.xpose.msra.mxu0 0.0
    %3998 = vmatpush.xpose.msra.mxu0 0.0
    %3999 = vmatpush.xpose.msra.mxu0 0.0
    %4000 = vmatpush.xpose.msra.mxu0 0.0
    %4001 = vmatpush.xpose.msra.mxu0 %v3984
    %4002 = vmatmul.f32.gmra.mxu0 %v3980
    %v4003 = vpop.f32.mrf.mxu0
    %v4004 = vadd.f32 0.0, %v4003
    %4005 = vmatmul.f32.gmra.mxu0 %v3982
    %v4006 = vpop.f32.mrf.mxu0
    %v4007 = vadd.f32 0.0, %v4006
    %4008 = vdwg.mxu0
    %4009 = vrot.lane.b32.xlu0 %v2862, 112
    %v4010 = vpop.permute.xlu0 %4009
    %4011 = vrot.lane.b32.xlu0 %v2865, 112
    %v4012 = vpop.permute.xlu0 %4011
    %4013 = vrot.lane.b32.xlu0 %v2880, 80
    %v4014 = vpop.permute.xlu0 %4013
    %v4015 = vsel %vm337, %v4010, 0
    %v4017 = vsel %vm337, %v4012, 0
    %v4019 = vsel %vm337, %v4014, 0
    %4021 = vmatpush.xpose.msra.mxu0 0.0
    %4022 = vmatpush.xpose.msra.mxu0 0.0
    %4023 = vmatpush.xpose.msra.mxu0 0.0
    %4024 = vmatpush.xpose.msra.mxu0 0.0
    %4025 = vmatpush.xpose.msra.mxu0 0.0
    %4026 = vmatpush.xpose.msra.mxu0 0.0
    %4027 = vmatpush.xpose.msra.mxu0 0.0
    %4028 = vmatpush.xpose.msra.mxu0 0.0
    %4029 = vmatpush.xpose.msra.mxu0 0.0
    %4030 = vmatpush.xpose.msra.mxu0 0.0
    %4031 = vmatpush.xpose.msra.mxu0 0.0
    %4032 = vmatpush.xpose.msra.mxu0 0.0
    %4033 = vmatpush.xpose.msra.mxu0 0.0
    %4034 = vmatpush.xpose.msra.mxu0 0.0
    %4035 = vmatpush.xpose.msra.mxu0 0.0
    %4036 = vmatpush.xpose.msra.mxu0 %v4019
    %4037 = vmatmul.f32.gmra.mxu0 %v4015
    %v4038 = vpop.f32.mrf.mxu0
    %v4039 = vadd.f32 0.0, %v4038
    %4040 = vmatmul.f32.gmra.mxu0 %v4017
    %v4041 = vpop.f32.mrf.mxu0
    %v4042 = vadd.f32 0.0, %v4041
    %4043 = vdwg.mxu0
    %4044 = vrot.lane.b32.xlu0 %v2868, 112
    %v4045 = vpop.permute.xlu0 %4044
    %4046 = vrot.lane.b32.xlu0 %v2871, 112
    %v4047 = vpop.permute.xlu0 %4046
    %4048 = vrot.lane.b32.xlu0 %v2883, 80
    %v4049 = vpop.permute.xlu0 %4048
    %v4050 = vsel %vm337, %v4045, 0
    %v4052 = vsel %vm337, %v4047, 0
    %v4054 = vsel %vm337, %v4049, 0
    %4056 = vmatpush.xpose.msra.mxu0 0.0
    %4057 = vmatpush.xpose.msra.mxu0 0.0
    %4058 = vmatpush.xpose.msra.mxu0 0.0
    %4059 = vmatpush.xpose.msra.mxu0 0.0
    %4060 = vmatpush.xpose.msra.mxu0 0.0
    %4061 = vmatpush.xpose.msra.mxu0 0.0
    %4062 = vmatpush.xpose.msra.mxu0 0.0
    %4063 = vmatpush.xpose.msra.mxu0 0.0
    %4064 = vmatpush.xpose.msra.mxu0 0.0
    %4065 = vmatpush.xpose.msra.mxu0 0.0
    %4066 = vmatpush.xpose.msra.mxu0 0.0
    %4067 = vmatpush.xpose.msra.mxu0 0.0
    %4068 = vmatpush.xpose.msra.mxu0 0.0
    %4069 = vmatpush.xpose.msra.mxu0 0.0
    %4070 = vmatpush.xpose.msra.mxu0 0.0
    %4071 = vmatpush.xpose.msra.mxu0 %v4054
    %4072 = vmatmul.f32.gmra.mxu0 %v4050
    %v4073 = vpop.f32.mrf.mxu0
    %v4074 = vadd.f32 0.0, %v4073
    %4075 = vmatmul.f32.gmra.mxu0 %v4052
    %v4076 = vpop.f32.mrf.mxu0
    %v4077 = vadd.f32 0.0, %v4076
    %4078 = vdwg.mxu0
    %v4079 = vsel %vm337, %v3969, -inf
    %4080 = vmax.xlane.f32.xlu0 %v4079
    %v4081 = vpop.xlane.xlu0 %4080
    %v4082 = vsel %vm337, %v3972, -inf
    %4083 = vmax.xlane.f32.xlu0 %v4082
    %v4084 = vpop.xlane.xlu0 %4083
    %v4085 = vsel %vm337, %v4004, -inf
    %4086 = vmax.xlane.f32.xlu0 %v4085
    %v4087 = vpop.xlane.xlu0 %4086
    %v4088 = vsel %vm337, %v4007, -inf
    %4089 = vmax.xlane.f32.xlu0 %v4088
    %v4090 = vpop.xlane.xlu0 %4089
    %v4091 = vsel %vm337, %v4039, -inf
    %4092 = vmax.xlane.f32.xlu0 %v4091
    %v4093 = vpop.xlane.xlu0 %4092
    %v4094 = vsel %vm337, %v4042, -inf
    %4095 = vmax.xlane.f32.xlu0 %v4094
    %v4096 = vpop.xlane.xlu0 %4095
    %v4097 = vsel %vm337, %v4074, -inf
    %4098 = vmax.xlane.f32.xlu0 %v4097
    %v4099 = vpop.xlane.xlu0 %4098
    %v4100 = vsel %vm337, %v4077, -inf
    %4101 = vmax.xlane.f32.xlu0 %v4100
    %v4102 = vpop.xlane.xlu0 %4101
    %v4103 = vsub.f32 %v3969, %v4081
    %v4104 = vsub.f32 %v3972, %v4084
    %v4105 = vsub.f32 %v4004, %v4087
    %v4106 = vsub.f32 %v4007, %v4090
    %v4107 = vsub.f32 %v4039, %v4093
    %v4108 = vsub.f32 %v4042, %v4096
    %v4109 = vsub.f32 %v4074, %v4099
    %v4110 = vsub.f32 %v4077, %v4102
    %v4111 = vmul.f32 %v4103, 1.442695
    %v4112 = vpow.pop %v4111
    %v4113 = vmul.f32 %v4104, 1.442695
    %v4114 = vpow.pop %v4113
    %v4115 = vmul.f32 %v4105, 1.442695
    %v4116 = vpow.pop %v4115
    %v4117 = vmul.f32 %v4106, 1.442695
    %v4118 = vpow.pop %v4117
    %v4119 = vmul.f32 %v4107, 1.442695
    %v4120 = vpow.pop %v4119
    %v4121 = vmul.f32 %v4108, 1.442695
    %v4122 = vpow.pop %v4121
    %v4123 = vmul.f32 %v4109, 1.442695
    %v4124 = vpow.pop %v4123
    %v4125 = vmul.f32 %v4110, 1.442695
    %v4126 = vpow.pop %v4125
    %v4127 = vsel %vm337, %v4112, 0.0
    %4128 = vadd.xlane.f32.xlu0 %v4127
    %v4129 = vpop.xlane.xlu0 %4128
    %v4130 = vsel %vm337, %v4114, 0.0
    %4131 = vadd.xlane.f32.xlu0 %v4130
    %v4132 = vpop.xlane.xlu0 %4131
    %v4133 = vsel %vm337, %v4116, 0.0
    %4134 = vadd.xlane.f32.xlu0 %v4133
    %v4135 = vpop.xlane.xlu0 %4134
    %v4136 = vsel %vm337, %v4118, 0.0
    %4137 = vadd.xlane.f32.xlu0 %v4136
    %v4138 = vpop.xlane.xlu0 %4137
    %v4139 = vsel %vm337, %v4120, 0.0
    %4140 = vadd.xlane.f32.xlu0 %v4139
    %v4141 = vpop.xlane.xlu0 %4140
    %v4142 = vsel %vm337, %v4122, 0.0
    %4143 = vadd.xlane.f32.xlu0 %v4142
    %v4144 = vpop.xlane.xlu0 %4143
    %v4145 = vsel %vm337, %v4124, 0.0
    %4146 = vadd.xlane.f32.xlu0 %v4145
    %v4147 = vpop.xlane.xlu0 %4146
    %v4148 = vsel %vm337, %v4126, 0.0
    %4149 = vadd.xlane.f32.xlu0 %v4148
    %v4150 = vpop.xlane.xlu0 %4149
    %v4151 = vrcp.pop %v4129
    %v4152 = vmul.f32 %v4129, %v4151
    %v4153 = vsub.f32 1.0, %v4152
    %v4154 = vmul.f32 %v4151, %v4153
    %v4155 = vadd.f32 %v4151, %v4154
    %vm4156 = vweird.f32 %v4129
    %vm4157 = vweird.f32 %v4151
    %vm4158 = vmor %vm4156, %vm4157
    %v4159 = vsel %vm4158, %v4151, %v4155
    %v4160 = vand.u32 2147483647, %v4129
    %vm4161 = vcmp.eq.f32.partialorder %v4160, 8.507059e+37
    %v4162 = vand.u32 %v4129, 2147483648
    %v4163 = vor.u32 1.1754944e-38, %v4162
    %v4164 = vsel %vm4161, %v4163, %v4159
    %v4165 = vmul.f32 %v4112, %v4164
    %v4166 = vrcp.pop %v4132
    %v4167 = vmul.f32 %v4132, %v4166
    %v4168 = vsub.f32 1.0, %v4167
    %v4169 = vmul.f32 %v4166, %v4168
    %v4170 = vadd.f32 %v4166, %v4169
    %vm4171 = vweird.f32 %v4132
    %vm4172 = vweird.f32 %v4166
    %vm4173 = vmor %vm4171, %vm4172
    %v4174 = vsel %vm4173, %v4166, %v4170
    %v4175 = vand.u32 2147483647, %v4132
    %vm4176 = vcmp.eq.f32.partialorder %v4175, 8.507059e+37
    %v4177 = vand.u32 %v4132, 2147483648
    %v4178 = vor.u32 1.1754944e-38, %v4177
    %v4179 = vsel %vm4176, %v4178, %v4174
    %v4180 = vmul.f32 %v4114, %v4179
    %v4181 = vrcp.pop %v4135
    %v4182 = vmul.f32 %v4135, %v4181
    %v4183 = vsub.f32 1.0, %v4182
    %v4184 = vmul.f32 %v4181, %v4183
    %v4185 = vadd.f32 %v4181, %v4184
    %vm4186 = vweird.f32 %v4135
    %vm4187 = vweird.f32 %v4181
    %vm4188 = vmor %vm4186, %vm4187
    %v4189 = vsel %vm4188, %v4181, %v4185
    %v4190 = vand.u32 2147483647, %v4135
    %vm4191 = vcmp.eq.f32.partialorder %v4190, 8.507059e+37
    %v4192 = vand.u32 %v4135, 2147483648
    %v4193 = vor.u32 1.1754944e-38, %v4192
    %v4194 = vsel %vm4191, %v4193, %v4189
    %v4195 = vmul.f32 %v4116, %v4194
    %v4196 = vrcp.pop %v4138
    %v4197 = vmul.f32 %v4138, %v4196
    %v4198 = vsub.f32 1.0, %v4197
    %v4199 = vmul.f32 %v4196, %v4198
    %v4200 = vadd.f32 %v4196, %v4199
    %vm4201 = vweird.f32 %v4138
    %vm4202 = vweird.f32 %v4196
    %vm4203 = vmor %vm4201, %vm4202
    %v4204 = vsel %vm4203, %v4196, %v4200
    %v4205 = vand.u32 2147483647, %v4138
    %vm4206 = vcmp.eq.f32.partialorder %v4205, 8.507059e+37
    %v4207 = vand.u32 %v4138, 2147483648
    %v4208 = vor.u32 1.1754944e-38, %v4207
    %v4209 = vsel %vm4206, %v4208, %v4204
    %v4210 = vmul.f32 %v4118, %v4209
    %v4211 = vrcp.pop %v4141
    %v4212 = vmul.f32 %v4141, %v4211
    %v4213 = vsub.f32 1.0, %v4212
    %v4214 = vmul.f32 %v4211, %v4213
    %v4215 = vadd.f32 %v4211, %v4214
    %vm4216 = vweird.f32 %v4141
    %vm4217 = vweird.f32 %v4211
    %vm4218 = vmor %vm4216, %vm4217
    %v4219 = vsel %vm4218, %v4211, %v4215
    %v4220 = vand.u32 2147483647, %v4141
    %vm4221 = vcmp.eq.f32.partialorder %v4220, 8.507059e+37
    %v4222 = vand.u32 %v4141, 2147483648
    %v4223 = vor.u32 1.1754944e-38, %v4222
    %v4224 = vsel %vm4221, %v4223, %v4219
    %v4225 = vmul.f32 %v4120, %v4224
    %v4226 = vrcp.pop %v4144
    %v4227 = vmul.f32 %v4144, %v4226
    %v4228 = vsub.f32 1.0, %v4227
    %v4229 = vmul.f32 %v4226, %v4228
    %v4230 = vadd.f32 %v4226, %v4229
    %vm4231 = vweird.f32 %v4144
    %vm4232 = vweird.f32 %v4226
    %vm4233 = vmor %vm4231, %vm4232
    %v4234 = vsel %vm4233, %v4226, %v4230
    %v4235 = vand.u32 2147483647, %v4144
    %vm4236 = vcmp.eq.f32.partialorder %v4235, 8.507059e+37
    %v4237 = vand.u32 %v4144, 2147483648
    %v4238 = vor.u32 1.1754944e-38, %v4237
    %v4239 = vsel %vm4236, %v4238, %v4234
    %v4240 = vmul.f32 %v4122, %v4239
    %v4241 = vrcp.pop %v4147
    %v4242 = vmul.f32 %v4147, %v4241
    %v4243 = vsub.f32 1.0, %v4242
    %v4244 = vmul.f32 %v4241, %v4243
    %v4245 = vadd.f32 %v4241, %v4244
    %vm4246 = vweird.f32 %v4147
    %vm4247 = vweird.f32 %v4241
    %vm4248 = vmor %vm4246, %vm4247
    %v4249 = vsel %vm4248, %v4241, %v4245
    %v4250 = vand.u32 2147483647, %v4147
    %vm4251 = vcmp.eq.f32.partialorder %v4250, 8.507059e+37
    %v4252 = vand.u32 %v4147, 2147483648
    %v4253 = vor.u32 1.1754944e-38, %v4252
    %v4254 = vsel %vm4251, %v4253, %v4249
    %v4255 = vmul.f32 %v4124, %v4254
    %v4256 = vrcp.pop %v4150
    %v4257 = vmul.f32 %v4150, %v4256
    %v4258 = vsub.f32 1.0, %v4257
    %v4259 = vmul.f32 %v4256, %v4258
    %v4260 = vadd.f32 %v4256, %v4259
    %vm4261 = vweird.f32 %v4150
    %vm4262 = vweird.f32 %v4256
    %vm4263 = vmor %vm4261, %vm4262
    %v4264 = vsel %vm4263, %v4256, %v4260
    %v4265 = vand.u32 2147483647, %v4150
    %vm4266 = vcmp.eq.f32.partialorder %v4265, 8.507059e+37
    %v4267 = vand.u32 %v4150, 2147483648
    %v4268 = vor.u32 1.1754944e-38, %v4267
    %v4269 = vsel %vm4266, %v4268, %v4264
    %v4270 = vmul.f32 %v4126, %v4269
    %4271 = vrot.lane.b32.xlu0 %v2874, 48
    %v4272 = vpop.permute.xlu0 %4271
    %v4275 = vsel %vm337, %v4165, 0
    %v4278 = vsel %vm337, %v4180, 0
    %4280 = vmatpush.msra.mxu0 0.0
    %4281 = vmatpush.msra.mxu0 0.0
    %4282 = vmatpush.msra.mxu0 0.0
    %4283 = vmatpush.msra.mxu0 0.0
    %4284 = vmatpush.msra.mxu0 0.0
    %4285 = vmatpush.msra.mxu0 0.0
    %4286 = vmatpush.msra.mxu0 0.0
    %4287 = vmatpush.msra.mxu0 0.0
    %4288 = vmatpush.msra.mxu0 0.0
    %4289 = vmatpush.msra.mxu0 0.0
    %4290 = vmatpush.msra.mxu0 0.0
    %4291 = vmatpush.msra.mxu0 0.0
    %4292 = vmatpush.msra.mxu0 0.0
    %4293 = vmatpush.msra.mxu0 0.0
    %4294 = vmatpush.msra.mxu0 0.0
    %4295 = vmatpush.msra.mxu0 %v4272
    %4296 = vmatmul.f32.gmra.mxu0 %v4275
    %v4297 = vpop.f32.mrf.mxu0
    %v4298 = vadd.f32 0.0, %v4297
    %4299 = vmatmul.f32.gmra.mxu0 %v4278
    %v4300 = vpop.f32.mrf.mxu0
    %v4301 = vadd.f32 0.0, %v4300
    %4302 = vdwg.mxu0
    %4303 = vrot.lane.b32.xlu0 %v2877, 48
    %v4304 = vpop.permute.xlu0 %4303
    %v4307 = vsel %vm337, %v4195, 0
    %v4310 = vsel %vm337, %v4210, 0
    %4312 = vmatpush.msra.mxu0 0.0
    %4313 = vmatpush.msra.mxu0 0.0
    %4314 = vmatpush.msra.mxu0 0.0
    %4315 = vmatpush.msra.mxu0 0.0
    %4316 = vmatpush.msra.mxu0 0.0
    %4317 = vmatpush.msra.mxu0 0.0
    %4318 = vmatpush.msra.mxu0 0.0
    %4319 = vmatpush.msra.mxu0 0.0
    %4320 = vmatpush.msra.mxu0 0.0
    %4321 = vmatpush.msra.mxu0 0.0
    %4322 = vmatpush.msra.mxu0 0.0
    %4323 = vmatpush.msra.mxu0 0.0
    %4324 = vmatpush.msra.mxu0 0.0
    %4325 = vmatpush.msra.mxu0 0.0
    %4326 = vmatpush.msra.mxu0 0.0
    %4327 = vmatpush.msra.mxu0 %v4304
    %4328 = vmatmul.f32.gmra.mxu0 %v4307
    %v4329 = vpop.f32.mrf.mxu0
    %v4330 = vadd.f32 0.0, %v4329
    %4331 = vmatmul.f32.gmra.mxu0 %v4310
    %v4332 = vpop.f32.mrf.mxu0
    %v4333 = vadd.f32 0.0, %v4332
    %4334 = vdwg.mxu0
    %4335 = vrot.lane.b32.xlu0 %v2880, 48
    %v4336 = vpop.permute.xlu0 %4335
    %v4339 = vsel %vm337, %v4225, 0
    %v4342 = vsel %vm337, %v4240, 0
    %4344 = vmatpush.msra.mxu0 0.0
    %4345 = vmatpush.msra.mxu0 0.0
    %4346 = vmatpush.msra.mxu0 0.0
    %4347 = vmatpush.msra.mxu0 0.0
    %4348 = vmatpush.msra.mxu0 0.0
    %4349 = vmatpush.msra.mxu0 0.0
    %4350 = vmatpush.msra.mxu0 0.0
    %4351 = vmatpush.msra.mxu0 0.0
    %4352 = vmatpush.msra.mxu0 0.0
    %4353 = vmatpush.msra.mxu0 0.0
    %4354 = vmatpush.msra.mxu0 0.0
    %4355 = vmatpush.msra.mxu0 0.0
    %4356 = vmatpush.msra.mxu0 0.0
    %4357 = vmatpush.msra.mxu0 0.0
    %4358 = vmatpush.msra.mxu0 0.0
    %4359 = vmatpush.msra.mxu0 %v4336
    %4360 = vmatmul.f32.gmra.mxu0 %v4339
    %v4361 = vpop.f32.mrf.mxu0
    %v4362 = vadd.f32 0.0, %v4361
    %4363 = vmatmul.f32.gmra.mxu0 %v4342
    %v4364 = vpop.f32.mrf.mxu0
    %v4365 = vadd.f32 0.0, %v4364
    %4366 = vdwg.mxu0
    %4367 = vrot.lane.b32.xlu0 %v2883, 48
    %v4368 = vpop.permute.xlu0 %4367
    %v4371 = vsel %vm337, %v4255, 0
    %v4374 = vsel %vm337, %v4270, 0
    %4376 = vmatpush.msra.mxu0 0.0
    %4377 = vmatpush.msra.mxu0 0.0
    %4378 = vmatpush.msra.mxu0 0.0
    %4379 = vmatpush.msra.mxu0 0.0
    %4380 = vmatpush.msra.mxu0 0.0
    %4381 = vmatpush.msra.mxu0 0.0
    %4382 = vmatpush.msra.mxu0 0.0
    %4383 = vmatpush.msra.mxu0 0.0
    %4384 = vmatpush.msra.mxu0 0.0
    %4385 = vmatpush.msra.mxu0 0.0
    %4386 = vmatpush.msra.mxu0 0.0
    %4387 = vmatpush.msra.mxu0 0.0
    %4388 = vmatpush.msra.mxu0 0.0
    %4389 = vmatpush.msra.mxu0 0.0
    %4390 = vmatpush.msra.mxu0 0.0
    %4391 = vmatpush.msra.mxu0 %v4368
    %4392 = vmatmul.f32.gmra.mxu0 %v4371
    %v4393 = vpop.f32.mrf.mxu0
    %v4394 = vadd.f32 0.0, %v4393
    %4395 = vmatmul.f32.gmra.mxu0 %v4374
    %v4396 = vpop.f32.mrf.mxu0
    %v4397 = vadd.f32 0.0, %v4396
    %4398 = vdwg.mxu0
    %4400 = vrot.lane.b32.xlu0 %v52, 96
    %v4401 = vpop.permute.xlu0 %4400
    %v4404 = vsel %vm337, %v4298, 0
    %v4407 = vsel %vm337, %v4301, 0
    %v4410 = vsel %vm337, %v4330, 0
    %v4413 = vsel %vm337, %v4333, 0
    %v4416 = vsel %vm337, %v4362, 0
    %v4419 = vsel %vm337, %v4365, 0
    %v4422 = vsel %vm337, %v4394, 0
    %v4425 = vsel %vm337, %v4397, 0
    %4427 = vmatpush.msra.mxu0 0.0
    %4428 = vmatpush.msra.mxu0 0.0
    %4429 = vmatpush.msra.mxu0 0.0
    %4430 = vmatpush.msra.mxu0 0.0
    %4431 = vmatpush.msra.mxu0 0.0
    %4432 = vmatpush.msra.mxu0 0.0
    %4433 = vmatpush.msra.mxu0 0.0
    %4434 = vmatpush.msra.mxu0 0.0
    %4435 = vmatpush.msra.mxu0 0.0
    %4436 = vmatpush.msra.mxu0 0.0
    %4437 = vmatpush.msra.mxu0 0.0
    %4438 = vmatpush.msra.mxu0 0.0
    %4439 = vmatpush.msra.mxu0 0.0
    %4440 = vmatpush.msra.mxu0 0.0
    %4441 = vmatpush.msra.mxu0 0.0
    %4442 = vmatpush.msra.mxu0 %v4401
    %4443 = vmatmul.f32.gmra.mxu0 %v4404
    %v4444 = vpop.f32.mrf.mxu0
    %v4445 = vadd.f32 0.0, %v4444
    %4446 = vmatmul.f32.gmra.mxu0 %v4407
    %v4447 = vpop.f32.mrf.mxu0
    %v4448 = vadd.f32 0.0, %v4447
    %4449 = vmatmul.f32.gmra.mxu0 %v4410
    %v4450 = vpop.f32.mrf.mxu0
    %v4451 = vadd.f32 0.0, %v4450
    %4452 = vmatmul.f32.gmra.mxu0 %v4413
    %v4453 = vpop.f32.mrf.mxu0
    %v4454 = vadd.f32 0.0, %v4453
    %4455 = vmatmul.f32.gmra.mxu0 %v4416
    %v4456 = vpop.f32.mrf.mxu0
    %v4457 = vadd.f32 0.0, %v4456
    %4458 = vmatmul.f32.gmra.mxu0 %v4419
    %v4459 = vpop.f32.mrf.mxu0
    %v4460 = vadd.f32 0.0, %v4459
    %4461 = vmatmul.f32.gmra.mxu0 %v4422
    %v4462 = vpop.f32.mrf.mxu0
    %v4463 = vadd.f32 0.0, %v4462
    %4464 = vmatmul.f32.gmra.mxu0 %v4425
    %v4465 = vpop.f32.mrf.mxu0
    %v4466 = vadd.f32 0.0, %v4465
    %4467 = vdwg.mxu0
    %v4468 = vadd.f32 %v3916, %v4445
    %v4469 = vadd.f32 %v3919, %v4448
    %v4470 = vadd.f32 %v3922, %v4451
    %v4471 = vadd.f32 %v3925, %v4454
    %v4472 = vadd.f32 %v3928, %v4457
    %v4473 = vadd.f32 %v3931, %v4460
    %v4474 = vadd.f32 %v3934, %v4463
    %v4475 = vadd.f32 %v3937, %v4466
    %4476 = vrot.lane.b32.xlu0 %v2850, 104
    %v4477 = vpop.permute.xlu0 %4476
    %4478 = vrot.lane.b32.xlu0 %v2853, 104
    %v4479 = vpop.permute.xlu0 %4478
    %4480 = vrot.lane.b32.xlu0 %v2874, 72
    %v4481 = vpop.permute.xlu0 %4480
    %v4482 = vsel %vm337, %v4477, 0
    %v4484 = vsel %vm337, %v4479, 0
    %v4486 = vsel %vm337, %v4481, 0
    %4488 = vmatpush.xpose.msra.mxu0 0.0
    %4489 = vmatpush.xpose.msra.mxu0 0.0
    %4490 = vmatpush.xpose.msra.mxu0 0.0
    %4491 = vmatpush.xpose.msra.mxu0 0.0
    %4492 = vmatpush.xpose.msra.mxu0 0.0
    %4493 = vmatpush.xpose.msra.mxu0 0.0
    %4494 = vmatpush.xpose.msra.mxu0 0.0
    %4495 = vmatpush.xpose.msra.mxu0 0.0
    %4496 = vmatpush.xpose.msra.mxu0 0.0
    %4497 = vmatpush.xpose.msra.mxu0 0.0
    %4498 = vmatpush.xpose.msra.mxu0 0.0
    %4499 = vmatpush.xpose.msra.mxu0 0.0
    %4500 = vmatpush.xpose.msra.mxu0 0.0
    %4501 = vmatpush.xpose.msra.mxu0 0.0
    %4502 = vmatpush.xpose.msra.mxu0 0.0
    %4503 = vmatpush.xpose.msra.mxu0 %v4486
    %4504 = vmatmul.f32.gmra.mxu0 %v4482
    %v4505 = vpop.f32.mrf.mxu0
    %v4506 = vadd.f32 0.0, %v4505
    %4507 = vmatmul.f32.gmra.mxu0 %v4484
    %v4508 = vpop.f32.mrf.mxu0
    %v4509 = vadd.f32 0.0, %v4508
    %4510 = vdwg.mxu0
    %4511 = vrot.lane.b32.xlu0 %v2856, 104
    %v4512 = vpop.permute.xlu0 %4511
    %4513 = vrot.lane.b32.xlu0 %v2859, 104
    %v4514 = vpop.permute.xlu0 %4513
    %4515 = vrot.lane.b32.xlu0 %v2877, 72
    %v4516 = vpop.permute.xlu0 %4515
    %v4517 = vsel %vm337, %v4512, 0
    %v4519 = vsel %vm337, %v4514, 0
    %v4521 = vsel %vm337, %v4516, 0
    %4523 = vmatpush.xpose.msra.mxu0 0.0
    %4524 = vmatpush.xpose.msra.mxu0 0.0
    %4525 = vmatpush.xpose.msra.mxu0 0.0
    %4526 = vmatpush.xpose.msra.mxu0 0.0
    %4527 = vmatpush.xpose.msra.mxu0 0.0
    %4528 = vmatpush.xpose.msra.mxu0 0.0
    %4529 = vmatpush.xpose.msra.mxu0 0.0
    %4530 = vmatpush.xpose.msra.mxu0 0.0
    %4531 = vmatpush.xpose.msra.mxu0 0.0
    %4532 = vmatpush.xpose.msra.mxu0 0.0
    %4533 = vmatpush.xpose.msra.mxu0 0.0
    %4534 = vmatpush.xpose.msra.mxu0 0.0
    %4535 = vmatpush.xpose.msra.mxu0 0.0
    %4536 = vmatpush.xpose.msra.mxu0 0.0
    %4537 = vmatpush.xpose.msra.mxu0 0.0
    %4538 = vmatpush.xpose.msra.mxu0 %v4521
    %4539 = vmatmul.f32.gmra.mxu0 %v4517
    %v4540 = vpop.f32.mrf.mxu0
    %v4541 = vadd.f32 0.0, %v4540
    %4542 = vmatmul.f32.gmra.mxu0 %v4519
    %v4543 = vpop.f32.mrf.mxu0
    %v4544 = vadd.f32 0.0, %v4543
    %4545 = vdwg.mxu0
    %4546 = vrot.lane.b32.xlu0 %v2862, 104
    %v4547 = vpop.permute.xlu0 %4546
    %4548 = vrot.lane.b32.xlu0 %v2865, 104
    %v4549 = vpop.permute.xlu0 %4548
    %4550 = vrot.lane.b32.xlu0 %v2880, 72
    %v4551 = vpop.permute.xlu0 %4550
    %v4552 = vsel %vm337, %v4547, 0
    %v4554 = vsel %vm337, %v4549, 0
    %v4556 = vsel %vm337, %v4551, 0
    %4558 = vmatpush.xpose.msra.mxu0 0.0
    %4559 = vmatpush.xpose.msra.mxu0 0.0
    %4560 = vmatpush.xpose.msra.mxu0 0.0
    %4561 = vmatpush.xpose.msra.mxu0 0.0
    %4562 = vmatpush.xpose.msra.mxu0 0.0
    %4563 = vmatpush.xpose.msra.mxu0 0.0
    %4564 = vmatpush.xpose.msra.mxu0 0.0
    %4565 = vmatpush.xpose.msra.mxu0 0.0
    %4566 = vmatpush.xpose.msra.mxu0 0.0
    %4567 = vmatpush.xpose.msra.mxu0 0.0
    %4568 = vmatpush.xpose.msra.mxu0 0.0
    %4569 = vmatpush.xpose.msra.mxu0 0.0
    %4570 = vmatpush.xpose.msra.mxu0 0.0
    %4571 = vmatpush.xpose.msra.mxu0 0.0
    %4572 = vmatpush.xpose.msra.mxu0 0.0
    %4573 = vmatpush.xpose.msra.mxu0 %v4556
    %4574 = vmatmul.f32.gmra.mxu0 %v4552
    %v4575 = vpop.f32.mrf.mxu0
    %v4576 = vadd.f32 0.0, %v4575
    %4577 = vmatmul.f32.gmra.mxu0 %v4554
    %v4578 = vpop.f32.mrf.mxu0
    %v4579 = vadd.f32 0.0, %v4578
    %4580 = vdwg.mxu0
    %4581 = vrot.lane.b32.xlu0 %v2868, 104
    %v4582 = vpop.permute.xlu0 %4581
    %4583 = vrot.lane.b32.xlu0 %v2871, 104
    %v4584 = vpop.permute.xlu0 %4583
    %4585 = vrot.lane.b32.xlu0 %v2883, 72
    %v4586 = vpop.permute.xlu0 %4585
    %v4587 = vsel %vm337, %v4582, 0
    %v4589 = vsel %vm337, %v4584, 0
    %v4591 = vsel %vm337, %v4586, 0
    %4593 = vmatpush.xpose.msra.mxu0 0.0
    %4594 = vmatpush.xpose.msra.mxu0 0.0
    %4595 = vmatpush.xpose.msra.mxu0 0.0
    %4596 = vmatpush.xpose.msra.mxu0 0.0
    %4597 = vmatpush.xpose.msra.mxu0 0.0
    %4598 = vmatpush.xpose.msra.mxu0 0.0
    %4599 = vmatpush.xpose.msra.mxu0 0.0
    %4600 = vmatpush.xpose.msra.mxu0 0.0
    %4601 = vmatpush.xpose.msra.mxu0 0.0
    %4602 = vmatpush.xpose.msra.mxu0 0.0
    %4603 = vmatpush.xpose.msra.mxu0 0.0
    %4604 = vmatpush.xpose.msra.mxu0 0.0
    %4605 = vmatpush.xpose.msra.mxu0 0.0
    %4606 = vmatpush.xpose.msra.mxu0 0.0
    %4607 = vmatpush.xpose.msra.mxu0 0.0
    %4608 = vmatpush.xpose.msra.mxu0 %v4591
    %4609 = vmatmul.f32.gmra.mxu0 %v4587
    %v4610 = vpop.f32.mrf.mxu0
    %v4611 = vadd.f32 0.0, %v4610
    %4612 = vmatmul.f32.gmra.mxu0 %v4589
    %v4613 = vpop.f32.mrf.mxu0
    %v4614 = vadd.f32 0.0, %v4613
    %4615 = vdwg.mxu0
    %v4616 = vsel %vm337, %v4506, -inf
    %4617 = vmax.xlane.f32.xlu0 %v4616
    %v4618 = vpop.xlane.xlu0 %4617
    %v4619 = vsel %vm337, %v4509, -inf
    %4620 = vmax.xlane.f32.xlu0 %v4619
    %v4621 = vpop.xlane.xlu0 %4620
    %v4622 = vsel %vm337, %v4541, -inf
    %4623 = vmax.xlane.f32.xlu0 %v4622
    %v4624 = vpop.xlane.xlu0 %4623
    %v4625 = vsel %vm337, %v4544, -inf
    %4626 = vmax.xlane.f32.xlu0 %v4625
    %v4627 = vpop.xlane.xlu0 %4626
    %v4628 = vsel %vm337, %v4576, -inf
    %4629 = vmax.xlane.f32.xlu0 %v4628
    %v4630 = vpop.xlane.xlu0 %4629
    %v4631 = vsel %vm337, %v4579, -inf
    %4632 = vmax.xlane.f32.xlu0 %v4631
    %v4633 = vpop.xlane.xlu0 %4632
    %v4634 = vsel %vm337, %v4611, -inf
    %4635 = vmax.xlane.f32.xlu0 %v4634
    %v4636 = vpop.xlane.xlu0 %4635
    %v4637 = vsel %vm337, %v4614, -inf
    %4638 = vmax.xlane.f32.xlu0 %v4637
    %v4639 = vpop.xlane.xlu0 %4638
    %v4640 = vsub.f32 %v4506, %v4618
    %v4641 = vsub.f32 %v4509, %v4621
    %v4642 = vsub.f32 %v4541, %v4624
    %v4643 = vsub.f32 %v4544, %v4627
    %v4644 = vsub.f32 %v4576, %v4630
    %v4645 = vsub.f32 %v4579, %v4633
    %v4646 = vsub.f32 %v4611, %v4636
    %v4647 = vsub.f32 %v4614, %v4639
    %v4648 = vmul.f32 %v4640, 1.442695
    %v4649 = vpow.pop %v4648
    %v4650 = vmul.f32 %v4641, 1.442695
    %v4651 = vpow.pop %v4650
    %v4652 = vmul.f32 %v4642, 1.442695
    %v4653 = vpow.pop %v4652
    %v4654 = vmul.f32 %v4643, 1.442695
    %v4655 = vpow.pop %v4654
    %v4656 = vmul.f32 %v4644, 1.442695
    %v4657 = vpow.pop %v4656
    %v4658 = vmul.f32 %v4645, 1.442695
    %v4659 = vpow.pop %v4658
    %v4660 = vmul.f32 %v4646, 1.442695
    %v4661 = vpow.pop %v4660
    %v4662 = vmul.f32 %v4647, 1.442695
    %v4663 = vpow.pop %v4662
    %v4664 = vsel %vm337, %v4649, 0.0
    %4665 = vadd.xlane.f32.xlu0 %v4664
    %v4666 = vpop.xlane.xlu0 %4665
    %v4667 = vsel %vm337, %v4651, 0.0
    %4668 = vadd.xlane.f32.xlu0 %v4667
    %v4669 = vpop.xlane.xlu0 %4668
    %v4670 = vsel %vm337, %v4653, 0.0
    %4671 = vadd.xlane.f32.xlu0 %v4670
    %v4672 = vpop.xlane.xlu0 %4671
    %v4673 = vsel %vm337, %v4655, 0.0
    %4674 = vadd.xlane.f32.xlu0 %v4673
    %v4675 = vpop.xlane.xlu0 %4674
    %v4676 = vsel %vm337, %v4657, 0.0
    %4677 = vadd.xlane.f32.xlu0 %v4676
    %v4678 = vpop.xlane.xlu0 %4677
    %v4679 = vsel %vm337, %v4659, 0.0
    %4680 = vadd.xlane.f32.xlu0 %v4679
    %v4681 = vpop.xlane.xlu0 %4680
    %v4682 = vsel %vm337, %v4661, 0.0
    %4683 = vadd.xlane.f32.xlu0 %v4682
    %v4684 = vpop.xlane.xlu0 %4683
    %v4685 = vsel %vm337, %v4663, 0.0
    %4686 = vadd.xlane.f32.xlu0 %v4685
    %v4687 = vpop.xlane.xlu0 %4686
    %v4688 = vrcp.pop %v4666
    %v4689 = vmul.f32 %v4666, %v4688
    %v4690 = vsub.f32 1.0, %v4689
    %v4691 = vmul.f32 %v4688, %v4690
    %v4692 = vadd.f32 %v4688, %v4691
    %vm4693 = vweird.f32 %v4666
    %vm4694 = vweird.f32 %v4688
    %vm4695 = vmor %vm4693, %vm4694
    %v4696 = vsel %vm4695, %v4688, %v4692
    %v4697 = vand.u32 2147483647, %v4666
    %vm4698 = vcmp.eq.f32.partialorder %v4697, 8.507059e+37
    %v4699 = vand.u32 %v4666, 2147483648
    %v4700 = vor.u32 1.1754944e-38, %v4699
    %v4701 = vsel %vm4698, %v4700, %v4696
    %v4702 = vmul.f32 %v4649, %v4701
    %v4703 = vrcp.pop %v4669
    %v4704 = vmul.f32 %v4669, %v4703
    %v4705 = vsub.f32 1.0, %v4704
    %v4706 = vmul.f32 %v4703, %v4705
    %v4707 = vadd.f32 %v4703, %v4706
    %vm4708 = vweird.f32 %v4669
    %vm4709 = vweird.f32 %v4703
    %vm4710 = vmor %vm4708, %vm4709
    %v4711 = vsel %vm4710, %v4703, %v4707
    %v4712 = vand.u32 2147483647, %v4669
    %vm4713 = vcmp.eq.f32.partialorder %v4712, 8.507059e+37
    %v4714 = vand.u32 %v4669, 2147483648
    %v4715 = vor.u32 1.1754944e-38, %v4714
    %v4716 = vsel %vm4713, %v4715, %v4711
    %v4717 = vmul.f32 %v4651, %v4716
    %v4718 = vrcp.pop %v4672
    %v4719 = vmul.f32 %v4672, %v4718
    %v4720 = vsub.f32 1.0, %v4719
    %v4721 = vmul.f32 %v4718, %v4720
    %v4722 = vadd.f32 %v4718, %v4721
    %vm4723 = vweird.f32 %v4672
    %vm4724 = vweird.f32 %v4718
    %vm4725 = vmor %vm4723, %vm4724
    %v4726 = vsel %vm4725, %v4718, %v4722
    %v4727 = vand.u32 2147483647, %v4672
    %vm4728 = vcmp.eq.f32.partialorder %v4727, 8.507059e+37
    %v4729 = vand.u32 %v4672, 2147483648
    %v4730 = vor.u32 1.1754944e-38, %v4729
    %v4731 = vsel %vm4728, %v4730, %v4726
    %v4732 = vmul.f32 %v4653, %v4731
    %v4733 = vrcp.pop %v4675
    %v4734 = vmul.f32 %v4675, %v4733
    %v4735 = vsub.f32 1.0, %v4734
    %v4736 = vmul.f32 %v4733, %v4735
    %v4737 = vadd.f32 %v4733, %v4736
    %vm4738 = vweird.f32 %v4675
    %vm4739 = vweird.f32 %v4733
    %vm4740 = vmor %vm4738, %vm4739
    %v4741 = vsel %vm4740, %v4733, %v4737
    %v4742 = vand.u32 2147483647, %v4675
    %vm4743 = vcmp.eq.f32.partialorder %v4742, 8.507059e+37
    %v4744 = vand.u32 %v4675, 2147483648
    %v4745 = vor.u32 1.1754944e-38, %v4744
    %v4746 = vsel %vm4743, %v4745, %v4741
    %v4747 = vmul.f32 %v4655, %v4746
    %v4748 = vrcp.pop %v4678
    %v4749 = vmul.f32 %v4678, %v4748
    %v4750 = vsub.f32 1.0, %v4749
    %v4751 = vmul.f32 %v4748, %v4750
    %v4752 = vadd.f32 %v4748, %v4751
    %vm4753 = vweird.f32 %v4678
    %vm4754 = vweird.f32 %v4748
    %vm4755 = vmor %vm4753, %vm4754
    %v4756 = vsel %vm4755, %v4748, %v4752
    %v4757 = vand.u32 2147483647, %v4678
    %vm4758 = vcmp.eq.f32.partialorder %v4757, 8.507059e+37
    %v4759 = vand.u32 %v4678, 2147483648
    %v4760 = vor.u32 1.1754944e-38, %v4759
    %v4761 = vsel %vm4758, %v4760, %v4756
    %v4762 = vmul.f32 %v4657, %v4761
    %v4763 = vrcp.pop %v4681
    %v4764 = vmul.f32 %v4681, %v4763
    %v4765 = vsub.f32 1.0, %v4764
    %v4766 = vmul.f32 %v4763, %v4765
    %v4767 = vadd.f32 %v4763, %v4766
    %vm4768 = vweird.f32 %v4681
    %vm4769 = vweird.f32 %v4763
    %vm4770 = vmor %vm4768, %vm4769
    %v4771 = vsel %vm4770, %v4763, %v4767
    %v4772 = vand.u32 2147483647, %v4681
    %vm4773 = vcmp.eq.f32.partialorder %v4772, 8.507059e+37
    %v4774 = vand.u32 %v4681, 2147483648
    %v4775 = vor.u32 1.1754944e-38, %v4774
    %v4776 = vsel %vm4773, %v4775, %v4771
    %v4777 = vmul.f32 %v4659, %v4776
    %v4778 = vrcp.pop %v4684
    %v4779 = vmul.f32 %v4684, %v4778
    %v4780 = vsub.f32 1.0, %v4779
    %v4781 = vmul.f32 %v4778, %v4780
    %v4782 = vadd.f32 %v4778, %v4781
    %vm4783 = vweird.f32 %v4684
    %vm4784 = vweird.f32 %v4778
    %vm4785 = vmor %vm4783, %vm4784
    %v4786 = vsel %vm4785, %v4778, %v4782
    %v4787 = vand.u32 2147483647, %v4684
    %vm4788 = vcmp.eq.f32.partialorder %v4787, 8.507059e+37
    %v4789 = vand.u32 %v4684, 2147483648
    %v4790 = vor.u32 1.1754944e-38, %v4789
    %v4791 = vsel %vm4788, %v4790, %v4786
    %v4792 = vmul.f32 %v4661, %v4791
    %v4793 = vrcp.pop %v4687
    %v4794 = vmul.f32 %v4687, %v4793
    %v4795 = vsub.f32 1.0, %v4794
    %v4796 = vmul.f32 %v4793, %v4795
    %v4797 = vadd.f32 %v4793, %v4796
    %vm4798 = vweird.f32 %v4687
    %vm4799 = vweird.f32 %v4793
    %vm4800 = vmor %vm4798, %vm4799
    %v4801 = vsel %vm4800, %v4793, %v4797
    %v4802 = vand.u32 2147483647, %v4687
    %vm4803 = vcmp.eq.f32.partialorder %v4802, 8.507059e+37
    %v4804 = vand.u32 %v4687, 2147483648
    %v4805 = vor.u32 1.1754944e-38, %v4804
    %v4806 = vsel %vm4803, %v4805, %v4801
    %v4807 = vmul.f32 %v4663, %v4806
    %4808 = vrot.lane.b32.xlu0 %v2874, 40
    %v4809 = vpop.permute.xlu0 %4808
    %v4812 = vsel %vm337, %v4702, 0
    %v4815 = vsel %vm337, %v4717, 0
    %4817 = vmatpush.msra.mxu0 0.0
    %4818 = vmatpush.msra.mxu0 0.0
    %4819 = vmatpush.msra.mxu0 0.0
    %4820 = vmatpush.msra.mxu0 0.0
    %4821 = vmatpush.msra.mxu0 0.0
    %4822 = vmatpush.msra.mxu0 0.0
    %4823 = vmatpush.msra.mxu0 0.0
    %4824 = vmatpush.msra.mxu0 0.0
    %4825 = vmatpush.msra.mxu0 0.0
    %4826 = vmatpush.msra.mxu0 0.0
    %4827 = vmatpush.msra.mxu0 0.0
    %4828 = vmatpush.msra.mxu0 0.0
    %4829 = vmatpush.msra.mxu0 0.0
    %4830 = vmatpush.msra.mxu0 0.0
    %4831 = vmatpush.msra.mxu0 0.0
    %4832 = vmatpush.msra.mxu0 %v4809
    %4833 = vmatmul.f32.gmra.mxu0 %v4812
    %v4834 = vpop.f32.mrf.mxu0
    %v4835 = vadd.f32 0.0, %v4834
    %4836 = vmatmul.f32.gmra.mxu0 %v4815
    %v4837 = vpop.f32.mrf.mxu0
    %v4838 = vadd.f32 0.0, %v4837
    %4839 = vdwg.mxu0
    %4840 = vrot.lane.b32.xlu0 %v2877, 40
    %v4841 = vpop.permute.xlu0 %4840
    %v4844 = vsel %vm337, %v4732, 0
    %v4847 = vsel %vm337, %v4747, 0
    %4849 = vmatpush.msra.mxu0 0.0
    %4850 = vmatpush.msra.mxu0 0.0
    %4851 = vmatpush.msra.mxu0 0.0
    %4852 = vmatpush.msra.mxu0 0.0
    %4853 = vmatpush.msra.mxu0 0.0
    %4854 = vmatpush.msra.mxu0 0.0
    %4855 = vmatpush.msra.mxu0 0.0
    %4856 = vmatpush.msra.mxu0 0.0
    %4857 = vmatpush.msra.mxu0 0.0
    %4858 = vmatpush.msra.mxu0 0.0
    %4859 = vmatpush.msra.mxu0 0.0
    %4860 = vmatpush.msra.mxu0 0.0
    %4861 = vmatpush.msra.mxu0 0.0
    %4862 = vmatpush.msra.mxu0 0.0
    %4863 = vmatpush.msra.mxu0 0.0
    %4864 = vmatpush.msra.mxu0 %v4841
    %4865 = vmatmul.f32.gmra.mxu0 %v4844
    %v4866 = vpop.f32.mrf.mxu0
    %v4867 = vadd.f32 0.0, %v4866
    %4868 = vmatmul.f32.gmra.mxu0 %v4847
    %v4869 = vpop.f32.mrf.mxu0
    %v4870 = vadd.f32 0.0, %v4869
    %4871 = vdwg.mxu0
    %4872 = vrot.lane.b32.xlu0 %v2880, 40
    %v4873 = vpop.permute.xlu0 %4872
    %v4876 = vsel %vm337, %v4762, 0
    %v4879 = vsel %vm337, %v4777, 0
    %4881 = vmatpush.msra.mxu0 0.0
    %4882 = vmatpush.msra.mxu0 0.0
    %4883 = vmatpush.msra.mxu0 0.0
    %4884 = vmatpush.msra.mxu0 0.0
    %4885 = vmatpush.msra.mxu0 0.0
    %4886 = vmatpush.msra.mxu0 0.0
    %4887 = vmatpush.msra.mxu0 0.0
    %4888 = vmatpush.msra.mxu0 0.0
    %4889 = vmatpush.msra.mxu0 0.0
    %4890 = vmatpush.msra.mxu0 0.0
    %4891 = vmatpush.msra.mxu0 0.0
    %4892 = vmatpush.msra.mxu0 0.0
    %4893 = vmatpush.msra.mxu0 0.0
    %4894 = vmatpush.msra.mxu0 0.0
    %4895 = vmatpush.msra.mxu0 0.0
    %4896 = vmatpush.msra.mxu0 %v4873
    %4897 = vmatmul.f32.gmra.mxu0 %v4876
    %v4898 = vpop.f32.mrf.mxu0
    %v4899 = vadd.f32 0.0, %v4898
    %4900 = vmatmul.f32.gmra.mxu0 %v4879
    %v4901 = vpop.f32.mrf.mxu0
    %v4902 = vadd.f32 0.0, %v4901
    %4903 = vdwg.mxu0
    %4904 = vrot.lane.b32.xlu0 %v2883, 40
    %v4905 = vpop.permute.xlu0 %4904
    %v4908 = vsel %vm337, %v4792, 0
    %v4911 = vsel %vm337, %v4807, 0
    %4913 = vmatpush.msra.mxu0 0.0
    %4914 = vmatpush.msra.mxu0 0.0
    %4915 = vmatpush.msra.mxu0 0.0
    %4916 = vmatpush.msra.mxu0 0.0
    %4917 = vmatpush.msra.mxu0 0.0
    %4918 = vmatpush.msra.mxu0 0.0
    %4919 = vmatpush.msra.mxu0 0.0
    %4920 = vmatpush.msra.mxu0 0.0
    %4921 = vmatpush.msra.mxu0 0.0
    %4922 = vmatpush.msra.mxu0 0.0
    %4923 = vmatpush.msra.mxu0 0.0
    %4924 = vmatpush.msra.mxu0 0.0
    %4925 = vmatpush.msra.mxu0 0.0
    %4926 = vmatpush.msra.mxu0 0.0
    %4927 = vmatpush.msra.mxu0 0.0
    %4928 = vmatpush.msra.mxu0 %v4905
    %4929 = vmatmul.f32.gmra.mxu0 %v4908
    %v4930 = vpop.f32.mrf.mxu0
    %v4931 = vadd.f32 0.0, %v4930
    %4932 = vmatmul.f32.gmra.mxu0 %v4911
    %v4933 = vpop.f32.mrf.mxu0
    %v4934 = vadd.f32 0.0, %v4933
    %4935 = vdwg.mxu0
    %4937 = vrot.lane.b32.xlu0 %v53, 96
    %v4938 = vpop.permute.xlu0 %4937
    %v4941 = vsel %vm337, %v4835, 0
    %v4944 = vsel %vm337, %v4838, 0
    %v4947 = vsel %vm337, %v4867, 0
    %v4950 = vsel %vm337, %v4870, 0
    %v4953 = vsel %vm337, %v4899, 0
    %v4956 = vsel %vm337, %v4902, 0
    %v4959 = vsel %vm337, %v4931, 0
    %v4962 = vsel %vm337, %v4934, 0
    %4964 = vmatpush.msra.mxu0 0.0
    %4965 = vmatpush.msra.mxu0 0.0
    %4966 = vmatpush.msra.mxu0 0.0
    %4967 = vmatpush.msra.mxu0 0.0
    %4968 = vmatpush.msra.mxu0 0.0
    %4969 = vmatpush.msra.mxu0 0.0
    %4970 = vmatpush.msra.mxu0 0.0
    %4971 = vmatpush.msra.mxu0 0.0
    %4972 = vmatpush.msra.mxu0 0.0
    %4973 = vmatpush.msra.mxu0 0.0
    %4974 = vmatpush.msra.mxu0 0.0
    %4975 = vmatpush.msra.mxu0 0.0
    %4976 = vmatpush.msra.mxu0 0.0
    %4977 = vmatpush.msra.mxu0 0.0
    %4978 = vmatpush.msra.mxu0 0.0
    %4979 = vmatpush.msra.mxu0 %v4938
    %4980 = vmatmul.f32.gmra.mxu0 %v4941
    %v4981 = vpop.f32.mrf.mxu0
    %v4982 = vadd.f32 0.0, %v4981
    %4983 = vmatmul.f32.gmra.mxu0 %v4944
    %v4984 = vpop.f32.mrf.mxu0
    %v4985 = vadd.f32 0.0, %v4984
    %4986 = vmatmul.f32.gmra.mxu0 %v4947
    %v4987 = vpop.f32.mrf.mxu0
    %v4988 = vadd.f32 0.0, %v4987
    %4989 = vmatmul.f32.gmra.mxu0 %v4950
    %v4990 = vpop.f32.mrf.mxu0
    %v4991 = vadd.f32 0.0, %v4990
    %4992 = vmatmul.f32.gmra.mxu0 %v4953
    %v4993 = vpop.f32.mrf.mxu0
    %v4994 = vadd.f32 0.0, %v4993
    %4995 = vmatmul.f32.gmra.mxu0 %v4956
    %v4996 = vpop.f32.mrf.mxu0
    %v4997 = vadd.f32 0.0, %v4996
    %4998 = vmatmul.f32.gmra.mxu0 %v4959
    %v4999 = vpop.f32.mrf.mxu0
    %v5000 = vadd.f32 0.0, %v4999
    %5001 = vmatmul.f32.gmra.mxu0 %v4962
    %v5002 = vpop.f32.mrf.mxu0
    %v5003 = vadd.f32 0.0, %v5002
    %5004 = vdwg.mxu0
    %v5005 = vadd.f32 %v4468, %v4982
    %v5006 = vadd.f32 %v4469, %v4985
    %v5007 = vadd.f32 %v4470, %v4988
    %v5008 = vadd.f32 %v4471, %v4991
    %v5009 = vadd.f32 %v4472, %v4994
    %v5010 = vadd.f32 %v4473, %v4997
    %v5011 = vadd.f32 %v4474, %v5000
    %v5012 = vadd.f32 %v4475, %v5003
    %v5013 = vperm.slane %v62, 7
    %v5014 = vadd.f32 %v5005, %v5013
    %v5015 = vadd.f32 %v5006, %v5013
    %v5016 = vadd.f32 %v5007, %v5013
    %v5017 = vadd.f32 %v5008, %v5013
    %v5018 = vadd.f32 %v5009, %v5013
    %v5019 = vadd.f32 %v5010, %v5013
    %v5020 = vadd.f32 %v5011, %v5013
    %v5021 = vadd.f32 %v5012, %v5013
    %v5022 = vadd.f32 %v5014, %v2562
    %v5023 = vadd.f32 %v5015, %v2563
    %v5024 = vadd.f32 %v5016, %v2564
    %v5025 = vadd.f32 %v5017, %v2565
    %v5026 = vadd.f32 %v5018, %v2566
    %v5027 = vadd.f32 %v5019, %v2567
    %v5028 = vadd.f32 %v5020, %v2568
    %v5029 = vadd.f32 %v5021, %v2569
    %v5030 = vsel %vm64, %v5022, 0.0
    %5031 = vadd.xlane.f32.xlu0 %v5030
    %v5032 = vpop.xlane.xlu0 %5031
    %v5033 = vsel %vm64, %v5023, 0.0
    %5034 = vadd.xlane.f32.xlu0 %v5033
    %v5035 = vpop.xlane.xlu0 %5034
    %v5036 = vsel %vm64, %v5024, 0.0
    %5037 = vadd.xlane.f32.xlu0 %v5036
    %v5038 = vpop.xlane.xlu0 %5037
    %v5039 = vsel %vm64, %v5025, 0.0
    %5040 = vadd.xlane.f32.xlu0 %v5039
    %v5041 = vpop.xlane.xlu0 %5040
    %v5042 = vsel %vm64, %v5026, 0.0
    %5043 = vadd.xlane.f32.xlu0 %v5042
    %v5044 = vpop.xlane.xlu0 %5043
    %v5045 = vsel %vm64, %v5027, 0.0
    %5046 = vadd.xlane.f32.xlu0 %v5045
    %v5047 = vpop.xlane.xlu0 %5046
    %v5048 = vsel %vm64, %v5028, 0.0
    %5049 = vadd.xlane.f32.xlu0 %v5048
    %v5050 = vpop.xlane.xlu0 %5049
    %v5051 = vsel %vm64, %v5029, 0.0
    %5052 = vadd.xlane.f32.xlu0 %v5051
    %v5053 = vpop.xlane.xlu0 %5052
    %v5054 = vmul.f32 %v5032, %v95
    %v5055 = vmul.f32 %v5035, %v95
    %v5056 = vmul.f32 %v5038, %v95
    %v5057 = vmul.f32 %v5041, %v95
    %v5058 = vmul.f32 %v5044, %v95
    %v5059 = vmul.f32 %v5047, %v95
    %v5060 = vmul.f32 %v5050, %v95
    %v5061 = vmul.f32 %v5053, %v95
    %v5062 = vsub.f32 %v5022, %v5054
    %v5063 = vsub.f32 %v5023, %v5055
    %v5064 = vsub.f32 %v5024, %v5056
    %v5065 = vsub.f32 %v5025, %v5057
    %v5066 = vsub.f32 %v5026, %v5058
    %v5067 = vsub.f32 %v5027, %v5059
    %v5068 = vsub.f32 %v5028, %v5060
    %v5069 = vsub.f32 %v5029, %v5061
    %v5070 = vmul.f32 %v5062, %v5062
    %v5071 = vmul.f32 %v5063, %v5063
    %v5072 = vmul.f32 %v5064, %v5064
    %v5073 = vmul.f32 %v5065, %v5065
    %v5074 = vmul.f32 %v5066, %v5066
    %v5075 = vmul.f32 %v5067, %v5067
    %v5076 = vmul.f32 %v5068, %v5068
    %v5077 = vmul.f32 %v5069, %v5069
    %v5078 = vsel %vm64, %v5070, 0.0
    %5079 = vadd.xlane.f32.xlu0 %v5078
    %v5080 = vpop.xlane.xlu0 %5079
    %v5081 = vsel %vm64, %v5071, 0.0
    %5082 = vadd.xlane.f32.xlu0 %v5081
    %v5083 = vpop.xlane.xlu0 %5082
    %v5084 = vsel %vm64, %v5072, 0.0
    %5085 = vadd.xlane.f32.xlu0 %v5084
    %v5086 = vpop.xlane.xlu0 %5085
    %v5087 = vsel %vm64, %v5073, 0.0
    %5088 = vadd.xlane.f32.xlu0 %v5087
    %v5089 = vpop.xlane.xlu0 %5088
    %v5090 = vsel %vm64, %v5074, 0.0
    %5091 = vadd.xlane.f32.xlu0 %v5090
    %v5092 = vpop.xlane.xlu0 %5091
    %v5093 = vsel %vm64, %v5075, 0.0
    %5094 = vadd.xlane.f32.xlu0 %v5093
    %v5095 = vpop.xlane.xlu0 %5094
    %v5096 = vsel %vm64, %v5076, 0.0
    %5097 = vadd.xlane.f32.xlu0 %v5096
    %v5098 = vpop.xlane.xlu0 %5097
    %v5099 = vsel %vm64, %v5077, 0.0
    %5100 = vadd.xlane.f32.xlu0 %v5099
    %v5101 = vpop.xlane.xlu0 %5100
    %v5102 = vmul.f32 %v5080, %v95
    %v5103 = vmul.f32 %v5083, %v95
    %v5104 = vmul.f32 %v5086, %v95
    %v5105 = vmul.f32 %v5089, %v95
    %v5106 = vmul.f32 %v5092, %v95
    %v5107 = vmul.f32 %v5095, %v95
    %v5108 = vmul.f32 %v5098, %v95
    %v5109 = vmul.f32 %v5101, %v95
    %v5110 = vadd.f32 %v5102, 1e-05
    %v5111 = vadd.f32 %v5103, 1e-05
    %v5112 = vadd.f32 %v5104, 1e-05
    %v5113 = vadd.f32 %v5105, 1e-05
    %v5114 = vadd.f32 %v5106, 1e-05
    %v5115 = vadd.f32 %v5107, 1e-05
    %v5116 = vadd.f32 %v5108, 1e-05
    %v5117 = vadd.f32 %v5109, 1e-05
    %v5118 = vrsqrt.pop %v5110
    %v5119 = vmul.f32 %v5118, %v5110
    %v5120 = vmul.f32 %v5119, %v5118
    %v5121 = vmul.f32 0.5, %v5120
    %v5122 = vsub.f32 1.5, %v5121
    %v5123 = vmul.f32 %v5118, %v5122
    %vm5124 = vweird.f32 %v5110
    %vm5125 = vweird.f32 %v5118
    %vm5126 = vmor %vm5124, %vm5125
    %v5127 = vsel %vm5126, %v5118, %v5123
    %v5128 = vrsqrt.pop %v5111
    %v5129 = vmul.f32 %v5128, %v5111
    %v5130 = vmul.f32 %v5129, %v5128
    %v5131 = vmul.f32 0.5, %v5130
    %v5132 = vsub.f32 1.5, %v5131
    %v5133 = vmul.f32 %v5128, %v5132
    %vm5134 = vweird.f32 %v5111
    %vm5135 = vweird.f32 %v5128
    %vm5136 = vmor %vm5134, %vm5135
    %v5137 = vsel %vm5136, %v5128, %v5133
    %v5138 = vrsqrt.pop %v5112
    %v5139 = vmul.f32 %v5138, %v5112
    %v5140 = vmul.f32 %v5139, %v5138
    %v5141 = vmul.f32 0.5, %v5140
    %v5142 = vsub.f32 1.5, %v5141
    %v5143 = vmul.f32 %v5138, %v5142
    %vm5144 = vweird.f32 %v5112
    %vm5145 = vweird.f32 %v5138
    %vm5146 = vmor %vm5144, %vm5145
    %v5147 = vsel %vm5146, %v5138, %v5143
    %v5148 = vrsqrt.pop %v5113
    %v5149 = vmul.f32 %v5148, %v5113
    %v5150 = vmul.f32 %v5149, %v5148
    %v5151 = vmul.f32 0.5, %v5150
    %v5152 = vsub.f32 1.5, %v5151
    %v5153 = vmul.f32 %v5148, %v5152
    %vm5154 = vweird.f32 %v5113
    %vm5155 = vweird.f32 %v5148
    %vm5156 = vmor %vm5154, %vm5155
    %v5157 = vsel %vm5156, %v5148, %v5153
    %v5158 = vrsqrt.pop %v5114
    %v5159 = vmul.f32 %v5158, %v5114
    %v5160 = vmul.f32 %v5159, %v5158
    %v5161 = vmul.f32 0.5, %v5160
    %v5162 = vsub.f32 1.5, %v5161
    %v5163 = vmul.f32 %v5158, %v5162
    %vm5164 = vweird.f32 %v5114
    %vm5165 = vweird.f32 %v5158
    %vm5166 = vmor %vm5164, %vm5165
    %v5167 = vsel %vm5166, %v5158, %v5163
    %v5168 = vrsqrt.pop %v5115
    %v5169 = vmul.f32 %v5168, %v5115
    %v5170 = vmul.f32 %v5169, %v5168
    %v5171 = vmul.f32 0.5, %v5170
    %v5172 = vsub.f32 1.5, %v5171
    %v5173 = vmul.f32 %v5168, %v5172
    %vm5174 = vweird.f32 %v5115
    %vm5175 = vweird.f32 %v5168
    %vm5176 = vmor %vm5174, %vm5175
    %v5177 = vsel %vm5176, %v5168, %v5173
    %v5178 = vrsqrt.pop %v5116
    %v5179 = vmul.f32 %v5178, %v5116
    %v5180 = vmul.f32 %v5179, %v5178
    %v5181 = vmul.f32 0.5, %v5180
    %v5182 = vsub.f32 1.5, %v5181
    %v5183 = vmul.f32 %v5178, %v5182
    %vm5184 = vweird.f32 %v5116
    %vm5185 = vweird.f32 %v5178
    %vm5186 = vmor %vm5184, %vm5185
    %v5187 = vsel %vm5186, %v5178, %v5183
    %v5188 = vrsqrt.pop %v5117
    %v5189 = vmul.f32 %v5188, %v5117
    %v5190 = vmul.f32 %v5189, %v5188
    %v5191 = vmul.f32 0.5, %v5190
    %v5192 = vsub.f32 1.5, %v5191
    %v5193 = vmul.f32 %v5188, %v5192
    %vm5194 = vweird.f32 %v5117
    %vm5195 = vweird.f32 %v5188
    %vm5196 = vmor %vm5194, %vm5195
    %v5197 = vsel %vm5196, %v5188, %v5193
    %v5198 = vmul.f32 %v5062, %v5127
    %v5199 = vmul.f32 %v5063, %v5137
    %v5200 = vmul.f32 %v5064, %v5147
    %v5201 = vmul.f32 %v5065, %v5157
    %v5202 = vmul.f32 %v5066, %v5167
    %v5203 = vmul.f32 %v5067, %v5177
    %v5204 = vmul.f32 %v5068, %v5187
    %v5205 = vmul.f32 %v5069, %v5197
    %v5206 = vperm.slane %v62, 4
    %v5207 = vmul.f32 %v5198, %v5206
    %v5208 = vmul.f32 %v5199, %v5206
    %v5209 = vmul.f32 %v5200, %v5206
    %v5210 = vmul.f32 %v5201, %v5206
    %v5211 = vmul.f32 %v5202, %v5206
    %v5212 = vmul.f32 %v5203, %v5206
    %v5213 = vmul.f32 %v5204, %v5206
    %v5214 = vmul.f32 %v5205, %v5206
    %v5215 = vperm.slane %v62, 5
    %v5216 = vadd.f32 %v5207, %v5215
    %v5217 = vadd.f32 %v5208, %v5215
    %v5218 = vadd.f32 %v5209, %v5215
    %v5219 = vadd.f32 %v5210, %v5215
    %v5220 = vadd.f32 %v5211, %v5215
    %v5221 = vadd.f32 %v5212, %v5215
    %v5222 = vadd.f32 %v5213, %v5215
    %v5223 = vadd.f32 %v5214, %v5215
    %v5224 = vperm.slane %v63, 1
    %5225 = vrot.lane.b32.xlu0 %v43, 64
    %v5226 = vpop.permute.xlu0 %5225
    %5227 = vrot.lane.b32.xlu0 %v45, 64
    %v5228 = vpop.permute.xlu0 %5227
    %5229 = vrot.lane.b32.xlu0 %v47, 64
    %v5230 = vpop.permute.xlu0 %5229
    %5231 = vrot.lane.b32.xlu0 %v49, 64
    %v5232 = vpop.permute.xlu0 %5231
    %v5238 = vsel %vm64, %v5216, 0
    %v5241 = vsel %vm64, %v5217, 0
    %v5244 = vsel %vm64, %v5218, 0
    %v5247 = vsel %vm64, %v5219, 0
    %v5250 = vsel %vm64, %v5220, 0
    %v5253 = vsel %vm64, %v5221, 0
    %v5256 = vsel %vm64, %v5222, 0
    %v5259 = vsel %vm64, %v5223, 0
    %5261 = vmatpush.msra.mxu0 0.0
    %5262 = vmatpush.msra.mxu0 0.0
    %5263 = vmatpush.msra.mxu0 0.0
    %5264 = vmatpush.msra.mxu0 0.0
    %5265 = vmatpush.msra.mxu0 0.0
    %5266 = vmatpush.msra.mxu0 0.0
    %5267 = vmatpush.msra.mxu0 0.0
    %5268 = vmatpush.msra.mxu0 0.0
    %5269 = vmatpush.msra.mxu0 0.0
    %5270 = vmatpush.msra.mxu0 0.0
    %5271 = vmatpush.msra.mxu0 0.0
    %5272 = vmatpush.msra.mxu0 0.0
    %5273 = vmatpush.msra.mxu0 %v5232
    %5274 = vmatpush.msra.mxu0 %v5230
    %5275 = vmatpush.msra.mxu0 %v5228
    %5276 = vmatpush.msra.mxu0 %v5226
    %5277 = vmatmul.f32.gmra.mxu0 %v5238
    %v5278 = vpop.f32.mrf.mxu0
    %v5279 = vadd.f32 %v5224, %v5278
    %5280 = vmatmul.f32.gmra.mxu0 %v5241
    %v5281 = vpop.f32.mrf.mxu0
    %v5282 = vadd.f32 %v5224, %v5281
    %5283 = vmatmul.f32.gmra.mxu0 %v5244
    %v5284 = vpop.f32.mrf.mxu0
    %v5285 = vadd.f32 %v5224, %v5284
    %5286 = vmatmul.f32.gmra.mxu0 %v5247
    %v5287 = vpop.f32.mrf.mxu0
    %v5288 = vadd.f32 %v5224, %v5287
    %5289 = vmatmul.f32.gmra.mxu0 %v5250
    %v5290 = vpop.f32.mrf.mxu0
    %v5291 = vadd.f32 %v5224, %v5290
    %5292 = vmatmul.f32.gmra.mxu0 %v5253
    %v5293 = vpop.f32.mrf.mxu0
    %v5294 = vadd.f32 %v5224, %v5293
    %5295 = vmatmul.f32.gmra.mxu0 %v5256
    %v5296 = vpop.f32.mrf.mxu0
    %v5297 = vadd.f32 %v5224, %v5296
    %5298 = vmatmul.f32.gmra.mxu0 %v5259
    %v5299 = vpop.f32.mrf.mxu0
    %v5300 = vadd.f32 %v5224, %v5299
    %5301 = vdwg.mxu0
    %v5302 = vmul.f32 %v5279, 0.5
    %v5303 = vmul.f32 %v5282, 0.5
    %v5304 = vmul.f32 %v5285, 0.5
    %v5305 = vmul.f32 %v5288, 0.5
    %v5306 = vmul.f32 %v5291, 0.5
    %v5307 = vmul.f32 %v5294, 0.5
    %v5308 = vmul.f32 %v5297, 0.5
    %v5309 = vmul.f32 %v5300, 0.5
    %v5310 = vmul.f32 %v5279, 0.70710677
    %v5311 = vmul.f32 %v5282, 0.70710677
    %v5312 = vmul.f32 %v5285, 0.70710677
    %v5313 = vmul.f32 %v5288, 0.70710677
    %v5314 = vmul.f32 %v5291, 0.70710677
    %v5315 = vmul.f32 %v5294, 0.70710677
    %v5316 = vmul.f32 %v5297, 0.70710677
    %v5317 = vmul.f32 %v5300, 0.70710677
    %vm5318 = vcmp.ge.f32.partialorder %v5310, 0.0
    %vm5319 = vcmp.ge.f32.partialorder %v5311, 0.0
    %vm5320 = vcmp.ge.f32.partialorder %v5312, 0.0
    %vm5321 = vcmp.ge.f32.partialorder %v5313, 0.0
    %vm5322 = vcmp.ge.f32.partialorder %v5314, 0.0
    %vm5323 = vcmp.ge.f32.partialorder %v5315, 0.0
    %vm5324 = vcmp.ge.f32.partialorder %v5316, 0.0
    %vm5325 = vcmp.ge.f32.partialorder %v5317, 0.0
    %v5326 = vsel %vm5318, 1.0, -1.0
    %v5327 = vsel %vm5319, 1.0, -1.0
    %v5328 = vsel %vm5320, 1.0, -1.0
    %v5329 = vsel %vm5321, 1.0, -1.0
    %v5330 = vsel %vm5322, 1.0, -1.0
    %v5331 = vsel %vm5323, 1.0, -1.0
    %v5332 = vsel %vm5324, 1.0, -1.0
    %v5333 = vsel %vm5325, 1.0, -1.0
    %v5334 = vand.u32 2147483647, %v5310
    %v5335 = vand.u32 2147483647, %v5311
    %v5336 = vand.u32 2147483647, %v5312
    %v5337 = vand.u32 2147483647, %v5313
    %v5338 = vand.u32 2147483647, %v5314
    %v5339 = vand.u32 2147483647, %v5315
    %v5340 = vand.u32 2147483647, %v5316
    %v5341 = vand.u32 2147483647, %v5317
    %v5342 = vmul.f32 %v5334, 0.3275911
    %v5343 = vmul.f32 %v5335, 0.3275911
    %v5344 = vmul.f32 %v5336, 0.3275911
    %v5345 = vmul.f32 %v5337, 0.3275911
    %v5346 = vmul.f32 %v5338, 0.3275911
    %v5347 = vmul.f32 %v5339, 0.3275911
    %v5348 = vmul.f32 %v5340, 0.3275911
    %v5349 = vmul.f32 %v5341, 0.3275911
    %v5350 = vadd.f32 %v5342, 1.0
    %v5351 = vadd.f32 %v5343, 1.0
    %v5352 = vadd.f32 %v5344, 1.0
    %v5353 = vadd.f32 %v5345, 1.0
    %v5354 = vadd.f32 %v5346, 1.0
    %v5355 = vadd.f32 %v5347, 1.0
    %v5356 = vadd.f32 %v5348, 1.0
    %v5357 = vadd.f32 %v5349, 1.0
    %v5358 = vrcp.pop %v5350
    %v5359 = vmul.f32 %v5350, %v5358
    %v5360 = vsub.f32 1.0, %v5359
    %v5361 = vmul.f32 %v5358, %v5360
    %v5362 = vadd.f32 %v5358, %v5361
    %vm5363 = vweird.f32 %v5350
    %vm5364 = vweird.f32 %v5358
    %vm5365 = vmor %vm5363, %vm5364
    %v5366 = vsel %vm5365, %v5358, %v5362
    %v5367 = vand.u32 2147483647, %v5350
    %vm5368 = vcmp.eq.f32.partialorder %v5367, 8.507059e+37
    %v5369 = vand.u32 %v5350, 2147483648
    %v5370 = vor.u32 1.1754944e-38, %v5369
    %v5371 = vsel %vm5368, %v5370, %v5366
    %v5372 = vmul.f32 1.0, %v5371
    %v5373 = vrcp.pop %v5351
    %v5374 = vmul.f32 %v5351, %v5373
    %v5375 = vsub.f32 1.0, %v5374
    %v5376 = vmul.f32 %v5373, %v5375
    %v5377 = vadd.f32 %v5373, %v5376
    %vm5378 = vweird.f32 %v5351
    %vm5379 = vweird.f32 %v5373
    %vm5380 = vmor %vm5378, %vm5379
    %v5381 = vsel %vm5380, %v5373, %v5377
    %v5382 = vand.u32 2147483647, %v5351
    %vm5383 = vcmp.eq.f32.partialorder %v5382, 8.507059e+37
    %v5384 = vand.u32 %v5351, 2147483648
    %v5385 = vor.u32 1.1754944e-38, %v5384
    %v5386 = vsel %vm5383, %v5385, %v5381
    %v5387 = vmul.f32 1.0, %v5386
    %v5388 = vrcp.pop %v5352
    %v5389 = vmul.f32 %v5352, %v5388
    %v5390 = vsub.f32 1.0, %v5389
    %v5391 = vmul.f32 %v5388, %v5390
    %v5392 = vadd.f32 %v5388, %v5391
    %vm5393 = vweird.f32 %v5352
    %vm5394 = vweird.f32 %v5388
    %vm5395 = vmor %vm5393, %vm5394
    %v5396 = vsel %vm5395, %v5388, %v5392
    %v5397 = vand.u32 2147483647, %v5352
    %vm5398 = vcmp.eq.f32.partialorder %v5397, 8.507059e+37
    %v5399 = vand.u32 %v5352, 2147483648
    %v5400 = vor.u32 1.1754944e-38, %v5399
    %v5401 = vsel %vm5398, %v5400, %v5396
    %v5402 = vmul.f32 1.0, %v5401
    %v5403 = vrcp.pop %v5353
    %v5404 = vmul.f32 %v5353, %v5403
    %v5405 = vsub.f32 1.0, %v5404
    %v5406 = vmul.f32 %v5403, %v5405
    %v5407 = vadd.f32 %v5403, %v5406
    %vm5408 = vweird.f32 %v5353
    %vm5409 = vweird.f32 %v5403
    %vm5410 = vmor %vm5408, %vm5409
    %v5411 = vsel %vm5410, %v5403, %v5407
    %v5412 = vand.u32 2147483647, %v5353
    %vm5413 = vcmp.eq.f32.partialorder %v5412, 8.507059e+37
    %v5414 = vand.u32 %v5353, 2147483648
    %v5415 = vor.u32 1.1754944e-38, %v5414
    %v5416 = vsel %vm5413, %v5415, %v5411
    %v5417 = vmul.f32 1.0, %v5416
    %v5418 = vrcp.pop %v5354
    %v5419 = vmul.f32 %v5354, %v5418
    %v5420 = vsub.f32 1.0, %v5419
    %v5421 = vmul.f32 %v5418, %v5420
    %v5422 = vadd.f32 %v5418, %v5421
    %vm5423 = vweird.f32 %v5354
    %vm5424 = vweird.f32 %v5418
    %vm5425 = vmor %vm5423, %vm5424
    %v5426 = vsel %vm5425, %v5418, %v5422
    %v5427 = vand.u32 2147483647, %v5354
    %vm5428 = vcmp.eq.f32.partialorder %v5427, 8.507059e+37
    %v5429 = vand.u32 %v5354, 2147483648
    %v5430 = vor.u32 1.1754944e-38, %v5429
    %v5431 = vsel %vm5428, %v5430, %v5426
    %v5432 = vmul.f32 1.0, %v5431
    %v5433 = vrcp.pop %v5355
    %v5434 = vmul.f32 %v5355, %v5433
    %v5435 = vsub.f32 1.0, %v5434
    %v5436 = vmul.f32 %v5433, %v5435
    %v5437 = vadd.f32 %v5433, %v5436
    %vm5438 = vweird.f32 %v5355
    %vm5439 = vweird.f32 %v5433
    %vm5440 = vmor %vm5438, %vm5439
    %v5441 = vsel %vm5440, %v5433, %v5437
    %v5442 = vand.u32 2147483647, %v5355
    %vm5443 = vcmp.eq.f32.partialorder %v5442, 8.507059e+37
    %v5444 = vand.u32 %v5355, 2147483648
    %v5445 = vor.u32 1.1754944e-38, %v5444
    %v5446 = vsel %vm5443, %v5445, %v5441
    %v5447 = vmul.f32 1.0, %v5446
    %v5448 = vrcp.pop %v5356
    %v5449 = vmul.f32 %v5356, %v5448
    %v5450 = vsub.f32 1.0, %v5449
    %v5451 = vmul.f32 %v5448, %v5450
    %v5452 = vadd.f32 %v5448, %v5451
    %vm5453 = vweird.f32 %v5356
    %vm5454 = vweird.f32 %v5448
    %vm5455 = vmor %vm5453, %vm5454
    %v5456 = vsel %vm5455, %v5448, %v5452
    %v5457 = vand.u32 2147483647, %v5356
    %vm5458 = vcmp.eq.f32.partialorder %v5457, 8.507059e+37
    %v5459 = vand.u32 %v5356, 2147483648
    %v5460 = vor.u32 1.1754944e-38, %v5459
    %v5461 = vsel %vm5458, %v5460, %v5456
    %v5462 = vmul.f32 1.0, %v5461
    %v5463 = vrcp.pop %v5357
    %v5464 = vmul.f32 %v5357, %v5463
    %v5465 = vsub.f32 1.0, %v5464
    %v5466 = vmul.f32 %v5463, %v5465
    %v5467 = vadd.f32 %v5463, %v5466
    %vm5468 = vweird.f32 %v5357
    %vm5469 = vweird.f32 %v5463
    %vm5470 = vmor %vm5468, %vm5469
    %v5471 = vsel %vm5470, %v5463, %v5467
    %v5472 = vand.u32 2147483647, %v5357
    %vm5473 = vcmp.eq.f32.partialorder %v5472, 8.507059e+37
    %v5474 = vand.u32 %v5357, 2147483648
    %v5475 = vor.u32 1.1754944e-38, %v5474
    %v5476 = vsel %vm5473, %v5475, %v5471
    %v5477 = vmul.f32 1.0, %v5476
    %v5478 = vmul.f32 %v5372, 1.0614054
    %v5479 = vmul.f32 %v5387, 1.0614054
    %v5480 = vmul.f32 %v5402, 1.0614054
    %v5481 = vmul.f32 %v5417, 1.0614054
    %v5482 = vmul.f32 %v5432, 1.0614054
    %v5483 = vmul.f32 %v5447, 1.0614054
    %v5484 = vmul.f32 %v5462, 1.0614054
    %v5485 = vmul.f32 %v5477, 1.0614054
    %v5486 = vadd.f32 %v5478, -1.4531521
    %v5487 = vadd.f32 %v5479, -1.4531521
    %v5488 = vadd.f32 %v5480, -1.4531521
    %v5489 = vadd.f32 %v5481, -1.4531521
    %v5490 = vadd.f32 %v5482, -1.4531521
    %v5491 = vadd.f32 %v5483, -1.4531521
    %v5492 = vadd.f32 %v5484, -1.4531521
    %v5493 = vadd.f32 %v5485, -1.4531521
    %v5494 = vmul.f32 %v5486, %v5372
    %v5495 = vmul.f32 %v5487, %v5387
    %v5496 = vmul.f32 %v5488, %v5402
    %v5497 = vmul.f32 %v5489, %v5417
    %v5498 = vmul.f32 %v5490, %v5432
    %v5499 = vmul.f32 %v5491, %v5447
    %v5500 = vmul.f32 %v5492, %v5462
    %v5501 = vmul.f32 %v5493, %v5477
    %v5502 = vadd.f32 %v5494, 1.4214138
    %v5503 = vadd.f32 %v5495, 1.4214138
    %v5504 = vadd.f32 %v5496, 1.4214138
    %v5505 = vadd.f32 %v5497, 1.4214138
    %v5506 = vadd.f32 %v5498, 1.4214138
    %v5507 = vadd.f32 %v5499, 1.4214138
    %v5508 = vadd.f32 %v5500, 1.4214138
    %v5509 = vadd.f32 %v5501, 1.4214138
    %v5510 = vmul.f32 %v5502, %v5372
    %v5511 = vmul.f32 %v5503, %v5387
    %v5512 = vmul.f32 %v5504, %v5402
    %v5513 = vmul.f32 %v5505, %v5417
    %v5514 = vmul.f32 %v5506, %v5432
    %v5515 = vmul.f32 %v5507, %v5447
    %v5516 = vmul.f32 %v5508, %v5462
    %v5517 = vmul.f32 %v5509, %v5477
    %v5518 = vadd.f32 %v5510, -0.28449672
    %v5519 = vadd.f32 %v5511, -0.28449672
    %v5520 = vadd.f32 %v5512, -0.28449672
    %v5521 = vadd.f32 %v5513, -0.28449672
    %v5522 = vadd.f32 %v5514, -0.28449672
    %v5523 = vadd.f32 %v5515, -0.28449672
    %v5524 = vadd.f32 %v5516, -0.28449672
    %v5525 = vadd.f32 %v5517, -0.28449672
    %v5526 = vmul.f32 %v5518, %v5372
    %v5527 = vmul.f32 %v5519, %v5387
    %v5528 = vmul.f32 %v5520, %v5402
    %v5529 = vmul.f32 %v5521, %v5417
    %v5530 = vmul.f32 %v5522, %v5432
    %v5531 = vmul.f32 %v5523, %v5447
    %v5532 = vmul.f32 %v5524, %v5462
    %v5533 = vmul.f32 %v5525, %v5477
    %v5534 = vadd.f32 %v5526, 0.2548296
    %v5535 = vadd.f32 %v5527, 0.2548296
    %v5536 = vadd.f32 %v5528, 0.2548296
    %v5537 = vadd.f32 %v5529, 0.2548296
    %v5538 = vadd.f32 %v5530, 0.2548296
    %v5539 = vadd.f32 %v5531, 0.2548296
    %v5540 = vadd.f32 %v5532, 0.2548296
    %v5541 = vadd.f32 %v5533, 0.2548296
    %v5542 = vmul.f32 %v5534, %v5372
    %v5543 = vmul.f32 %v5535, %v5387
    %v5544 = vmul.f32 %v5536, %v5402
    %v5545 = vmul.f32 %v5537, %v5417
    %v5546 = vmul.f32 %v5538, %v5432
    %v5547 = vmul.f32 %v5539, %v5447
    %v5548 = vmul.f32 %v5540, %v5462
    %v5549 = vmul.f32 %v5541, %v5477
    %v5550 = vsub.f32 0.0, %v5334
    %v5551 = vsub.f32 0.0, %v5335
    %v5552 = vsub.f32 0.0, %v5336
    %v5553 = vsub.f32 0.0, %v5337
    %v5554 = vsub.f32 0.0, %v5338
    %v5555 = vsub.f32 0.0, %v5339
    %v5556 = vsub.f32 0.0, %v5340
    %v5557 = vsub.f32 0.0, %v5341
    %v5558 = vmul.f32 %v5550, %v5334
    %v5559 = vmul.f32 %v5551, %v5335
    %v5560 = vmul.f32 %v5552, %v5336
    %v5561 = vmul.f32 %v5553, %v5337
    %v5562 = vmul.f32 %v5554, %v5338
    %v5563 = vmul.f32 %v5555, %v5339
    %v5564 = vmul.f32 %v5556, %v5340
    %v5565 = vmul.f32 %v5557, %v5341
    %v5566 = vmul.f32 %v5558, 1.442695
    %v5567 = vpow.pop %v5566
    %v5568 = vmul.f32 %v5559, 1.442695
    %v5569 = vpow.pop %v5568
    %v5570 = vmul.f32 %v5560, 1.442695
    %v5571 = vpow.pop %v5570
    %v5572 = vmul.f32 %v5561, 1.442695
    %v5573 = vpow.pop %v5572
    %v5574 = vmul.f32 %v5562, 1.442695
    %v5575 = vpow.pop %v5574
    %v5576 = vmul.f32 %v5563, 1.442695
    %v5577 = vpow.pop %v5576
    %v5578 = vmul.f32 %v5564, 1.442695
    %v5579 = vpow.pop %v5578
    %v5580 = vmul.f32 %v5565, 1.442695
    %v5581 = vpow.pop %v5580
    %v5582 = vmul.f32 %v5542, %v5567
    %v5583 = vmul.f32 %v5543, %v5569
    %v5584 = vmul.f32 %v5544, %v5571
    %v5585 = vmul.f32 %v5545, %v5573
    %v5586 = vmul.f32 %v5546, %v5575
    %v5587 = vmul.f32 %v5547, %v5577
    %v5588 = vmul.f32 %v5548, %v5579
    %v5589 = vmul.f32 %v5549, %v5581
    %v5590 = vsub.f32 1.0, %v5582
    %v5591 = vsub.f32 1.0, %v5583
    %v5592 = vsub.f32 1.0, %v5584
    %v5593 = vsub.f32 1.0, %v5585
    %v5594 = vsub.f32 1.0, %v5586
    %v5595 = vsub.f32 1.0, %v5587
    %v5596 = vsub.f32 1.0, %v5588
    %v5597 = vsub.f32 1.0, %v5589
    %v5598 = vmul.f32 %v5326, %v5590
    %v5599 = vmul.f32 %v5327, %v5591
    %v5600 = vmul.f32 %v5328, %v5592
    %v5601 = vmul.f32 %v5329, %v5593
    %v5602 = vmul.f32 %v5330, %v5594
    %v5603 = vmul.f32 %v5331, %v5595
    %v5604 = vmul.f32 %v5332, %v5596
    %v5605 = vmul.f32 %v5333, %v5597
    %v5606 = vadd.f32 %v5598, 1.0
    %v5607 = vadd.f32 %v5599, 1.0
    %v5608 = vadd.f32 %v5600, 1.0
    %v5609 = vadd.f32 %v5601, 1.0
    %v5610 = vadd.f32 %v5602, 1.0
    %v5611 = vadd.f32 %v5603, 1.0
    %v5612 = vadd.f32 %v5604, 1.0
    %v5613 = vadd.f32 %v5605, 1.0
    %v5614 = vmul.f32 %v5302, %v5606
    %v5615 = vmul.f32 %v5303, %v5607
    %v5616 = vmul.f32 %v5304, %v5608
    %v5617 = vmul.f32 %v5305, %v5609
    %v5618 = vmul.f32 %v5306, %v5610
    %v5619 = vmul.f32 %v5307, %v5611
    %v5620 = vmul.f32 %v5308, %v5612
    %v5621 = vmul.f32 %v5309, %v5613
    %v5622 = vperm.slane %v63, 0
    %vm5623 = vcmask 523264
    %v5625 = vsel %vm5623, %v5614, 0
    %v5628 = vsel %vm5623, %v5615, 0
    %v5631 = vsel %vm5623, %v5616, 0
    %v5634 = vsel %vm5623, %v5617, 0
    %v5637 = vsel %vm5623, %v5618, 0
    %v5640 = vsel %vm5623, %v5619, 0
    %v5643 = vsel %vm5623, %v5620, 0
    %v5646 = vsel %vm5623, %v5621, 0
    %5648 = vmatpush.msra.mxu0 0.0
    %5649 = vmatpush.msra.mxu0 0.0
    %5650 = vmatpush.msra.mxu0 0.0
    %5651 = vmatpush.msra.mxu0 0.0
    %5652 = vmatpush.msra.mxu0 0.0
    %5653 = vmatpush.msra.mxu0 0.0
    %5654 = vmatpush.msra.mxu0 0.0
    %5655 = vmatpush.msra.mxu0 0.0
    %5656 = vmatpush.msra.mxu0 %v61
    %5657 = vmatpush.msra.mxu0 %v60
    %5658 = vmatpush.msra.mxu0 %v59
    %5659 = vmatpush.msra.mxu0 %v58
    %5660 = vmatpush.msra.mxu0 %v57
    %5661 = vmatpush.msra.mxu0 %v56
    %5662 = vmatpush.msra.mxu0 %v55
    %5663 = vmatpush.msra.mxu0 %v54
    %5664 = vmatmul.f32.gmra.mxu0 %v5625
    %v5665 = vpop.f32.mrf.mxu0
    %v5666 = vadd.f32 %v5622, %v5665
    %5667 = vmatmul.f32.gmra.mxu0 %v5628
    %v5668 = vpop.f32.mrf.mxu0
    %v5669 = vadd.f32 %v5622, %v5668
    %5670 = vmatmul.f32.gmra.mxu0 %v5631
    %v5671 = vpop.f32.mrf.mxu0
    %v5672 = vadd.f32 %v5622, %v5671
    %5673 = vmatmul.f32.gmra.mxu0 %v5634
    %v5674 = vpop.f32.mrf.mxu0
    %v5675 = vadd.f32 %v5622, %v5674
    %5676 = vmatmul.f32.gmra.mxu0 %v5637
    %v5677 = vpop.f32.mrf.mxu0
    %v5678 = vadd.f32 %v5622, %v5677
    %5679 = vmatmul.f32.gmra.mxu0 %v5640
    %v5680 = vpop.f32.mrf.mxu0
    %v5681 = vadd.f32 %v5622, %v5680
    %5682 = vmatmul.f32.gmra.mxu0 %v5643
    %v5683 = vpop.f32.mrf.mxu0
    %v5684 = vadd.f32 %v5622, %v5683
    %5685 = vmatmul.f32.gmra.mxu0 %v5646
    %v5686 = vpop.f32.mrf.mxu0
    %v5687 = vadd.f32 %v5622, %v5686
    %5688 = vdwg.mxu0
    %v5689 = vadd.f32 %v5666, %v5022
    %v5690 = vadd.f32 %v5669, %v5023
    %v5691 = vadd.f32 %v5672, %v5024
    %v5692 = vadd.f32 %v5675, %v5025
    %v5693 = vadd.f32 %v5678, %v5026
    %v5694 = vadd.f32 %v5681, %v5027
    %v5695 = vadd.f32 %v5684, %v5028
    %v5696 = vadd.f32 %v5687, %v5029
    %5697 = vst.msk [vmem:[%s3] sm:$0xff] %vm64, %v5689
    %5698 = vst.msk [vmem:[%s3 + $0x8] sm:$0xff] %vm64, %v5690
    %5699 = vst.msk [vmem:[%s3 + $0x10] sm:$0xff] %vm64, %v5691
    %5700 = vst.msk [vmem:[%s3 + $0x18] sm:$0xff] %vm64, %v5692
    %5701 = vst.msk [vmem:[%s3 + $0x20] sm:$0xff] %vm64, %v5693
    %5702 = vst.msk [vmem:[%s3 + $0x28] sm:$0xff] %vm64, %v5694
    %5703 = vst.msk [vmem:[%s3 + $0x30] sm:$0xff] %vm64, %v5695
    %5704 = vst.msk [vmem:[%s3 + $0x38] sm:$0xff] %vm64, %v5696
    // Predicated region
    $region18: #{tpu_custom_call.1} parent=1 // pred_check
      _
    $region19: #{tpu_custom_call.1} parent=1 // pred_check_branch
      %5706 = sbr.rel (0) target = $region21
    $region20: #{tpu_custom_call.1} parent=1 // pred_region
      _
    $region21: #{tpu_custom_call.1} parent=1 // pred_fallthru
      _
    // Predicated region
    $region22: #{tpu_custom_call.1} parent=1 // pred_check
      _
    $region23: #{tpu_custom_call.1} parent=1 // pred_check_branch
      %5708 = sbr.rel (0) target = $region25
    $region24: #{tpu_custom_call.1} parent=1 // pred_region
      _
    $region25: #{tpu_custom_call.1} parent=1 // pred_fallthru
      _
    %5709 = vsyncpa [#allocation3], 1

</llo_original>
